<compile_context>
chip_gen: v7x
topology: tpu7x:2x2x1
jax: 0.10.0
libtpu: 0.0.40
codegen_flags: <defaults>
</compile_context>

<pallas_src>
import jax
import jax.numpy as jnp
from jax.experimental import pallas as pl
from jax.experimental.pallas import tpu as pltpu


# ----------------------------------------------------------------------------
# Pallas kernels
# ----------------------------------------------------------------------------
def _conv_pool_kernel(p_ref, w_ref, shift_ref, o_ref):
    """Fused Conv3x3(pad=1) + BN + ReLU + MaxPool2x2 on a patch tile.

    p_ref:     (TM, K)   bf16  one row per pooled output pixel (4x4 window patch)
    w_ref:     (4, K, C) bf16  per-pool-position conv weights, BN scale folded in
    shift_ref: (1, C)    f32   folded BN shift = beta + scale*(bias - mean)
    o_ref:     (TM, C)   bf16  pooled, BN'd, ReLU'd output
    """
    p = p_ref[...]
    z = jnp.dot(p, w_ref[0], preferred_element_type=jnp.float32)
    for pos in range(1, 4):
        z = jnp.maximum(z, jnp.dot(p, w_ref[pos],
                                   preferred_element_type=jnp.float32))
    # shift + ReLU are monotone & shared across the 4 window positions, so they
    # commute with the max -> apply once after the max.
    z = jnp.maximum(z + shift_ref[...], 0.0)
    o_ref[...] = z.astype(o_ref.dtype)


def _fc_kernel(x_ref, w1_ref, shift1_ref, w2_ref, b2_ref, o_ref):
    """Fused Linear(1568,128) + BN1d (folded) + Dropout(eval) + Linear(128,10)."""
    h = jnp.dot(x_ref[...], w1_ref[...], preferred_element_type=jnp.float32)
    h = h + shift1_ref[...]
    # TODO(synk): Dropout(0.3) is identity in eval mode; train-mode RNG masking
    # is not implemented.
    logits = jnp.dot(h.astype(jnp.bfloat16), w2_ref[...],
                     preferred_element_type=jnp.float32)
    o_ref[...] = logits + b2_ref[...]


# ----------------------------------------------------------------------------
# pallas_call wrappers (batch-tiled grids, pipelined & megacore-parallel)
# ----------------------------------------------------------------------------
def conv_bn_relu_pool(patches, w4, shift, *, images, rows_per_image,
                      images_per_tile=32):
    """patches: (B*rows_per_image, K) bf16 -> (B*rows_per_image, C) bf16."""
    M, K = patches.shape
    C = w4.shape[-1]
    tb = min(images_per_tile, images)          # images_per_tile is a mult of 8
    tm = tb * rows_per_image
    grid = (pl.cdiv(images, tb),)
    return pl.pallas_call(
        _conv_pool_kernel,
        out_shape=jax.ShapeDtypeStruct((M, C), jnp.bfloat16),
        grid=grid,
        in_specs=[
            pl.BlockSpec((tm, K), lambda i: (i, 0)),
            pl.BlockSpec((4, K, C), lambda i: (0, 0, 0)),
            pl.BlockSpec((1, C), lambda i: (0, 0)),
        ],
        out_specs=pl.BlockSpec((tm, C), lambda i: (i, 0)),
        compiler_params=pltpu.CompilerParams(
            dimension_semantics=("parallel",)),
    )(patches, w4, shift)


def fc_head(x, w1, shift1, w2, b2, *, images_per_tile=256):
    """x: (B, 1568) bf16 -> logits (B, 10) f32."""
    B, K = x.shape
    N = w2.shape[-1]
    tb = min(images_per_tile, B)
    grid = (pl.cdiv(B, tb),)
    return pl.pallas_call(
        _fc_kernel,
        out_shape=jax.ShapeDtypeStruct((B, N), jnp.float32),
        grid=grid,
        in_specs=[
            pl.BlockSpec((tb, K), lambda i: (i, 0)),
            pl.BlockSpec(w1.shape, lambda i: (0, 0)),
            pl.BlockSpec((1, w1.shape[1]), lambda i: (0, 0)),
            pl.BlockSpec(w2.shape, lambda i: (0, 0)),
            pl.BlockSpec((1, N), lambda i: (0, 0)),
        ],
        out_specs=pl.BlockSpec((tb, N), lambda i: (i, 0)),
        compiler_params=pltpu.CompilerParams(
            dimension_semantics=("parallel",)),
    )(x, w1, shift1, w2, b2)


# ----------------------------------------------------------------------------
# Wrapper glue: patch building + parameter folding / permutation (done once)
# ----------------------------------------------------------------------------
def pool_window_patches(xpad):
    """xpad: (B, Hp, Wp, C) zero-padded (pad=1) conv input, NHWC.

    Returns (B*oh*ow, 16*C): one row per pooled output pixel; the columns are
    the 4x4 input window (rows/cols 2io..2io+3 of the padded map) that the four
    3x3 convs feeding that pool window need, ordered (p, q, c)."""
    B, Hp, Wp, C = xpad.shape
    oh, ow = (Hp - 2) // 2, (Wp - 2) // 2
    slabs = []
    for p in range(4):
        for q in range(4):
            slabs.append(xpad[:, p:p + 2 * oh - 1:2, q:q + 2 * ow - 1:2, :])
    pat = jnp.stack(slabs, axis=3)                     # (B, oh, ow, 16, C)
    return pat.reshape(B * oh * ow, 16 * C)


def pool_conv_weights(w_oihw, gamma, beta, mean, var, bias, eps=1e-5):
    """Conv weight -> 4 per-pool-position (16*Cin, Cout) matrices (zero rows for
    unused window positions), with BN scale folded in; plus folded BN shift."""
    Cout, Cin, _, _ = w_oihw.shape
    scale = gamma / jnp.sqrt(var + eps)                # (Cout,)
    shift = beta + scale * (bias - mean)               # (Cout,)
    wt = jnp.transpose(w_oihw, (2, 3, 1, 0))           # (3, 3, Cin, Cout)
    mats = []
    for di in range(2):
        for dj in range(2):
            m = jnp.zeros((4, 4, Cin, Cout), jnp.float32)
            m = m.at[di:di + 3, dj:dj + 3].set(wt)
            mats.append(m.reshape(16 * Cin, Cout))     # row = (p*4+q)*Cin + c
    w4 = jnp.stack(mats, axis=0) * scale[None, None, :]
    return w4.astype(jnp.bfloat16), shift.reshape(1, Cout).astype(jnp.float32)


def fc_weights(wf1, bf1, gamma, beta, mean, var, eps=1e-5):
    """Permute wf1 rows from PyTorch NCHW-flatten order (c,h,w) to the (h,w,c)
    order our conv2 output flattens to, and fold the BatchNorm1d scale/shift."""
    scale = gamma / jnp.sqrt(var + eps)
    shift = beta + scale * (bf1 - mean)
    w = wf1.reshape(32, 7, 7, 128).transpose(1, 2, 0, 3).reshape(7 * 7 * 32, 128)
    w = w * scale[None, :]
    return w.astype(jnp.bfloat16), shift.reshape(1, 128).astype(jnp.float32)


# ----------------------------------------------------------------------------
# Parameters (mirror the PyTorch module) + forward pass
# ----------------------------------------------------------------------------
def init_raw_params(key):
    ks = jax.random.split(key, 12)
    r = {}
    # conv1: Conv2d(1, 8, 3, padding=1) + BatchNorm2d(8)
    r['w1'] = 0.1 * jax.random.normal(ks[0], (8, 1, 3, 3), jnp.float32)
    r['b1'] = 0.01 * jax.random.normal(ks[1], (8,), jnp.float32)
    r['g1'] = 1.0 + 0.1 * jax.random.normal(ks[2], (8,), jnp.float32)
    r['be1'] = 0.1 * jax.random.normal(ks[3], (8,), jnp.float32)
    r['m1'], r['v1'] = jnp.zeros((8,)), jnp.ones((8,))
    # conv2: Conv2d(8, 32, 3, padding=1) + BatchNorm2d(32)
    r['w2'] = 0.1 * jax.random.normal(ks[4], (32, 8, 3, 3), jnp.float32)
    r['b2'] = 0.01 * jax.random.normal(ks[5], (32,), jnp.float32)
    r['g2'] = 1.0 + 0.1 * jax.random.normal(ks[6], (32,), jnp.float32)
    r['be2'] = 0.1 * jax.random.normal(ks[7], (32,), jnp.float32)
    r['m2'], r['v2'] = jnp.zeros((32,)), jnp.ones((32,))
    # fc: Linear(1568, 128) + BatchNorm1d(128) + Dropout(0.3) + Linear(128, 10)
    r['wf1'] = 0.02 * jax.random.normal(ks[8], (7 * 7 * 32, 128), jnp.float32)
    r['bf1'] = 0.01 * jax.random.normal(ks[9], (128,), jnp.float32)
    r['gf'] = 1.0 + 0.1 * jax.random.normal(ks[10], (128,), jnp.float32)
    r['bef'] = jnp.zeros((128,))
    r['mf'], r['vf'] = jnp.zeros((128,)), jnp.ones((128,))
    r['wf2'] = 0.1 * jax.random.normal(ks[11], (128, 10), jnp.float32)
    r['bf2'] = jnp.zeros((10,))
    return r


def prepare_params(r):
    """Fold BN into weights/shifts and pre-permute wf1 (done once, offline)."""
    p = {}
    p['cw1'], p['cs1'] = pool_conv_weights(r['w1'], r['g1'], r['be1'],
                                           r['m1'], r['v1'], r['b1'])
    p['cw2'], p['cs2'] = pool_conv_weights(r['w2'], r['g2'], r['be2'],
                                           r['m2'], r['v2'], r['b2'])
    p['fw1'], p['fs1'] = fc_weights(r['wf1'], r['bf1'], r['gf'], r['bef'],
                                    r['mf'], r['vf'])
    p['fw2'] = r['wf2'].astype(jnp.bfloat16)
    p['fb2'] = r['bf2'].reshape(1, 10).astype(jnp.float32)
    return p


def cnn_forward(x_nchw, p):
    B = x_nchw.shape[0]
    assert x_nchw.shape[1:] == (1, 28, 28)

    # conv1 block: Conv(1->8) + BN + ReLU + MaxPool2   -> (B*14*14, 8)
    x = jnp.transpose(x_nchw, (0, 2, 3, 1)).astype(jnp.bfloat16)   # NHWC
    xpad = jnp.pad(x, ((0, 0), (1, 1), (1, 1), (0, 0)))
    pat1 = pool_window_patches(xpad)                                # (B*196, 16)
    y1 = conv_bn_relu_pool(pat1, p['cw1'], p['cs1'],
                           images=B, rows_per_image=196)

    # conv2 block: Conv(8->32) + BN + ReLU + MaxPool2  -> (B*7*7, 32)
    y1 = y1.reshape(B, 14, 14, 8)
    y1pad = jnp.pad(y1, ((0, 0), (1, 1), (1, 1), (0, 0)))
    pat2 = pool_window_patches(y1pad)                               # (B*49, 128)
    y2 = conv_bn_relu_pool(pat2, p['cw2'], p['cs2'],
                           images=B, rows_per_image=49)

    # fc head: the reshape is free (contiguous) because wf1 was pre-permuted to
    # the (h, w, c) flatten order -> matches PyTorch's NCHW view(B, -1) result.
    flat = y2.reshape(B, 7 * 7 * 32)
    return fc_head(flat, p['fw1'], p['fs1'], p['fw2'], p['fb2'])


if __name__ == "__main__":
    key = jax.random.PRNGKey(0)
    pkey, xkey = jax.random.split(key)
    raw = init_raw_params(pkey)
    params = prepare_params(raw)
    # MNIST-shaped input implied by the module (fc expects 7*7*32): (B, 1, 28, 28)
    x = jax.random.normal(xkey, (2, 1, 28, 28), jnp.float32)

    fwd = jax.jit(lambda inp: cnn_forward(inp, params))
    logits = fwd(x)
    jax.block_until_ready(logits)
    assert logits.shape == (2, 10) and logits.dtype == jnp.float32
    print("KERNEL_OK")
</pallas_src>

<mosaic_0001>
module attributes {stable_mosaic.version = 11 : i64} {
  func.func @_conv_pool_kernel(%arg0: i32, %arg1: memref<392x16xbf16, #tpu.memory_space<vmem>>, %arg2: memref<4x16x8xbf16, #tpu.memory_space<vmem>>, %arg3: memref<1x8xf32, #tpu.memory_space<vmem>>, %arg4: memref<392x8xbf16, #tpu.memory_space<vmem>>) attributes {dimension_semantics = [#tpu.dimension_semantics<parallel>], iteration_bounds = array<i64: 1>, scalar_prefetch = 0 : i64, scratch_operands = 0 : i64, tpu.core_type = #tpu.core_type<tc>, window_params = [{transform_indices = @transform_0, window_bounds = array<i64: 392, 16>}, {pipeline_mode = #tpu.pipeline_mode<synchronous>, transform_indices = @transform_1, window_bounds = array<i64: 4, 16, 8>}, {pipeline_mode = #tpu.pipeline_mode<synchronous>, transform_indices = @transform_2, window_bounds = array<i64: 1, 8>}, {transform_indices = @transform_3, window_bounds = array<i64: 392, 8>}]} {
    %c0 = arith.constant 0 : index
    %c0_0 = arith.constant 0 : index
    %0 = vector.load %arg1[%c0, %c0_0] : memref<392x16xbf16, #tpu.memory_space<vmem>>, vector<392x16xbf16>
    %c0_1 = arith.constant 0 : index
    %c0_2 = arith.constant 0 : index
    %c0_3 = arith.constant 0 : index
    %1 = vector.load %arg2[%c0_1, %c0_2, %c0_3] : memref<4x16x8xbf16, #tpu.memory_space<vmem>>, vector<1x16x8xbf16>
    %2 = vector.shape_cast %1 : vector<1x16x8xbf16> to vector<16x8xbf16>
    %cst = arith.constant dense<0.000000e+00> : vector<392x8xf32>
    %3 = tpu.matmul %0, %2, %cst {dimension_numbers = #tpu.dot_dimension_numbers<[1], [0], [0], [1], [0, 0, 1, 1], [], []>} : vector<392x16xbf16>, vector<16x8xbf16>, vector<392x8xf32> -> vector<392x8xf32>
    %c1 = arith.constant 1 : index
    %c0_4 = arith.constant 0 : index
    %c0_5 = arith.constant 0 : index
    %4 = vector.load %arg2[%c1, %c0_4, %c0_5] : memref<4x16x8xbf16, #tpu.memory_space<vmem>>, vector<1x16x8xbf16>
    %5 = vector.shape_cast %4 : vector<1x16x8xbf16> to vector<16x8xbf16>
    %cst_6 = arith.constant dense<0.000000e+00> : vector<392x8xf32>
    %6 = tpu.matmul %0, %5, %cst_6 {dimension_numbers = #tpu.dot_dimension_numbers<[1], [0], [0], [1], [0, 0, 1, 1], [], []>} : vector<392x16xbf16>, vector<16x8xbf16>, vector<392x8xf32> -> vector<392x8xf32>
    %7 = arith.maximumf %3, %6 : vector<392x8xf32>
    %c2 = arith.constant 2 : index
    %c0_7 = arith.constant 0 : index
    %c0_8 = arith.constant 0 : index
    %8 = vector.load %arg2[%c2, %c0_7, %c0_8] : memref<4x16x8xbf16, #tpu.memory_space<vmem>>, vector<1x16x8xbf16>
    %9 = vector.shape_cast %8 : vector<1x16x8xbf16> to vector<16x8xbf16>
    %cst_9 = arith.constant dense<0.000000e+00> : vector<392x8xf32>
    %10 = tpu.matmul %0, %9, %cst_9 {dimension_numbers = #tpu.dot_dimension_numbers<[1], [0], [0], [1], [0, 0, 1, 1], [], []>} : vector<392x16xbf16>, vector<16x8xbf16>, vector<392x8xf32> -> vector<392x8xf32>
    %11 = arith.maximumf %7, %10 : vector<392x8xf32>
    %c3 = arith.constant 3 : index
    %c0_10 = arith.constant 0 : index
    %c0_11 = arith.constant 0 : index
    %12 = vector.load %arg2[%c3, %c0_10, %c0_11] : memref<4x16x8xbf16, #tpu.memory_space<vmem>>, vector<1x16x8xbf16>
    %13 = vector.shape_cast %12 : vector<1x16x8xbf16> to vector<16x8xbf16>
    %cst_12 = arith.constant dense<0.000000e+00> : vector<392x8xf32>
    %14 = tpu.matmul %0, %13, %cst_12 {dimension_numbers = #tpu.dot_dimension_numbers<[1], [0], [0], [1], [0, 0, 1, 1], [], []>} : vector<392x16xbf16>, vector<16x8xbf16>, vector<392x8xf32> -> vector<392x8xf32>
    %15 = arith.maximumf %11, %14 : vector<392x8xf32>
    %c0_13 = arith.constant 0 : index
    %c0_14 = arith.constant 0 : index
    %16 = vector.load %arg3[%c0_13, %c0_14] : memref<1x8xf32, #tpu.memory_space<vmem>>, vector<1x8xf32>
    %17 = vector.broadcast %16 : vector<1x8xf32> to vector<392x8xf32>
    %18 = arith.addf %15, %17 : vector<392x8xf32>
    %cst_15 = arith.constant 0.000000e+00 : f32
    %19 = vector.broadcast %cst_15 : f32 to vector<392x8xf32>
    %20 = arith.maximumf %18, %19 : vector<392x8xf32>
    %21 = arith.truncf %20 : vector<392x8xf32> to vector<392x8xbf16>
    %c0_16 = arith.constant 0 : index
    %c0_17 = arith.constant 0 : index
    %22 = vector.load %arg4[%c0_16, %c0_17] : memref<392x8xbf16, #tpu.memory_space<vmem>>, vector<392x8xbf16>
    tpu.vector_store %arg4[%c0_16, %c0_17], %21 {strides = array<i32>} : memref<392x8xbf16, #tpu.memory_space<vmem>>, vector<392x8xbf16>,
    return
  }
  func.func @transform_0(%arg0: i32) -> (i32, i32) {
    %c0_i32 = arith.constant 0 : i32
    %c0_i32_0 = arith.constant 0 : i32
    return %arg0, %c0_i32 : i32, i32
  }
  func.func @transform_1(%arg0: i32) -> (i32, i32, i32) {
    %c0_i32 = arith.constant 0 : i32
    %c0_i32_0 = arith.constant 0 : i32
    %c0_i32_1 = arith.constant 0 : i32
    %c0_i32_2 = arith.constant 0 : i32
    return %c0_i32, %c0_i32_0, %c0_i32_1 : i32, i32, i32
  }
  func.func @transform_2(%arg0: i32) -> (i32, i32) {
    %c0_i32 = arith.constant 0 : i32
    %c0_i32_0 = arith.constant 0 : i32
    %c0_i32_1 = arith.constant 0 : i32
    return %c0_i32, %c0_i32_0 : i32, i32
  }
  func.func @transform_3(%arg0: i32) -> (i32, i32) {
    %c0_i32 = arith.constant 0 : i32
    %c0_i32_0 = arith.constant 0 : i32
    return %arg0, %c0_i32 : i32, i32
  }
}

module attributes {stable_mosaic.version = 11 : i64} {
  func.func @_conv_pool_kernel(%arg0: i32, %arg1: memref<98x128xbf16, #tpu.memory_space<vmem>>, %arg2: memref<4x128x32xbf16, #tpu.memory_space<vmem>>, %arg3: memref<1x32xf32, #tpu.memory_space<vmem>>, %arg4: memref<98x32xbf16, #tpu.memory_space<vmem>>) attributes {dimension_semantics = [#tpu.dimension_semantics<parallel>], iteration_bounds = array<i64: 1>, scalar_prefetch = 0 : i64, scratch_operands = 0 : i64, tpu.core_type = #tpu.core_type<tc>, window_params = [{transform_indices = @transform_0, window_bounds = array<i64: 98, 128>}, {pipeline_mode = #tpu.pipeline_mode<synchronous>, transform_indices = @transform_1, window_bounds = array<i64: 4, 128, 32>}, {pipeline_mode = #tpu.pipeline_mode<synchronous>, transform_indices = @transform_2, window_bounds = array<i64: 1, 32>}, {transform_indices = @transform_3, window_bounds = array<i64: 98, 32>}]} {
    %c0 = arith.constant 0 : index
    %c0_0 = arith.constant 0 : index
    %0 = vector.load %arg1[%c0, %c0_0] : memref<98x128xbf16, #tpu.memory_space<vmem>>, vector<98x128xbf16>
    %c0_1 = arith.constant 0 : index
    %c0_2 = arith.constant 0 : index
    %c0_3 = arith.constant 0 : index
    %1 = vector.load %arg2[%c0_1, %c0_2, %c0_3] : memref<4x128x32xbf16, #tpu.memory_space<vmem>>, vector<1x128x32xbf16>
    %2 = vector.shape_cast %1 : vector<1x128x32xbf16> to vector<128x32xbf16>
    %cst = arith.constant dense<0.000000e+00> : vector<98x32xf32>
    %3 = tpu.matmul %0, %2, %cst {dimension_numbers = #tpu.dot_dimension_numbers<[1], [0], [0], [1], [0, 0, 1, 1], [], []>} : vector<98x128xbf16>, vector<128x32xbf16>, vector<98x32xf32> -> vector<98x32xf32>
    %c1 = arith.constant 1 : index
    %c0_4 = arith.constant 0 : index
    %c0_5 = arith.constant 0 : index
    %4 = vector.load %arg2[%c1, %c0_4, %c0_5] : memref<4x128x32xbf16, #tpu.memory_space<vmem>>, vector<1x128x32xbf16>
    %5 = vector.shape_cast %4 : vector<1x128x32xbf16> to vector<128x32xbf16>
    %cst_6 = arith.constant dense<0.000000e+00> : vector<98x32xf32>
    %6 = tpu.matmul %0, %5, %cst_6 {dimension_numbers = #tpu.dot_dimension_numbers<[1], [0], [0], [1], [0, 0, 1, 1], [], []>} : vector<98x128xbf16>, vector<128x32xbf16>, vector<98x32xf32> -> vector<98x32xf32>
    %7 = arith.maximumf %3, %6 : vector<98x32xf32>
    %c2 = arith.constant 2 : index
    %c0_7 = arith.constant 0 : index
    %c0_8 = arith.constant 0 : index
    %8 = vector.load %arg2[%c2, %c0_7, %c0_8] : memref<4x128x32xbf16, #tpu.memory_space<vmem>>, vector<1x128x32xbf16>
    %9 = vector.shape_cast %8 : vector<1x128x32xbf16> to vector<128x32xbf16>
    %cst_9 = arith.constant dense<0.000000e+00> : vector<98x32xf32>
    %10 = tpu.matmul %0, %9, %cst_9 {dimension_numbers = #tpu.dot_dimension_numbers<[1], [0], [0], [1], [0, 0, 1, 1], [], []>} : vector<98x128xbf16>, vector<128x32xbf16>, vector<98x32xf32> -> vector<98x32xf32>
    %11 = arith.maximumf %7, %10 : vector<98x32xf32>
    %c3 = arith.constant 3 : index
    %c0_10 = arith.constant 0 : index
    %c0_11 = arith.constant 0 : index
    %12 = vector.load %arg2[%c3, %c0_10, %c0_11] : memref<4x128x32xbf16, #tpu.memory_space<vmem>>, vector<1x128x32xbf16>
    %13 = vector.shape_cast %12 : vector<1x128x32xbf16> to vector<128x32xbf16>
    %cst_12 = arith.constant dense<0.000000e+00> : vector<98x32xf32>
    %14 = tpu.matmul %0, %13, %cst_12 {dimension_numbers = #tpu.dot_dimension_numbers<[1], [0], [0], [1], [0, 0, 1, 1], [], []>} : vector<98x128xbf16>, vector<128x32xbf16>, vector<98x32xf32> -> vector<98x32xf32>
    %15 = arith.maximumf %11, %14 : vector<98x32xf32>
    %c0_13 = arith.constant 0 : index
    %c0_14 = arith.constant 0 : index
    %16 = vector.load %arg3[%c0_13, %c0_14] : memref<1x32xf32, #tpu.memory_space<vmem>>, vector<1x32xf32>
    %17 = vector.broadcast %16 : vector<1x32xf32> to vector<98x32xf32>
    %18 = arith.addf %15, %17 : vector<98x32xf32>
    %cst_15 = arith.constant 0.000000e+00 : f32
    %19 = vector.broadcast %cst_15 : f32 to vector<98x32xf32>
    %20 = arith.maximumf %18, %19 : vector<98x32xf32>
    %21 = arith.truncf %20 : vector<98x32xf32> to vector<98x32xbf16>
    %c0_16 = arith.constant 0 : index
    %c0_17 = arith.constant 0 : index
    %22 = vector.load %arg4[%c0_16, %c0_17] : memref<98x32xbf16, #tpu.memory_space<vmem>>, vector<98x32xbf16>
    tpu.vector_store %arg4[%c0_16, %c0_17], %21 {strides = array<i32>} : memref<98x32xbf16, #tpu.memory_space<vmem>>, vector<98x32xbf16>,
    return
  }
  func.func @transform_0(%arg0: i32) -> (i32, i32) {
    %c0_i32 = arith.constant 0 : i32
    %c0_i32_0 = arith.constant 0 : i32
    return %arg0, %c0_i32 : i32, i32
  }
  func.func @transform_1(%arg0: i32) -> (i32, i32, i32) {
    %c0_i32 = arith.constant 0 : i32
    %c0_i32_0 = arith.constant 0 : i32
    %c0_i32_1 = arith.constant 0 : i32
    %c0_i32_2 = arith.constant 0 : i32
    return %c0_i32, %c0_i32_0, %c0_i32_1 : i32, i32, i32
  }
  func.func @transform_2(%arg0: i32) -> (i32, i32) {
    %c0_i32 = arith.constant 0 : i32
    %c0_i32_0 = arith.constant 0 : i32
    %c0_i32_1 = arith.constant 0 : i32
    return %c0_i32, %c0_i32_0 : i32, i32
  }
  func.func @transform_3(%arg0: i32) -> (i32, i32) {
    %c0_i32 = arith.constant 0 : i32
    %c0_i32_0 = arith.constant 0 : i32
    return %arg0, %c0_i32 : i32, i32
  }
}

module attributes {stable_mosaic.version = 11 : i64} {
  func.func @_fc_kernel(%arg0: i32, %arg1: memref<2x1568xbf16, #tpu.memory_space<vmem>>, %arg2: memref<1568x128xbf16, #tpu.memory_space<vmem>>, %arg3: memref<1x128xf32, #tpu.memory_space<vmem>>, %arg4: memref<128x10xbf16, #tpu.memory_space<vmem>>, %arg5: memref<1x10xf32, #tpu.memory_space<vmem>>, %arg6: memref<2x10xf32, #tpu.memory_space<vmem>>) attributes {dimension_semantics = [#tpu.dimension_semantics<parallel>], iteration_bounds = array<i64: 1>, scalar_prefetch = 0 : i64, scratch_operands = 0 : i64, tpu.core_type = #tpu.core_type<tc>, window_params = [{transform_indices = @transform_0, window_bounds = array<i64: 2, 1568>}, {pipeline_mode = #tpu.pipeline_mode<synchronous>, transform_indices = @transform_1, window_bounds = array<i64: 1568, 128>}, {pipeline_mode = #tpu.pipeline_mode<synchronous>, transform_indices = @transform_2, window_bounds = array<i64: 1, 128>}, {pipeline_mode = #tpu.pipeline_mode<synchronous>, transform_indices = @transform_3, window_bounds = array<i64: 128, 10>}, {pipeline_mode = #tpu.pipeline_mode<synchronous>, transform_indices = @transform_4, window_bounds = array<i64: 1, 10>}, {transform_indices = @transform_5, window_bounds = array<i64: 2, 10>}]} {
    %c0 = arith.constant 0 : index
    %c0_0 = arith.constant 0 : index
    %0 = vector.load %arg1[%c0, %c0_0] : memref<2x1568xbf16, #tpu.memory_space<vmem>>, vector<2x1568xbf16>
    %c0_1 = arith.constant 0 : index
    %c0_2 = arith.constant 0 : index
    %1 = vector.load %arg2[%c0_1, %c0_2] : memref<1568x128xbf16, #tpu.memory_space<vmem>>, vector<1568x128xbf16>
    %cst = arith.constant dense<0.000000e+00> : vector<2x128xf32>
    %2 = tpu.matmul %0, %1, %cst {dimension_numbers = #tpu.dot_dimension_numbers<[1], [0], [0], [1], [0, 0, 1, 1], [], []>} : vector<2x1568xbf16>, vector<1568x128xbf16>, vector<2x128xf32> -> vector<2x128xf32>
    %c0_3 = arith.constant 0 : index
    %c0_4 = arith.constant 0 : index
    %3 = vector.load %arg3[%c0_3, %c0_4] : memref<1x128xf32, #tpu.memory_space<vmem>>, vector<1x128xf32>
    %4 = vector.broadcast %3 : vector<1x128xf32> to vector<2x128xf32>
    %5 = arith.addf %2, %4 : vector<2x128xf32>
    %6 = arith.truncf %5 : vector<2x128xf32> to vector<2x128xbf16>
    %c0_5 = arith.constant 0 : index
    %c0_6 = arith.constant 0 : index
    %7 = vector.load %arg4[%c0_5, %c0_6] : memref<128x10xbf16, #tpu.memory_space<vmem>>, vector<128x10xbf16>
    %cst_7 = arith.constant dense<0.000000e+00> : vector<2x10xf32>
    %8 = tpu.matmul %6, %7, %cst_7 {dimension_numbers = #tpu.dot_dimension_numbers<[1], [0], [0], [1], [0, 0, 1, 1], [], []>} : vector<2x128xbf16>, vector<128x10xbf16>, vector<2x10xf32> -> vector<2x10xf32>
    %c0_8 = arith.constant 0 : index
    %c0_9 = arith.constant 0 : index
    %9 = vector.load %arg5[%c0_8, %c0_9] : memref<1x10xf32, #tpu.memory_space<vmem>>, vector<1x10xf32>
    %10 = vector.broadcast %9 : vector<1x10xf32> to vector<2x10xf32>
    %11 = arith.addf %8, %10 : vector<2x10xf32>
    %c0_10 = arith.constant 0 : index
    %c0_11 = arith.constant 0 : index
    %12 = vector.load %arg6[%c0_10, %c0_11] : memref<2x10xf32, #tpu.memory_space<vmem>>, vector<2x10xf32>
    tpu.vector_store %arg6[%c0_10, %c0_11], %11 {strides = array<i32>} : memref<2x10xf32, #tpu.memory_space<vmem>>, vector<2x10xf32>,
    return
  }
  func.func @transform_0(%arg0: i32) -> (i32, i32) {
    %c0_i32 = arith.constant 0 : i32
    %c0_i32_0 = arith.constant 0 : i32
    return %arg0, %c0_i32 : i32, i32
  }
  func.func @transform_1(%arg0: i32) -> (i32, i32) {
    %c0_i32 = arith.constant 0 : i32
    %c0_i32_0 = arith.constant 0 : i32
    %c0_i32_1 = arith.constant 0 : i32
    return %c0_i32, %c0_i32_0 : i32, i32
  }
  func.func @transform_2(%arg0: i32) -> (i32, i32) {
    %c0_i32 = arith.constant 0 : i32
    %c0_i32_0 = arith.constant 0 : i32
    %c0_i32_1 = arith.constant 0 : i32
    return %c0_i32, %c0_i32_0 : i32, i32
  }
  func.func @transform_3(%arg0: i32) -> (i32, i32) {
    %c0_i32 = arith.constant 0 : i32
    %c0_i32_0 = arith.constant 0 : i32
    %c0_i32_1 = arith.constant 0 : i32
    return %c0_i32, %c0_i32_0 : i32, i32
  }
  func.func @transform_4(%arg0: i32) -> (i32, i32) {
    %c0_i32 = arith.constant 0 : i32
    %c0_i32_0 = arith.constant 0 : i32
    %c0_i32_1 = arith.constant 0 : i32
    return %c0_i32, %c0_i32_0 : i32, i32
  }
  func.func @transform_5(%arg0: i32) -> (i32, i32) {
    %c0_i32 = arith.constant 0 : i32
    %c0_i32_0 = arith.constant 0 : i32
    return %arg0, %c0_i32 : i32, i32
  }
}

</mosaic_0001>

<llo_original>
// kernel: _lambda_.3
$region0: #{_lambda_.3}
  #allocation0 [shape = 'u32[]', space=smem, size = 0x4, offset = 0x4, fixed_abs, tag = 'smem constant byte address 0x4 - core index']
  #allocation1 [shape = 'u32[144,128]{1,0:T(1,128)}', space=vmem, size = 0x12000, scoped, tag = 'internal scratch']
  %s0 = inlined_call_operand.vmem [shape: bf16[392,16], index: 0, kind: input, shape index: {}]
  %s1 = inlined_call_operand.vmem [shape: bf16[4,16,8], index: 1, kind: input, shape index: {}]
  %s2 = inlined_call_operand.vmem [shape: f32[1,8], index: 2, kind: input, shape index: {}]
  %s3 = inlined_call_operand.vmem [shape: bf16[392,8], index: 3, kind: output, shape index: {}]
  %s4 = sld [smem:[#allocation0]]
  $region22: #{_lambda_.3} parent=0
    _
  %s6 = ssub.s32 1, %s4
  %s7 = scalar_select 0, %s6, %s4
  // Predicated region
  $region2: #{_lambda_.3} parent=0 // pred_check
    _
  $region3: #{_lambda_.3} parent=0 // pred_check_branch
    %9 = sbr.rel (0) target = $region5
  $region4: #{_lambda_.3} parent=0 // pred_region
    _
  $region5: #{_lambda_.3} parent=0 // pred_fallthru
    _
  // Predicated region
  $region6: #{_lambda_.3} parent=0 // pred_check
    _
  $region7: #{_lambda_.3} parent=0 // pred_check_branch
    %11 = sbr.rel (0) target = $region9
  $region8: #{_lambda_.3} parent=0 // pred_region
    _
  $region9: #{_lambda_.3} parent=0 // pred_fallthru
    _
  // Predicated region
  $region10: #{_lambda_.3} parent=0 // pred_check
    _
  $region11: #{_lambda_.3} parent=0 // pred_check_branch
    %13 = sbr.rel (0) target = $region13
  $region12: #{_lambda_.3} parent=0 // pred_region
    _
  $region13: #{_lambda_.3} parent=0 // pred_fallthru
    _
  %v15 = vld [vmem:[%s0] sm:$0xf]
  %v16 = vld [vmem:[%s0 + $0x4] sm:$0xf]
  %v17 = vld [vmem:[%s0 + $0x8] sm:$0xf]
  %v18 = vld [vmem:[%s0 + $0xc] sm:$0xf]
  %v19 = vld [vmem:[%s0 + $0x10] sm:$0xf]
  %v20 = vld [vmem:[%s0 + $0x14] sm:$0xf]
  %v21 = vld [vmem:[%s0 + $0x18] sm:$0xf]
  %v22 = vld [vmem:[%s0 + $0x1c] sm:$0xf]
  %v23 = vld [vmem:[%s0 + $0x20] sm:$0xf]
  %v24 = vld [vmem:[%s0 + $0x24] sm:$0xf]
  %v25 = vld [vmem:[%s0 + $0x28] sm:$0xf]
  %v26 = vld [vmem:[%s0 + $0x2c] sm:$0xf]
  %v27 = vld [vmem:[%s0 + $0x30] sm:$0xf]
  %v28 = vld [vmem:[%s0 + $0x34] sm:$0xf]
  %v29 = vld [vmem:[%s0 + $0x38] sm:$0xf]
  %v30 = vld [vmem:[%s0 + $0x3c] sm:$0xf]
  %v31 = vld [vmem:[%s0 + $0x40] sm:$0xf]
  %v32 = vld [vmem:[%s0 + $0x44] sm:$0xf]
  %v33 = vld [vmem:[%s0 + $0x48] sm:$0xf]
  %v34 = vld [vmem:[%s0 + $0x4c] sm:$0xf]
  %v35 = vld [vmem:[%s0 + $0x50] sm:$0xf]
  %v36 = vld [vmem:[%s0 + $0x54] sm:$0xf]
  %v37 = vld [vmem:[%s0 + $0x58] sm:$0xf]
  %v38 = vld [vmem:[%s0 + $0x5c] sm:$0xf]
  %v39 = vld [vmem:[%s0 + $0x60] sm:$0xf]
  %v40 = vld [vmem:[%s0 + $0x64] sm:$0xf]
  %v41 = vld [vmem:[%s0 + $0x68] sm:$0xf]
  %v42 = vld [vmem:[%s0 + $0x6c] sm:$0xf]
  %v43 = vld [vmem:[%s0 + $0x70] sm:$0xf]
  %v44 = vld [vmem:[%s0 + $0x74] sm:$0xf]
  %v45 = vld [vmem:[%s0 + $0x78] sm:$0xf]
  %v46 = vld [vmem:[%s0 + $0x7c] sm:$0xf]
  %v47 = vld [vmem:[%s0 + $0x80] sm:$0xf]
  %v48 = vld [vmem:[%s0 + $0x84] sm:$0xf]
  %v49 = vld [vmem:[%s0 + $0x88] sm:$0xf]
  %v50 = vld [vmem:[%s0 + $0x8c] sm:$0xf]
  %v51 = vld [vmem:[%s0 + $0x90] sm:$0xf]
  %v52 = vld [vmem:[%s0 + $0x94] sm:$0xf]
  %v53 = vld [vmem:[%s0 + $0x98] sm:$0xf]
  %v54 = vld [vmem:[%s0 + $0x9c] sm:$0xf]
  %v55 = vld [vmem:[%s0 + $0xa0] sm:$0xf]
  %v56 = vld [vmem:[%s0 + $0xa4] sm:$0xf]
  %v57 = vld [vmem:[%s0 + $0xa8] sm:$0xf]
  %v58 = vld [vmem:[%s0 + $0xac] sm:$0xf]
  %v59 = vld [vmem:[%s0 + $0xb0] sm:$0xf]
  %v60 = vld [vmem:[%s0 + $0xb4] sm:$0xf]
  %v61 = vld [vmem:[%s0 + $0xb8] sm:$0xf]
  %v62 = vld [vmem:[%s0 + $0xbc] sm:$0xf]
  %v63 = vld [vmem:[%s0 + $0xc0] sm:$0xf]
  %v64 = vld [vmem:[%s1] sm:$0xf]
  %v65 = vld [vmem:[%s1 + $0x4] sm:$0xf]
  %v115 = vunpack.c.l.b16 %v15
  %v116 = vunpack.c.l.b16 %v16
  %v117 = vunpack.c.l.b16 %v17
  %v118 = vunpack.c.l.b16 %v18
  %v119 = vunpack.c.l.b16 %v19
  %v120 = vunpack.c.l.b16 %v20
  %v121 = vunpack.c.l.b16 %v21
  %v122 = vunpack.c.l.b16 %v22
  %v123 = vunpack.c.l.b16 %v23
  %v124 = vunpack.c.l.b16 %v24
  %v125 = vunpack.c.l.b16 %v25
  %v126 = vunpack.c.l.b16 %v26
  %v127 = vunpack.c.l.b16 %v27
  %v128 = vunpack.c.l.b16 %v28
  %v129 = vunpack.c.l.b16 %v29
  %v130 = vunpack.c.l.b16 %v30
  %v131 = vunpack.c.l.b16 %v31
  %v132 = vunpack.c.l.b16 %v32
  %v133 = vunpack.c.l.b16 %v33
  %v134 = vunpack.c.l.b16 %v34
  %v135 = vunpack.c.l.b16 %v35
  %v136 = vunpack.c.l.b16 %v36
  %v137 = vunpack.c.l.b16 %v37
  %v138 = vunpack.c.l.b16 %v38
  %v139 = vunpack.c.l.b16 %v39
  %v140 = vunpack.c.l.b16 %v40
  %v141 = vunpack.c.l.b16 %v41
  %v142 = vunpack.c.l.b16 %v42
  %v143 = vunpack.c.l.b16 %v43
  %v144 = vunpack.c.l.b16 %v44
  %v145 = vunpack.c.l.b16 %v45
  %v146 = vunpack.c.l.b16 %v46
  %v147 = vunpack.c.l.b16 %v47
  %v148 = vunpack.c.l.b16 %v48
  %v149 = vunpack.c.l.b16 %v49
  %v150 = vunpack.c.l.b16 %v50
  %v151 = vunpack.c.l.b16 %v51
  %v152 = vunpack.c.l.b16 %v52
  %v153 = vunpack.c.l.b16 %v53
  %v154 = vunpack.c.l.b16 %v54
  %v155 = vunpack.c.l.b16 %v55
  %v156 = vunpack.c.l.b16 %v56
  %v157 = vunpack.c.l.b16 %v57
  %v158 = vunpack.c.l.b16 %v58
  %v159 = vunpack.c.l.b16 %v59
  %v160 = vunpack.c.l.b16 %v60
  %v161 = vunpack.c.l.b16 %v61
  %v162 = vunpack.c.l.b16 %v62
  %v163 = vunpack.c.l.b16 %v63
  %v164 = vpack.c.b16 %v116, %v115
  %v165 = vpack.c.b16 %v118, %v117
  %v166 = vpack.c.b16 %v120, %v119
  %v167 = vpack.c.b16 %v122, %v121
  %v168 = vpack.c.b16 %v124, %v123
  %v169 = vpack.c.b16 %v126, %v125
  %v170 = vpack.c.b16 %v128, %v127
  %v171 = vpack.c.b16 %v130, %v129
  %v172 = vpack.c.b16 %v132, %v131
  %v173 = vpack.c.b16 %v134, %v133
  %v174 = vpack.c.b16 %v136, %v135
  %v175 = vpack.c.b16 %v138, %v137
  %v176 = vpack.c.b16 %v140, %v139
  %v177 = vpack.c.b16 %v142, %v141
  %v178 = vpack.c.b16 %v144, %v143
  %v179 = vpack.c.b16 %v146, %v145
  %v180 = vpack.c.b16 %v148, %v147
  %v181 = vpack.c.b16 %v150, %v149
  %v182 = vpack.c.b16 %v152, %v151
  %v183 = vpack.c.b16 %v154, %v153
  %v184 = vpack.c.b16 %v156, %v155
  %v185 = vpack.c.b16 %v158, %v157
  %v186 = vpack.c.b16 %v160, %v159
  %v187 = vpack.c.b16 %v162, %v161
  %v188 = vpack.c.b16 %v163, %v163
  %v191 = vunpack.c.l.b16 %v64
  %v192 = vunpack.c.l.b16 %v65
  %v193 = vpack.c.b16 %v192, %v191
  %vm195 = vcmask 130048
  %v197 = vsel %vm195, %v164, 0
  %v200 = vsel %vm195, %v165, 0
  %v203 = vsel %vm195, %v166, 0
  %v206 = vsel %vm195, %v167, 0
  %v209 = vsel %vm195, %v168, 0
  %v212 = vsel %vm195, %v169, 0
  %v215 = vsel %vm195, %v170, 0
  %v218 = vsel %vm195, %v171, 0
  %v221 = vsel %vm195, %v172, 0
  %v224 = vsel %vm195, %v173, 0
  %v227 = vsel %vm195, %v174, 0
  %v230 = vsel %vm195, %v175, 0
  %v233 = vsel %vm195, %v176, 0
  %v236 = vsel %vm195, %v177, 0
  %v239 = vsel %vm195, %v178, 0
  %v242 = vsel %vm195, %v179, 0
  %v245 = vsel %vm195, %v180, 0
  %v248 = vsel %vm195, %v181, 0
  %v251 = vsel %vm195, %v182, 0
  %v254 = vsel %vm195, %v183, 0
  %v257 = vsel %vm195, %v184, 0
  %v260 = vsel %vm195, %v185, 0
  %v263 = vsel %vm195, %v186, 0
  %v266 = vsel %vm195, %v187, 0
  %v269 = vsel %vm195, %v188, 0
  %271 = vmatprep.subr.bf16.mxu0 0
  %272 = vmatpush1.bf16.msra.mxu0 %v193
  %273 = vmatprep.subr.bf16.mxu0 0
  %274 = vmatpush1.bf16.msra.mxu0 0
  %275 = vmatprep.subr.bf16.mxu0 0
  %276 = vmatpush1.bf16.msra.mxu0 0
  %277 = vmatprep.subr.bf16.mxu0 0
  %278 = vmatpush1.bf16.msra.mxu0 0
  %279 = vmatprep.subr.bf16.mxu0 0
  %280 = vmatpush1.bf16.msra.mxu0 0
  %281 = vmatprep.subr.bf16.mxu0 0
  %282 = vmatpush1.bf16.msra.mxu0 0
  %283 = vmatprep.subr.bf16.mxu0 0
  %284 = vmatpush1.bf16.msra.mxu0 0
  %285 = vmatprep.subr.bf16.mxu0 0
  %286 = vmatpush1.bf16.msra.mxu0 0
  %287 = vmatprep.subr.bf16.mxu0 0
  %288 = vmatpush1.bf16.msra.mxu0 0
  %289 = vmatprep.subr.bf16.mxu0 0
  %290 = vmatpush1.bf16.msra.mxu0 0
  %291 = vmatprep.subr.bf16.mxu0 0
  %292 = vmatpush1.bf16.msra.mxu0 0
  %293 = vmatprep.subr.bf16.mxu0 0
  %294 = vmatpush1.bf16.msra.mxu0 0
  %295 = vmatprep.subr.bf16.mxu0 0
  %296 = vmatpush1.bf16.msra.mxu0 0
  %297 = vmatprep.subr.bf16.mxu0 0
  %298 = vmatpush1.bf16.msra.mxu0 0
  %299 = vmatprep.subr.bf16.mxu0 0
  %300 = vmatpush1.bf16.msra.mxu0 0
  %301 = vmatprep.subr.bf16.mxu0 0
  %302 = vmatpush1.bf16.msra.mxu0 0
  %303 = vmatprep.mubr.bf16.mxu0 0
  %304 = vmatmul.mubr.bf16.gmra.mrb[0].mxu0 %v197
  %v305 = vpop.f32.mrb[0].mxu0
  %v306 = vadd.f32 0.0, %v305
  %v307 = vpop.f32.mrb[0].mxu0
  %v308 = vpop.f32.mrb[0].mxu0
  %v309 = vadd.f32 0.0, %v308
  %v310 = vpop.f32.mrb[0].mxu0
  %311 = vmatprep.mubr.bf16.mxu0 0
  %312 = vmatmul.mubr.bf16.gmra.mrb[0].mxu0 %v200
  %v313 = vpop.f32.mrb[0].mxu0
  %v314 = vadd.f32 0.0, %v313
  %v315 = vpop.f32.mrb[0].mxu0
  %v316 = vpop.f32.mrb[0].mxu0
  %v317 = vadd.f32 0.0, %v316
  %v318 = vpop.f32.mrb[0].mxu0
  %319 = vmatprep.mubr.bf16.mxu0 0
  %320 = vmatmul.mubr.bf16.gmra.mrb[0].mxu0 %v203
  %v321 = vpop.f32.mrb[0].mxu0
  %v322 = vadd.f32 0.0, %v321
  %v323 = vpop.f32.mrb[0].mxu0
  %v324 = vpop.f32.mrb[0].mxu0
  %v325 = vadd.f32 0.0, %v324
  %v326 = vpop.f32.mrb[0].mxu0
  %327 = vmatprep.mubr.bf16.mxu0 0
  %328 = vmatmul.mubr.bf16.gmra.mrb[0].mxu0 %v206
  %v329 = vpop.f32.mrb[0].mxu0
  %v330 = vadd.f32 0.0, %v329
  %v331 = vpop.f32.mrb[0].mxu0
  %v332 = vpop.f32.mrb[0].mxu0
  %v333 = vadd.f32 0.0, %v332
  %v334 = vpop.f32.mrb[0].mxu0
  %335 = vmatprep.mubr.bf16.mxu0 0
  %336 = vmatmul.mubr.bf16.gmra.mrb[0].mxu0 %v209
  %v337 = vpop.f32.mrb[0].mxu0
  %v338 = vadd.f32 0.0, %v337
  %v339 = vpop.f32.mrb[0].mxu0
  %v340 = vpop.f32.mrb[0].mxu0
  %v341 = vadd.f32 0.0, %v340
  %v342 = vpop.f32.mrb[0].mxu0
  %343 = vmatprep.mubr.bf16.mxu0 0
  %344 = vmatmul.mubr.bf16.gmra.mrb[0].mxu0 %v212
  %v345 = vpop.f32.mrb[0].mxu0
  %v346 = vadd.f32 0.0, %v345
  %v347 = vpop.f32.mrb[0].mxu0
  %v348 = vpop.f32.mrb[0].mxu0
  %v349 = vadd.f32 0.0, %v348
  %v350 = vpop.f32.mrb[0].mxu0
  %351 = vmatprep.mubr.bf16.mxu0 0
  %352 = vmatmul.mubr.bf16.gmra.mrb[0].mxu0 %v215
  %v353 = vpop.f32.mrb[0].mxu0
  %v354 = vadd.f32 0.0, %v353
  %v355 = vpop.f32.mrb[0].mxu0
  %v356 = vpop.f32.mrb[0].mxu0
  %v357 = vadd.f32 0.0, %v356
  %v358 = vpop.f32.mrb[0].mxu0
  %359 = vmatprep.mubr.bf16.mxu0 0
  %360 = vmatmul.mubr.bf16.gmra.mrb[0].mxu0 %v218
  %v361 = vpop.f32.mrb[0].mxu0
  %v362 = vadd.f32 0.0, %v361
  %v363 = vpop.f32.mrb[0].mxu0
  %v364 = vpop.f32.mrb[0].mxu0
  %v365 = vadd.f32 0.0, %v364
  %v366 = vpop.f32.mrb[0].mxu0
  %367 = vmatprep.mubr.bf16.mxu0 0
  %368 = vmatmul.mubr.bf16.gmra.mrb[0].mxu0 %v221
  %v369 = vpop.f32.mrb[0].mxu0
  %v370 = vadd.f32 0.0, %v369
  %v371 = vpop.f32.mrb[0].mxu0
  %v372 = vpop.f32.mrb[0].mxu0
  %v373 = vadd.f32 0.0, %v372
  %v374 = vpop.f32.mrb[0].mxu0
  %375 = vmatprep.mubr.bf16.mxu0 0
  %376 = vmatmul.mubr.bf16.gmra.mrb[0].mxu0 %v224
  %v377 = vpop.f32.mrb[0].mxu0
  %v378 = vadd.f32 0.0, %v377
  %v379 = vpop.f32.mrb[0].mxu0
  %v380 = vpop.f32.mrb[0].mxu0
  %v381 = vadd.f32 0.0, %v380
  %v382 = vpop.f32.mrb[0].mxu0
  %383 = vmatprep.mubr.bf16.mxu0 0
  %384 = vmatmul.mubr.bf16.gmra.mrb[0].mxu0 %v227
  %v385 = vpop.f32.mrb[0].mxu0
  %v386 = vadd.f32 0.0, %v385
  %v387 = vpop.f32.mrb[0].mxu0
  %v388 = vpop.f32.mrb[0].mxu0
  %v389 = vadd.f32 0.0, %v388
  %v390 = vpop.f32.mrb[0].mxu0
  %391 = vmatprep.mubr.bf16.mxu0 0
  %392 = vmatmul.mubr.bf16.gmra.mrb[0].mxu0 %v230
  %v393 = vpop.f32.mrb[0].mxu0
  %v394 = vadd.f32 0.0, %v393
  %v395 = vpop.f32.mrb[0].mxu0
  %v396 = vpop.f32.mrb[0].mxu0
  %v397 = vadd.f32 0.0, %v396
  %v398 = vpop.f32.mrb[0].mxu0
  %399 = vmatprep.mubr.bf16.mxu0 0
  %400 = vmatmul.mubr.bf16.gmra.mrb[0].mxu0 %v233
  %v401 = vpop.f32.mrb[0].mxu0
  %v402 = vadd.f32 0.0, %v401
  %v403 = vpop.f32.mrb[0].mxu0
  %v404 = vpop.f32.mrb[0].mxu0
  %v405 = vadd.f32 0.0, %v404
  %v406 = vpop.f32.mrb[0].mxu0
  %407 = vmatprep.mubr.bf16.mxu0 0
  %408 = vmatmul.mubr.bf16.gmra.mrb[0].mxu0 %v236
  %v409 = vpop.f32.mrb[0].mxu0
  %v410 = vadd.f32 0.0, %v409
  %v411 = vpop.f32.mrb[0].mxu0
  %v412 = vpop.f32.mrb[0].mxu0
  %v413 = vadd.f32 0.0, %v412
  %v414 = vpop.f32.mrb[0].mxu0
  %415 = vmatprep.mubr.bf16.mxu0 0
  %416 = vmatmul.mubr.bf16.gmra.mrb[0].mxu0 %v239
  %v417 = vpop.f32.mrb[0].mxu0
  %v418 = vadd.f32 0.0, %v417
  %v419 = vpop.f32.mrb[0].mxu0
  %v420 = vpop.f32.mrb[0].mxu0
  %v421 = vadd.f32 0.0, %v420
  %v422 = vpop.f32.mrb[0].mxu0
  %423 = vmatprep.mubr.bf16.mxu0 0
  %424 = vmatmul.mubr.bf16.gmra.mrb[0].mxu0 %v242
  %v425 = vpop.f32.mrb[0].mxu0
  %v426 = vadd.f32 0.0, %v425
  %v427 = vpop.f32.mrb[0].mxu0
  %v428 = vpop.f32.mrb[0].mxu0
  %v429 = vadd.f32 0.0, %v428
  %v430 = vpop.f32.mrb[0].mxu0
  %431 = vmatprep.mubr.bf16.mxu0 0
  %432 = vmatmul.mubr.bf16.gmra.mrb[0].mxu0 %v245
  %v433 = vpop.f32.mrb[0].mxu0
  %v434 = vadd.f32 0.0, %v433
  %v435 = vpop.f32.mrb[0].mxu0
  %v436 = vpop.f32.mrb[0].mxu0
  %v437 = vadd.f32 0.0, %v436
  %v438 = vpop.f32.mrb[0].mxu0
  %439 = vmatprep.mubr.bf16.mxu0 0
  %440 = vmatmul.mubr.bf16.gmra.mrb[0].mxu0 %v248
  %v441 = vpop.f32.mrb[0].mxu0
  %v442 = vadd.f32 0.0, %v441
  %v443 = vpop.f32.mrb[0].mxu0
  %v444 = vpop.f32.mrb[0].mxu0
  %v445 = vadd.f32 0.0, %v444
  %v446 = vpop.f32.mrb[0].mxu0
  %447 = vmatprep.mubr.bf16.mxu0 0
  %448 = vmatmul.mubr.bf16.gmra.mrb[0].mxu0 %v251
  %v449 = vpop.f32.mrb[0].mxu0
  %v450 = vadd.f32 0.0, %v449
  %v451 = vpop.f32.mrb[0].mxu0
  %v452 = vpop.f32.mrb[0].mxu0
  %v453 = vadd.f32 0.0, %v452
  %v454 = vpop.f32.mrb[0].mxu0
  %455 = vmatprep.mubr.bf16.mxu0 0
  %456 = vmatmul.mubr.bf16.gmra.mrb[0].mxu0 %v254
  %v457 = vpop.f32.mrb[0].mxu0
  %v458 = vadd.f32 0.0, %v457
  %v459 = vpop.f32.mrb[0].mxu0
  %v460 = vpop.f32.mrb[0].mxu0
  %v461 = vadd.f32 0.0, %v460
  %v462 = vpop.f32.mrb[0].mxu0
  %463 = vmatprep.mubr.bf16.mxu0 0
  %464 = vmatmul.mubr.bf16.gmra.mrb[0].mxu0 %v257
  %v465 = vpop.f32.mrb[0].mxu0
  %v466 = vadd.f32 0.0, %v465
  %v467 = vpop.f32.mrb[0].mxu0
  %v468 = vpop.f32.mrb[0].mxu0
  %v469 = vadd.f32 0.0, %v468
  %v470 = vpop.f32.mrb[0].mxu0
  %471 = vmatprep.mubr.bf16.mxu0 0
  %472 = vmatmul.mubr.bf16.gmra.mrb[0].mxu0 %v260
  %v473 = vpop.f32.mrb[0].mxu0
  %v474 = vadd.f32 0.0, %v473
  %v475 = vpop.f32.mrb[0].mxu0
  %v476 = vpop.f32.mrb[0].mxu0
  %v477 = vadd.f32 0.0, %v476
  %v478 = vpop.f32.mrb[0].mxu0
  %479 = vmatprep.mubr.bf16.mxu0 0
  %480 = vmatmul.mubr.bf16.gmra.mrb[0].mxu0 %v263
  %v481 = vpop.f32.mrb[0].mxu0
  %v482 = vadd.f32 0.0, %v481
  %v483 = vpop.f32.mrb[0].mxu0
  %v484 = vpop.f32.mrb[0].mxu0
  %v485 = vadd.f32 0.0, %v484
  %v486 = vpop.f32.mrb[0].mxu0
  %487 = vmatprep.mubr.bf16.mxu0 0
  %488 = vmatmul.mubr.bf16.gmra.mrb[0].mxu0 %v266
  %v489 = vpop.f32.mrb[0].mxu0
  %v490 = vadd.f32 0.0, %v489
  %v491 = vpop.f32.mrb[0].mxu0
  %v492 = vpop.f32.mrb[0].mxu0
  %v493 = vadd.f32 0.0, %v492
  %v494 = vpop.f32.mrb[0].mxu0
  %495 = vmatprep.mubr.bf16.mxu0 0
  %496 = vmatmul.mubr.bf16.gmra.mrb[0].mxu0 %v269
  %v497 = vpop.f32.mrb[0].mxu0
  %v498 = vadd.f32 0.0, %v497
  %v499 = vpop.f32.mrb[0].mxu0
  %v500 = vpop.f32.mrb[0].mxu0
  %v501 = vpop.f32.mrb[0].mxu0
  %502 = vdwg.mxu0
  %s503 = scalar_lea.vmem %s1, 8
  %v504 = vld [vmem:[%s503] sm:$0xf]
  %v505 = vld [vmem:[%s503 + $0x4] sm:$0xf]
  %v508 = vunpack.c.l.b16 %v504
  %v509 = vunpack.c.l.b16 %v505
  %v510 = vpack.c.b16 %v509, %v508
  %512 = vmatprep.subr.bf16.mxu0 0
  %513 = vmatpush1.bf16.msra.mxu0 %v510
  %514 = vmatprep.subr.bf16.mxu0 0
  %515 = vmatpush1.bf16.msra.mxu0 0
  %516 = vmatprep.subr.bf16.mxu0 0
  %517 = vmatpush1.bf16.msra.mxu0 0
  %518 = vmatprep.subr.bf16.mxu0 0
  %519 = vmatpush1.bf16.msra.mxu0 0
  %520 = vmatprep.subr.bf16.mxu0 0
  %521 = vmatpush1.bf16.msra.mxu0 0
  %522 = vmatprep.subr.bf16.mxu0 0
  %523 = vmatpush1.bf16.msra.mxu0 0
  %524 = vmatprep.subr.bf16.mxu0 0
  %525 = vmatpush1.bf16.msra.mxu0 0
  %526 = vmatprep.subr.bf16.mxu0 0
  %527 = vmatpush1.bf16.msra.mxu0 0
  %528 = vmatprep.subr.bf16.mxu0 0
  %529 = vmatpush1.bf16.msra.mxu0 0
  %530 = vmatprep.subr.bf16.mxu0 0
  %531 = vmatpush1.bf16.msra.mxu0 0
  %532 = vmatprep.subr.bf16.mxu0 0
  %533 = vmatpush1.bf16.msra.mxu0 0
  %534 = vmatprep.subr.bf16.mxu0 0
  %535 = vmatpush1.bf16.msra.mxu0 0
  %536 = vmatprep.subr.bf16.mxu0 0
  %537 = vmatpush1.bf16.msra.mxu0 0
  %538 = vmatprep.subr.bf16.mxu0 0
  %539 = vmatpush1.bf16.msra.mxu0 0
  %540 = vmatprep.subr.bf16.mxu0 0
  %541 = vmatpush1.bf16.msra.mxu0 0
  %542 = vmatprep.subr.bf16.mxu0 0
  %543 = vmatpush1.bf16.msra.mxu0 0
  %544 = vmatprep.mubr.bf16.mxu0 0
  %545 = vmatmul.mubr.bf16.gmra.mrb[0].mxu0 %v197
  %v546 = vpop.f32.mrb[0].mxu0
  %v547 = vadd.f32 0.0, %v546
  %v548 = vpop.f32.mrb[0].mxu0
  %v549 = vpop.f32.mrb[0].mxu0
  %v550 = vadd.f32 0.0, %v549
  %v551 = vpop.f32.mrb[0].mxu0
  %552 = vmatprep.mubr.bf16.mxu0 0
  %553 = vmatmul.mubr.bf16.gmra.mrb[0].mxu0 %v200
  %v554 = vpop.f32.mrb[0].mxu0
  %v555 = vadd.f32 0.0, %v554
  %v556 = vpop.f32.mrb[0].mxu0
  %v557 = vpop.f32.mrb[0].mxu0
  %v558 = vadd.f32 0.0, %v557
  %v559 = vpop.f32.mrb[0].mxu0
  %560 = vmatprep.mubr.bf16.mxu0 0
  %561 = vmatmul.mubr.bf16.gmra.mrb[0].mxu0 %v203
  %v562 = vpop.f32.mrb[0].mxu0
  %v563 = vadd.f32 0.0, %v562
  %v564 = vpop.f32.mrb[0].mxu0
  %v565 = vpop.f32.mrb[0].mxu0
  %v566 = vadd.f32 0.0, %v565
  %v567 = vpop.f32.mrb[0].mxu0
  %568 = vmatprep.mubr.bf16.mxu0 0
  %569 = vmatmul.mubr.bf16.gmra.mrb[0].mxu0 %v206
  %v570 = vpop.f32.mrb[0].mxu0
  %v571 = vadd.f32 0.0, %v570
  %v572 = vpop.f32.mrb[0].mxu0
  %v573 = vpop.f32.mrb[0].mxu0
  %v574 = vadd.f32 0.0, %v573
  %v575 = vpop.f32.mrb[0].mxu0
  %576 = vmatprep.mubr.bf16.mxu0 0
  %577 = vmatmul.mubr.bf16.gmra.mrb[0].mxu0 %v209
  %v578 = vpop.f32.mrb[0].mxu0
  %v579 = vadd.f32 0.0, %v578
  %v580 = vpop.f32.mrb[0].mxu0
  %v581 = vpop.f32.mrb[0].mxu0
  %v582 = vadd.f32 0.0, %v581
  %v583 = vpop.f32.mrb[0].mxu0
  %584 = vmatprep.mubr.bf16.mxu0 0
  %585 = vmatmul.mubr.bf16.gmra.mrb[0].mxu0 %v212
  %v586 = vpop.f32.mrb[0].mxu0
  %v587 = vadd.f32 0.0, %v586
  %v588 = vpop.f32.mrb[0].mxu0
  %v589 = vpop.f32.mrb[0].mxu0
  %v590 = vadd.f32 0.0, %v589
  %v591 = vpop.f32.mrb[0].mxu0
  %592 = vmatprep.mubr.bf16.mxu0 0
  %593 = vmatmul.mubr.bf16.gmra.mrb[0].mxu0 %v215
  %v594 = vpop.f32.mrb[0].mxu0
  %v595 = vadd.f32 0.0, %v594
  %v596 = vpop.f32.mrb[0].mxu0
  %v597 = vpop.f32.mrb[0].mxu0
  %v598 = vadd.f32 0.0, %v597
  %v599 = vpop.f32.mrb[0].mxu0
  %600 = vmatprep.mubr.bf16.mxu0 0
  %601 = vmatmul.mubr.bf16.gmra.mrb[0].mxu0 %v218
  %v602 = vpop.f32.mrb[0].mxu0
  %v603 = vadd.f32 0.0, %v602
  %v604 = vpop.f32.mrb[0].mxu0
  %v605 = vpop.f32.mrb[0].mxu0
  %v606 = vadd.f32 0.0, %v605
  %v607 = vpop.f32.mrb[0].mxu0
  %608 = vmatprep.mubr.bf16.mxu0 0
  %609 = vmatmul.mubr.bf16.gmra.mrb[0].mxu0 %v221
  %v610 = vpop.f32.mrb[0].mxu0
  %v611 = vadd.f32 0.0, %v610
  %v612 = vpop.f32.mrb[0].mxu0
  %v613 = vpop.f32.mrb[0].mxu0
  %v614 = vadd.f32 0.0, %v613
  %v615 = vpop.f32.mrb[0].mxu0
  %616 = vmatprep.mubr.bf16.mxu0 0
  %617 = vmatmul.mubr.bf16.gmra.mrb[0].mxu0 %v224
  %v618 = vpop.f32.mrb[0].mxu0
  %v619 = vadd.f32 0.0, %v618
  %v620 = vpop.f32.mrb[0].mxu0
  %v621 = vpop.f32.mrb[0].mxu0
  %v622 = vadd.f32 0.0, %v621
  %v623 = vpop.f32.mrb[0].mxu0
  %624 = vmatprep.mubr.bf16.mxu0 0
  %625 = vmatmul.mubr.bf16.gmra.mrb[0].mxu0 %v227
  %v626 = vpop.f32.mrb[0].mxu0
  %v627 = vadd.f32 0.0, %v626
  %v628 = vpop.f32.mrb[0].mxu0
  %v629 = vpop.f32.mrb[0].mxu0
  %v630 = vadd.f32 0.0, %v629
  %v631 = vpop.f32.mrb[0].mxu0
  %632 = vmatprep.mubr.bf16.mxu0 0
  %633 = vmatmul.mubr.bf16.gmra.mrb[0].mxu0 %v230
  %v634 = vpop.f32.mrb[0].mxu0
  %v635 = vadd.f32 0.0, %v634
  %v636 = vpop.f32.mrb[0].mxu0
  %v637 = vpop.f32.mrb[0].mxu0
  %v638 = vadd.f32 0.0, %v637
  %v639 = vpop.f32.mrb[0].mxu0
  %640 = vmatprep.mubr.bf16.mxu0 0
  %641 = vmatmul.mubr.bf16.gmra.mrb[0].mxu0 %v233
  %v642 = vpop.f32.mrb[0].mxu0
  %v643 = vadd.f32 0.0, %v642
  %v644 = vpop.f32.mrb[0].mxu0
  %v645 = vpop.f32.mrb[0].mxu0
  %v646 = vadd.f32 0.0, %v645
  %v647 = vpop.f32.mrb[0].mxu0
  %648 = vmatprep.mubr.bf16.mxu0 0
  %649 = vmatmul.mubr.bf16.gmra.mrb[0].mxu0 %v236
  %v650 = vpop.f32.mrb[0].mxu0
  %v651 = vadd.f32 0.0, %v650
  %v652 = vpop.f32.mrb[0].mxu0
  %v653 = vpop.f32.mrb[0].mxu0
  %v654 = vadd.f32 0.0, %v653
  %v655 = vpop.f32.mrb[0].mxu0
  %656 = vmatprep.mubr.bf16.mxu0 0
  %657 = vmatmul.mubr.bf16.gmra.mrb[0].mxu0 %v239
  %v658 = vpop.f32.mrb[0].mxu0
  %v659 = vadd.f32 0.0, %v658
  %v660 = vpop.f32.mrb[0].mxu0
  %v661 = vpop.f32.mrb[0].mxu0
  %v662 = vadd.f32 0.0, %v661
  %v663 = vpop.f32.mrb[0].mxu0
  %664 = vmatprep.mubr.bf16.mxu0 0
  %665 = vmatmul.mubr.bf16.gmra.mrb[0].mxu0 %v242
  %v666 = vpop.f32.mrb[0].mxu0
  %v667 = vadd.f32 0.0, %v666
  %v668 = vpop.f32.mrb[0].mxu0
  %v669 = vpop.f32.mrb[0].mxu0
  %v670 = vadd.f32 0.0, %v669
  %v671 = vpop.f32.mrb[0].mxu0
  %672 = vmatprep.mubr.bf16.mxu0 0
  %673 = vmatmul.mubr.bf16.gmra.mrb[0].mxu0 %v245
  %v674 = vpop.f32.mrb[0].mxu0
  %v675 = vadd.f32 0.0, %v674
  %v676 = vpop.f32.mrb[0].mxu0
  %v677 = vpop.f32.mrb[0].mxu0
  %v678 = vadd.f32 0.0, %v677
  %v679 = vpop.f32.mrb[0].mxu0
  %680 = vmatprep.mubr.bf16.mxu0 0
  %681 = vmatmul.mubr.bf16.gmra.mrb[0].mxu0 %v248
  %v682 = vpop.f32.mrb[0].mxu0
  %v683 = vadd.f32 0.0, %v682
  %v684 = vpop.f32.mrb[0].mxu0
  %v685 = vpop.f32.mrb[0].mxu0
  %v686 = vadd.f32 0.0, %v685
  %v687 = vpop.f32.mrb[0].mxu0
  %688 = vmatprep.mubr.bf16.mxu0 0
  %689 = vmatmul.mubr.bf16.gmra.mrb[0].mxu0 %v251
  %v690 = vpop.f32.mrb[0].mxu0
  %v691 = vadd.f32 0.0, %v690
  %v692 = vpop.f32.mrb[0].mxu0
  %v693 = vpop.f32.mrb[0].mxu0
  %v694 = vadd.f32 0.0, %v693
  %v695 = vpop.f32.mrb[0].mxu0
  %696 = vmatprep.mubr.bf16.mxu0 0
  %697 = vmatmul.mubr.bf16.gmra.mrb[0].mxu0 %v254
  %v698 = vpop.f32.mrb[0].mxu0
  %v699 = vadd.f32 0.0, %v698
  %v700 = vpop.f32.mrb[0].mxu0
  %v701 = vpop.f32.mrb[0].mxu0
  %v702 = vadd.f32 0.0, %v701
  %v703 = vpop.f32.mrb[0].mxu0
  %704 = vmatprep.mubr.bf16.mxu0 0
  %705 = vmatmul.mubr.bf16.gmra.mrb[0].mxu0 %v257
  %v706 = vpop.f32.mrb[0].mxu0
  %v707 = vadd.f32 0.0, %v706
  %v708 = vpop.f32.mrb[0].mxu0
  %v709 = vpop.f32.mrb[0].mxu0
  %v710 = vadd.f32 0.0, %v709
  %v711 = vpop.f32.mrb[0].mxu0
  %712 = vmatprep.mubr.bf16.mxu0 0
  %713 = vmatmul.mubr.bf16.gmra.mrb[0].mxu0 %v260
  %v714 = vpop.f32.mrb[0].mxu0
  %v715 = vadd.f32 0.0, %v714
  %v716 = vpop.f32.mrb[0].mxu0
  %v717 = vpop.f32.mrb[0].mxu0
  %v718 = vadd.f32 0.0, %v717
  %v719 = vpop.f32.mrb[0].mxu0
  %720 = vmatprep.mubr.bf16.mxu0 0
  %721 = vmatmul.mubr.bf16.gmra.mrb[0].mxu0 %v263
  %v722 = vpop.f32.mrb[0].mxu0
  %v723 = vadd.f32 0.0, %v722
  %v724 = vpop.f32.mrb[0].mxu0
  %v725 = vpop.f32.mrb[0].mxu0
  %v726 = vadd.f32 0.0, %v725
  %v727 = vpop.f32.mrb[0].mxu0
  %728 = vmatprep.mubr.bf16.mxu0 0
  %729 = vmatmul.mubr.bf16.gmra.mrb[0].mxu0 %v266
  %v730 = vpop.f32.mrb[0].mxu0
  %v731 = vadd.f32 0.0, %v730
  %v732 = vpop.f32.mrb[0].mxu0
  %v733 = vpop.f32.mrb[0].mxu0
  %v734 = vadd.f32 0.0, %v733
  %v735 = vpop.f32.mrb[0].mxu0
  %736 = vmatprep.mubr.bf16.mxu0 0
  %737 = vmatmul.mubr.bf16.gmra.mrb[0].mxu0 %v269
  %v738 = vpop.f32.mrb[0].mxu0
  %v739 = vadd.f32 0.0, %v738
  %v740 = vpop.f32.mrb[0].mxu0
  %v741 = vpop.f32.mrb[0].mxu0
  %v742 = vpop.f32.mrb[0].mxu0
  %743 = vdwg.mxu0
  %v744 = vmax.f32 %v306, %v547
  %v745 = vmax.f32 %v309, %v550
  %v746 = vmax.f32 %v314, %v555
  %v747 = vmax.f32 %v317, %v558
  %v748 = vmax.f32 %v322, %v563
  %v749 = vmax.f32 %v325, %v566
  %v750 = vmax.f32 %v330, %v571
  %v751 = vmax.f32 %v333, %v574
  %v752 = vmax.f32 %v338, %v579
  %v753 = vmax.f32 %v341, %v582
  %v754 = vmax.f32 %v346, %v587
  %v755 = vmax.f32 %v349, %v590
  %v756 = vmax.f32 %v354, %v595
  %v757 = vmax.f32 %v357, %v598
  %v758 = vmax.f32 %v362, %v603
  %v759 = vmax.f32 %v365, %v606
  %v760 = vmax.f32 %v370, %v611
  %v761 = vmax.f32 %v373, %v614
  %v762 = vmax.f32 %v378, %v619
  %v763 = vmax.f32 %v381, %v622
  %v764 = vmax.f32 %v386, %v627
  %v765 = vmax.f32 %v389, %v630
  %v766 = vmax.f32 %v394, %v635
  %v767 = vmax.f32 %v397, %v638
  %v768 = vmax.f32 %v402, %v643
  %v769 = vmax.f32 %v405, %v646
  %v770 = vmax.f32 %v410, %v651
  %v771 = vmax.f32 %v413, %v654
  %v772 = vmax.f32 %v418, %v659
  %v773 = vmax.f32 %v421, %v662
  %v774 = vmax.f32 %v426, %v667
  %v775 = vmax.f32 %v429, %v670
  %v776 = vmax.f32 %v434, %v675
  %v777 = vmax.f32 %v437, %v678
  %v778 = vmax.f32 %v442, %v683
  %v779 = vmax.f32 %v445, %v686
  %v780 = vmax.f32 %v450, %v691
  %v781 = vmax.f32 %v453, %v694
  %v782 = vmax.f32 %v458, %v699
  %v783 = vmax.f32 %v461, %v702
  %v784 = vmax.f32 %v466, %v707
  %v785 = vmax.f32 %v469, %v710
  %v786 = vmax.f32 %v474, %v715
  %v787 = vmax.f32 %v477, %v718
  %v788 = vmax.f32 %v482, %v723
  %v789 = vmax.f32 %v485, %v726
  %v790 = vmax.f32 %v490, %v731
  %v791 = vmax.f32 %v493, %v734
  %v792 = vmax.f32 %v498, %v739
  %s793 = scalar_lea.vmem %s1, 16
  %v794 = vld [vmem:[%s793] sm:$0xf]
  %v795 = vld [vmem:[%s793 + $0x4] sm:$0xf]
  %v798 = vunpack.c.l.b16 %v794
  %v799 = vunpack.c.l.b16 %v795
  %v800 = vpack.c.b16 %v799, %v798
  %802 = vmatprep.subr.bf16.mxu0 0
  %803 = vmatpush1.bf16.msra.mxu0 %v800
  %804 = vmatprep.subr.bf16.mxu0 0
  %805 = vmatpush1.bf16.msra.mxu0 0
  %806 = vmatprep.subr.bf16.mxu0 0
  %807 = vmatpush1.bf16.msra.mxu0 0
  %808 = vmatprep.subr.bf16.mxu0 0
  %809 = vmatpush1.bf16.msra.mxu0 0
  %810 = vmatprep.subr.bf16.mxu0 0
  %811 = vmatpush1.bf16.msra.mxu0 0
  %812 = vmatprep.subr.bf16.mxu0 0
  %813 = vmatpush1.bf16.msra.mxu0 0
  %814 = vmatprep.subr.bf16.mxu0 0
  %815 = vmatpush1.bf16.msra.mxu0 0
  %816 = vmatprep.subr.bf16.mxu0 0
  %817 = vmatpush1.bf16.msra.mxu0 0
  %818 = vmatprep.subr.bf16.mxu0 0
  %819 = vmatpush1.bf16.msra.mxu0 0
  %820 = vmatprep.subr.bf16.mxu0 0
  %821 = vmatpush1.bf16.msra.mxu0 0
  %822 = vmatprep.subr.bf16.mxu0 0
  %823 = vmatpush1.bf16.msra.mxu0 0
  %824 = vmatprep.subr.bf16.mxu0 0
  %825 = vmatpush1.bf16.msra.mxu0 0
  %826 = vmatprep.subr.bf16.mxu0 0
  %827 = vmatpush1.bf16.msra.mxu0 0
  %828 = vmatprep.subr.bf16.mxu0 0
  %829 = vmatpush1.bf16.msra.mxu0 0
  %830 = vmatprep.subr.bf16.mxu0 0
  %831 = vmatpush1.bf16.msra.mxu0 0
  %832 = vmatprep.subr.bf16.mxu0 0
  %833 = vmatpush1.bf16.msra.mxu0 0
  %834 = vmatprep.mubr.bf16.mxu0 0
  %835 = vmatmul.mubr.bf16.gmra.mrb[0].mxu0 %v197
  %v836 = vpop.f32.mrb[0].mxu0
  %v837 = vadd.f32 0.0, %v836
  %v838 = vpop.f32.mrb[0].mxu0
  %v839 = vpop.f32.mrb[0].mxu0
  %v840 = vadd.f32 0.0, %v839
  %v841 = vpop.f32.mrb[0].mxu0
  %842 = vmatprep.mubr.bf16.mxu0 0
  %843 = vmatmul.mubr.bf16.gmra.mrb[0].mxu0 %v200
  %v844 = vpop.f32.mrb[0].mxu0
  %v845 = vadd.f32 0.0, %v844
  %v846 = vpop.f32.mrb[0].mxu0
  %v847 = vpop.f32.mrb[0].mxu0
  %v848 = vadd.f32 0.0, %v847
  %v849 = vpop.f32.mrb[0].mxu0
  %850 = vmatprep.mubr.bf16.mxu0 0
  %851 = vmatmul.mubr.bf16.gmra.mrb[0].mxu0 %v203
  %v852 = vpop.f32.mrb[0].mxu0
  %v853 = vadd.f32 0.0, %v852
  %v854 = vpop.f32.mrb[0].mxu0
  %v855 = vpop.f32.mrb[0].mxu0
  %v856 = vadd.f32 0.0, %v855
  %v857 = vpop.f32.mrb[0].mxu0
  %858 = vmatprep.mubr.bf16.mxu0 0
  %859 = vmatmul.mubr.bf16.gmra.mrb[0].mxu0 %v206
  %v860 = vpop.f32.mrb[0].mxu0
  %v861 = vadd.f32 0.0, %v860
  %v862 = vpop.f32.mrb[0].mxu0
  %v863 = vpop.f32.mrb[0].mxu0
  %v864 = vadd.f32 0.0, %v863
  %v865 = vpop.f32.mrb[0].mxu0
  %866 = vmatprep.mubr.bf16.mxu0 0
  %867 = vmatmul.mubr.bf16.gmra.mrb[0].mxu0 %v209
  %v868 = vpop.f32.mrb[0].mxu0
  %v869 = vadd.f32 0.0, %v868
  %v870 = vpop.f32.mrb[0].mxu0
  %v871 = vpop.f32.mrb[0].mxu0
  %v872 = vadd.f32 0.0, %v871
  %v873 = vpop.f32.mrb[0].mxu0
  %874 = vmatprep.mubr.bf16.mxu0 0
  %875 = vmatmul.mubr.bf16.gmra.mrb[0].mxu0 %v212
  %v876 = vpop.f32.mrb[0].mxu0
  %v877 = vadd.f32 0.0, %v876
  %v878 = vpop.f32.mrb[0].mxu0
  %v879 = vpop.f32.mrb[0].mxu0
  %v880 = vadd.f32 0.0, %v879
  %v881 = vpop.f32.mrb[0].mxu0
  %882 = vmatprep.mubr.bf16.mxu0 0
  %883 = vmatmul.mubr.bf16.gmra.mrb[0].mxu0 %v215
  %v884 = vpop.f32.mrb[0].mxu0
  %v885 = vadd.f32 0.0, %v884
  %v886 = vpop.f32.mrb[0].mxu0
  %v887 = vpop.f32.mrb[0].mxu0
  %v888 = vadd.f32 0.0, %v887
  %v889 = vpop.f32.mrb[0].mxu0
  %890 = vmatprep.mubr.bf16.mxu0 0
  %891 = vmatmul.mubr.bf16.gmra.mrb[0].mxu0 %v218
  %v892 = vpop.f32.mrb[0].mxu0
  %v893 = vadd.f32 0.0, %v892
  %v894 = vpop.f32.mrb[0].mxu0
  %v895 = vpop.f32.mrb[0].mxu0
  %v896 = vadd.f32 0.0, %v895
  %v897 = vpop.f32.mrb[0].mxu0
  %898 = vmatprep.mubr.bf16.mxu0 0
  %899 = vmatmul.mubr.bf16.gmra.mrb[0].mxu0 %v221
  %v900 = vpop.f32.mrb[0].mxu0
  %v901 = vadd.f32 0.0, %v900
  %v902 = vpop.f32.mrb[0].mxu0
  %v903 = vpop.f32.mrb[0].mxu0
  %v904 = vadd.f32 0.0, %v903
  %v905 = vpop.f32.mrb[0].mxu0
  %906 = vmatprep.mubr.bf16.mxu0 0
  %907 = vmatmul.mubr.bf16.gmra.mrb[0].mxu0 %v224
  %v908 = vpop.f32.mrb[0].mxu0
  %v909 = vadd.f32 0.0, %v908
  %v910 = vpop.f32.mrb[0].mxu0
  %v911 = vpop.f32.mrb[0].mxu0
  %v912 = vadd.f32 0.0, %v911
  %v913 = vpop.f32.mrb[0].mxu0
  %914 = vmatprep.mubr.bf16.mxu0 0
  %915 = vmatmul.mubr.bf16.gmra.mrb[0].mxu0 %v227
  %v916 = vpop.f32.mrb[0].mxu0
  %v917 = vadd.f32 0.0, %v916
  %v918 = vpop.f32.mrb[0].mxu0
  %v919 = vpop.f32.mrb[0].mxu0
  %v920 = vadd.f32 0.0, %v919
  %v921 = vpop.f32.mrb[0].mxu0
  %922 = vmatprep.mubr.bf16.mxu0 0
  %923 = vmatmul.mubr.bf16.gmra.mrb[0].mxu0 %v230
  %v924 = vpop.f32.mrb[0].mxu0
  %v925 = vadd.f32 0.0, %v924
  %v926 = vpop.f32.mrb[0].mxu0
  %v927 = vpop.f32.mrb[0].mxu0
  %v928 = vadd.f32 0.0, %v927
  %v929 = vpop.f32.mrb[0].mxu0
  %930 = vmatprep.mubr.bf16.mxu0 0
  %931 = vmatmul.mubr.bf16.gmra.mrb[0].mxu0 %v233
  %v932 = vpop.f32.mrb[0].mxu0
  %v933 = vadd.f32 0.0, %v932
  %v934 = vpop.f32.mrb[0].mxu0
  %v935 = vpop.f32.mrb[0].mxu0
  %v936 = vadd.f32 0.0, %v935
  %v937 = vpop.f32.mrb[0].mxu0
  %938 = vmatprep.mubr.bf16.mxu0 0
  %939 = vmatmul.mubr.bf16.gmra.mrb[0].mxu0 %v236
  %v940 = vpop.f32.mrb[0].mxu0
  %v941 = vadd.f32 0.0, %v940
  %v942 = vpop.f32.mrb[0].mxu0
  %v943 = vpop.f32.mrb[0].mxu0
  %v944 = vadd.f32 0.0, %v943
  %v945 = vpop.f32.mrb[0].mxu0
  %946 = vmatprep.mubr.bf16.mxu0 0
  %947 = vmatmul.mubr.bf16.gmra.mrb[0].mxu0 %v239
  %v948 = vpop.f32.mrb[0].mxu0
  %v949 = vadd.f32 0.0, %v948
  %v950 = vpop.f32.mrb[0].mxu0
  %v951 = vpop.f32.mrb[0].mxu0
  %v952 = vadd.f32 0.0, %v951
  %v953 = vpop.f32.mrb[0].mxu0
  %954 = vmatprep.mubr.bf16.mxu0 0
  %955 = vmatmul.mubr.bf16.gmra.mrb[0].mxu0 %v242
  %v956 = vpop.f32.mrb[0].mxu0
  %v957 = vadd.f32 0.0, %v956
  %v958 = vpop.f32.mrb[0].mxu0
  %v959 = vpop.f32.mrb[0].mxu0
  %v960 = vadd.f32 0.0, %v959
  %v961 = vpop.f32.mrb[0].mxu0
  %962 = vmatprep.mubr.bf16.mxu0 0
  %963 = vmatmul.mubr.bf16.gmra.mrb[0].mxu0 %v245
  %v964 = vpop.f32.mrb[0].mxu0
  %v965 = vadd.f32 0.0, %v964
  %v966 = vpop.f32.mrb[0].mxu0
  %v967 = vpop.f32.mrb[0].mxu0
  %v968 = vadd.f32 0.0, %v967
  %v969 = vpop.f32.mrb[0].mxu0
  %970 = vmatprep.mubr.bf16.mxu0 0
  %971 = vmatmul.mubr.bf16.gmra.mrb[0].mxu0 %v248
  %v972 = vpop.f32.mrb[0].mxu0
  %v973 = vadd.f32 0.0, %v972
  %v974 = vpop.f32.mrb[0].mxu0
  %v975 = vpop.f32.mrb[0].mxu0
  %v976 = vadd.f32 0.0, %v975
  %v977 = vpop.f32.mrb[0].mxu0
  %978 = vmatprep.mubr.bf16.mxu0 0
  %979 = vmatmul.mubr.bf16.gmra.mrb[0].mxu0 %v251
  %v980 = vpop.f32.mrb[0].mxu0
  %v981 = vadd.f32 0.0, %v980
  %v982 = vpop.f32.mrb[0].mxu0
  %v983 = vpop.f32.mrb[0].mxu0
  %v984 = vadd.f32 0.0, %v983
  %v985 = vpop.f32.mrb[0].mxu0
  %986 = vmatprep.mubr.bf16.mxu0 0
  %987 = vmatmul.mubr.bf16.gmra.mrb[0].mxu0 %v254
  %v988 = vpop.f32.mrb[0].mxu0
  %v989 = vadd.f32 0.0, %v988
  %v990 = vpop.f32.mrb[0].mxu0
  %v991 = vpop.f32.mrb[0].mxu0
  %v992 = vadd.f32 0.0, %v991
  %v993 = vpop.f32.mrb[0].mxu0
  %994 = vmatprep.mubr.bf16.mxu0 0
  %995 = vmatmul.mubr.bf16.gmra.mrb[0].mxu0 %v257
  %v996 = vpop.f32.mrb[0].mxu0
  %v997 = vadd.f32 0.0, %v996
  %v998 = vpop.f32.mrb[0].mxu0
  %v999 = vpop.f32.mrb[0].mxu0
  %v1000 = vadd.f32 0.0, %v999
  %v1001 = vpop.f32.mrb[0].mxu0
  %1002 = vmatprep.mubr.bf16.mxu0 0
  %1003 = vmatmul.mubr.bf16.gmra.mrb[0].mxu0 %v260
  %v1004 = vpop.f32.mrb[0].mxu0
  %v1005 = vadd.f32 0.0, %v1004
  %v1006 = vpop.f32.mrb[0].mxu0
  %v1007 = vpop.f32.mrb[0].mxu0
  %v1008 = vadd.f32 0.0, %v1007
  %v1009 = vpop.f32.mrb[0].mxu0
  %1010 = vmatprep.mubr.bf16.mxu0 0
  %1011 = vmatmul.mubr.bf16.gmra.mrb[0].mxu0 %v263
  %v1012 = vpop.f32.mrb[0].mxu0
  %v1013 = vadd.f32 0.0, %v1012
  %v1014 = vpop.f32.mrb[0].mxu0
  %v1015 = vpop.f32.mrb[0].mxu0
  %v1016 = vadd.f32 0.0, %v1015
  %v1017 = vpop.f32.mrb[0].mxu0
  %1018 = vmatprep.mubr.bf16.mxu0 0
  %1019 = vmatmul.mubr.bf16.gmra.mrb[0].mxu0 %v266
  %v1020 = vpop.f32.mrb[0].mxu0
  %v1021 = vadd.f32 0.0, %v1020
  %v1022 = vpop.f32.mrb[0].mxu0
  %v1023 = vpop.f32.mrb[0].mxu0
  %v1024 = vadd.f32 0.0, %v1023
  %v1025 = vpop.f32.mrb[0].mxu0
  %1026 = vmatprep.mubr.bf16.mxu0 0
  %1027 = vmatmul.mubr.bf16.gmra.mrb[0].mxu0 %v269
  %v1028 = vpop.f32.mrb[0].mxu0
  %v1029 = vadd.f32 0.0, %v1028
  %v1030 = vpop.f32.mrb[0].mxu0
  %v1031 = vpop.f32.mrb[0].mxu0
  %v1032 = vpop.f32.mrb[0].mxu0
  %1033 = vdwg.mxu0
  %v1034 = vmax.f32 %v744, %v837
  %v1035 = vmax.f32 %v745, %v840
  %v1036 = vmax.f32 %v746, %v845
  %v1037 = vmax.f32 %v747, %v848
  %v1038 = vmax.f32 %v748, %v853
  %v1039 = vmax.f32 %v749, %v856
  %v1040 = vmax.f32 %v750, %v861
  %v1041 = vmax.f32 %v751, %v864
  %v1042 = vmax.f32 %v752, %v869
  %v1043 = vmax.f32 %v753, %v872
  %v1044 = vmax.f32 %v754, %v877
  %v1045 = vmax.f32 %v755, %v880
  %v1046 = vmax.f32 %v756, %v885
  %v1047 = vmax.f32 %v757, %v888
  %v1048 = vmax.f32 %v758, %v893
  %v1049 = vmax.f32 %v759, %v896
  %v1050 = vmax.f32 %v760, %v901
  %v1051 = vmax.f32 %v761, %v904
  %v1052 = vmax.f32 %v762, %v909
  %v1053 = vmax.f32 %v763, %v912
  %v1054 = vmax.f32 %v764, %v917
  %v1055 = vmax.f32 %v765, %v920
  %v1056 = vmax.f32 %v766, %v925
  %v1057 = vmax.f32 %v767, %v928
  %v1058 = vmax.f32 %v768, %v933
  %v1059 = vmax.f32 %v769, %v936
  %v1060 = vmax.f32 %v770, %v941
  %v1061 = vmax.f32 %v771, %v944
  %v1062 = vmax.f32 %v772, %v949
  %v1063 = vmax.f32 %v773, %v952
  %v1064 = vmax.f32 %v774, %v957
  %v1065 = vmax.f32 %v775, %v960
  %v1066 = vmax.f32 %v776, %v965
  %v1067 = vmax.f32 %v777, %v968
  %v1068 = vmax.f32 %v778, %v973
  %v1069 = vmax.f32 %v779, %v976
  %v1070 = vmax.f32 %v780, %v981
  %v1071 = vmax.f32 %v781, %v984
  %v1072 = vmax.f32 %v782, %v989
  %v1073 = vmax.f32 %v783, %v992
  %v1074 = vmax.f32 %v784, %v997
  %v1075 = vmax.f32 %v785, %v1000
  %v1076 = vmax.f32 %v786, %v1005
  %v1077 = vmax.f32 %v787, %v1008
  %v1078 = vmax.f32 %v788, %v1013
  %v1079 = vmax.f32 %v789, %v1016
  %v1080 = vmax.f32 %v790, %v1021
  %v1081 = vmax.f32 %v791, %v1024
  %v1082 = vmax.f32 %v792, %v1029
  %s1083 = scalar_lea.vmem %s1, 24
  %v1084 = vld [vmem:[%s1083] sm:$0xf]
  %v1085 = vld [vmem:[%s1083 + $0x4] sm:$0xf]
  %v1088 = vunpack.c.l.b16 %v1084
  %v1089 = vunpack.c.l.b16 %v1085
  %v1090 = vpack.c.b16 %v1089, %v1088
  %1092 = vmatprep.subr.bf16.mxu0 0
  %1093 = vmatpush1.bf16.msra.mxu0 %v1090
  %1094 = vmatprep.subr.bf16.mxu0 0
  %1095 = vmatpush1.bf16.msra.mxu0 0
  %1096 = vmatprep.subr.bf16.mxu0 0
  %1097 = vmatpush1.bf16.msra.mxu0 0
  %1098 = vmatprep.subr.bf16.mxu0 0
  %1099 = vmatpush1.bf16.msra.mxu0 0
  %1100 = vmatprep.subr.bf16.mxu0 0
  %1101 = vmatpush1.bf16.msra.mxu0 0
  %1102 = vmatprep.subr.bf16.mxu0 0
  %1103 = vmatpush1.bf16.msra.mxu0 0
  %1104 = vmatprep.subr.bf16.mxu0 0
  %1105 = vmatpush1.bf16.msra.mxu0 0
  %1106 = vmatprep.subr.bf16.mxu0 0
  %1107 = vmatpush1.bf16.msra.mxu0 0
  %1108 = vmatprep.subr.bf16.mxu0 0
  %1109 = vmatpush1.bf16.msra.mxu0 0
  %1110 = vmatprep.subr.bf16.mxu0 0
  %1111 = vmatpush1.bf16.msra.mxu0 0
  %1112 = vmatprep.subr.bf16.mxu0 0
  %1113 = vmatpush1.bf16.msra.mxu0 0
  %1114 = vmatprep.subr.bf16.mxu0 0
  %1115 = vmatpush1.bf16.msra.mxu0 0
  %1116 = vmatprep.subr.bf16.mxu0 0
  %1117 = vmatpush1.bf16.msra.mxu0 0
  %1118 = vmatprep.subr.bf16.mxu0 0
  %1119 = vmatpush1.bf16.msra.mxu0 0
  %1120 = vmatprep.subr.bf16.mxu0 0
  %1121 = vmatpush1.bf16.msra.mxu0 0
  %1122 = vmatprep.subr.bf16.mxu0 0
  %1123 = vmatpush1.bf16.msra.mxu0 0
  %1124 = vmatprep.mubr.bf16.mxu0 0
  %1125 = vmatmul.mubr.bf16.gmra.mrb[0].mxu0 %v197
  %v1126 = vpop.f32.mrb[0].mxu0
  %v1127 = vadd.f32 0.0, %v1126
  %v1128 = vpop.f32.mrb[0].mxu0
  %v1129 = vpop.f32.mrb[0].mxu0
  %v1130 = vadd.f32 0.0, %v1129
  %v1131 = vpop.f32.mrb[0].mxu0
  %1132 = vmatprep.mubr.bf16.mxu0 0
  %1133 = vmatmul.mubr.bf16.gmra.mrb[0].mxu0 %v200
  %v1134 = vpop.f32.mrb[0].mxu0
  %v1135 = vadd.f32 0.0, %v1134
  %v1136 = vpop.f32.mrb[0].mxu0
  %v1137 = vpop.f32.mrb[0].mxu0
  %v1138 = vadd.f32 0.0, %v1137
  %v1139 = vpop.f32.mrb[0].mxu0
  %1140 = vmatprep.mubr.bf16.mxu0 0
  %1141 = vmatmul.mubr.bf16.gmra.mrb[0].mxu0 %v203
  %v1142 = vpop.f32.mrb[0].mxu0
  %v1143 = vadd.f32 0.0, %v1142
  %v1144 = vpop.f32.mrb[0].mxu0
  %v1145 = vpop.f32.mrb[0].mxu0
  %v1146 = vadd.f32 0.0, %v1145
  %v1147 = vpop.f32.mrb[0].mxu0
  %1148 = vmatprep.mubr.bf16.mxu0 0
  %1149 = vmatmul.mubr.bf16.gmra.mrb[0].mxu0 %v206
  %v1150 = vpop.f32.mrb[0].mxu0
  %v1151 = vadd.f32 0.0, %v1150
  %v1152 = vpop.f32.mrb[0].mxu0
  %v1153 = vpop.f32.mrb[0].mxu0
  %v1154 = vadd.f32 0.0, %v1153
  %v1155 = vpop.f32.mrb[0].mxu0
  %1156 = vmatprep.mubr.bf16.mxu0 0
  %1157 = vmatmul.mubr.bf16.gmra.mrb[0].mxu0 %v209
  %v1158 = vpop.f32.mrb[0].mxu0
  %v1159 = vadd.f32 0.0, %v1158
  %v1160 = vpop.f32.mrb[0].mxu0
  %v1161 = vpop.f32.mrb[0].mxu0
  %v1162 = vadd.f32 0.0, %v1161
  %v1163 = vpop.f32.mrb[0].mxu0
  %1164 = vmatprep.mubr.bf16.mxu0 0
  %1165 = vmatmul.mubr.bf16.gmra.mrb[0].mxu0 %v212
  %v1166 = vpop.f32.mrb[0].mxu0
  %v1167 = vadd.f32 0.0, %v1166
  %v1168 = vpop.f32.mrb[0].mxu0
  %v1169 = vpop.f32.mrb[0].mxu0
  %v1170 = vadd.f32 0.0, %v1169
  %v1171 = vpop.f32.mrb[0].mxu0
  %1172 = vmatprep.mubr.bf16.mxu0 0
  %1173 = vmatmul.mubr.bf16.gmra.mrb[0].mxu0 %v215
  %v1174 = vpop.f32.mrb[0].mxu0
  %v1175 = vadd.f32 0.0, %v1174
  %v1176 = vpop.f32.mrb[0].mxu0
  %v1177 = vpop.f32.mrb[0].mxu0
  %v1178 = vadd.f32 0.0, %v1177
  %v1179 = vpop.f32.mrb[0].mxu0
  %1180 = vmatprep.mubr.bf16.mxu0 0
  %1181 = vmatmul.mubr.bf16.gmra.mrb[0].mxu0 %v218
  %v1182 = vpop.f32.mrb[0].mxu0
  %v1183 = vadd.f32 0.0, %v1182
  %v1184 = vpop.f32.mrb[0].mxu0
  %v1185 = vpop.f32.mrb[0].mxu0
  %v1186 = vadd.f32 0.0, %v1185
  %v1187 = vpop.f32.mrb[0].mxu0
  %1188 = vmatprep.mubr.bf16.mxu0 0
  %1189 = vmatmul.mubr.bf16.gmra.mrb[0].mxu0 %v221
  %v1190 = vpop.f32.mrb[0].mxu0
  %v1191 = vadd.f32 0.0, %v1190
  %v1192 = vpop.f32.mrb[0].mxu0
  %v1193 = vpop.f32.mrb[0].mxu0
  %v1194 = vadd.f32 0.0, %v1193
  %v1195 = vpop.f32.mrb[0].mxu0
  %1196 = vmatprep.mubr.bf16.mxu0 0
  %1197 = vmatmul.mubr.bf16.gmra.mrb[0].mxu0 %v224
  %v1198 = vpop.f32.mrb[0].mxu0
  %v1199 = vadd.f32 0.0, %v1198
  %v1200 = vpop.f32.mrb[0].mxu0
  %v1201 = vpop.f32.mrb[0].mxu0
  %v1202 = vadd.f32 0.0, %v1201
  %v1203 = vpop.f32.mrb[0].mxu0
  %1204 = vmatprep.mubr.bf16.mxu0 0
  %1205 = vmatmul.mubr.bf16.gmra.mrb[0].mxu0 %v227
  %v1206 = vpop.f32.mrb[0].mxu0
  %v1207 = vadd.f32 0.0, %v1206
  %v1208 = vpop.f32.mrb[0].mxu0
  %v1209 = vpop.f32.mrb[0].mxu0
  %v1210 = vadd.f32 0.0, %v1209
  %v1211 = vpop.f32.mrb[0].mxu0
  %1212 = vmatprep.mubr.bf16.mxu0 0
  %1213 = vmatmul.mubr.bf16.gmra.mrb[0].mxu0 %v230
  %v1214 = vpop.f32.mrb[0].mxu0
  %v1215 = vadd.f32 0.0, %v1214
  %v1216 = vpop.f32.mrb[0].mxu0
  %v1217 = vpop.f32.mrb[0].mxu0
  %v1218 = vadd.f32 0.0, %v1217
  %v1219 = vpop.f32.mrb[0].mxu0
  %1220 = vmatprep.mubr.bf16.mxu0 0
  %1221 = vmatmul.mubr.bf16.gmra.mrb[0].mxu0 %v233
  %v1222 = vpop.f32.mrb[0].mxu0
  %v1223 = vadd.f32 0.0, %v1222
  %v1224 = vpop.f32.mrb[0].mxu0
  %v1225 = vpop.f32.mrb[0].mxu0
  %v1226 = vadd.f32 0.0, %v1225
  %v1227 = vpop.f32.mrb[0].mxu0
  %1228 = vmatprep.mubr.bf16.mxu0 0
  %1229 = vmatmul.mubr.bf16.gmra.mrb[0].mxu0 %v236
  %v1230 = vpop.f32.mrb[0].mxu0
  %v1231 = vadd.f32 0.0, %v1230
  %v1232 = vpop.f32.mrb[0].mxu0
  %v1233 = vpop.f32.mrb[0].mxu0
  %v1234 = vadd.f32 0.0, %v1233
  %v1235 = vpop.f32.mrb[0].mxu0
  %1236 = vmatprep.mubr.bf16.mxu0 0
  %1237 = vmatmul.mubr.bf16.gmra.mrb[0].mxu0 %v239
  %v1238 = vpop.f32.mrb[0].mxu0
  %v1239 = vadd.f32 0.0, %v1238
  %v1240 = vpop.f32.mrb[0].mxu0
  %v1241 = vpop.f32.mrb[0].mxu0
  %v1242 = vadd.f32 0.0, %v1241
  %v1243 = vpop.f32.mrb[0].mxu0
  %1244 = vmatprep.mubr.bf16.mxu0 0
  %1245 = vmatmul.mubr.bf16.gmra.mrb[0].mxu0 %v242
  %v1246 = vpop.f32.mrb[0].mxu0
  %v1247 = vadd.f32 0.0, %v1246
  %v1248 = vpop.f32.mrb[0].mxu0
  %v1249 = vpop.f32.mrb[0].mxu0
  %v1250 = vadd.f32 0.0, %v1249
  %v1251 = vpop.f32.mrb[0].mxu0
  %1252 = vmatprep.mubr.bf16.mxu0 0
  %1253 = vmatmul.mubr.bf16.gmra.mrb[0].mxu0 %v245
  %v1254 = vpop.f32.mrb[0].mxu0
  %v1255 = vadd.f32 0.0, %v1254
  %v1256 = vpop.f32.mrb[0].mxu0
  %v1257 = vpop.f32.mrb[0].mxu0
  %v1258 = vadd.f32 0.0, %v1257
  %v1259 = vpop.f32.mrb[0].mxu0
  %1260 = vmatprep.mubr.bf16.mxu0 0
  %1261 = vmatmul.mubr.bf16.gmra.mrb[0].mxu0 %v248
  %v1262 = vpop.f32.mrb[0].mxu0
  %v1263 = vadd.f32 0.0, %v1262
  %v1264 = vpop.f32.mrb[0].mxu0
  %v1265 = vpop.f32.mrb[0].mxu0
  %v1266 = vadd.f32 0.0, %v1265
  %v1267 = vpop.f32.mrb[0].mxu0
  %1268 = vmatprep.mubr.bf16.mxu0 0
  %1269 = vmatmul.mubr.bf16.gmra.mrb[0].mxu0 %v251
  %v1270 = vpop.f32.mrb[0].mxu0
  %v1271 = vadd.f32 0.0, %v1270
  %v1272 = vpop.f32.mrb[0].mxu0
  %v1273 = vpop.f32.mrb[0].mxu0
  %v1274 = vadd.f32 0.0, %v1273
  %v1275 = vpop.f32.mrb[0].mxu0
  %1276 = vmatprep.mubr.bf16.mxu0 0
  %1277 = vmatmul.mubr.bf16.gmra.mrb[0].mxu0 %v254
  %v1278 = vpop.f32.mrb[0].mxu0
  %v1279 = vadd.f32 0.0, %v1278
  %v1280 = vpop.f32.mrb[0].mxu0
  %v1281 = vpop.f32.mrb[0].mxu0
  %v1282 = vadd.f32 0.0, %v1281
  %v1283 = vpop.f32.mrb[0].mxu0
  %1284 = vmatprep.mubr.bf16.mxu0 0
  %1285 = vmatmul.mubr.bf16.gmra.mrb[0].mxu0 %v257
  %v1286 = vpop.f32.mrb[0].mxu0
  %v1287 = vadd.f32 0.0, %v1286
  %v1288 = vpop.f32.mrb[0].mxu0
  %v1289 = vpop.f32.mrb[0].mxu0
  %v1290 = vadd.f32 0.0, %v1289
  %v1291 = vpop.f32.mrb[0].mxu0
  %1292 = vmatprep.mubr.bf16.mxu0 0
  %1293 = vmatmul.mubr.bf16.gmra.mrb[0].mxu0 %v260
  %v1294 = vpop.f32.mrb[0].mxu0
  %v1295 = vadd.f32 0.0, %v1294
  %v1296 = vpop.f32.mrb[0].mxu0
  %v1297 = vpop.f32.mrb[0].mxu0
  %v1298 = vadd.f32 0.0, %v1297
  %v1299 = vpop.f32.mrb[0].mxu0
  %1300 = vmatprep.mubr.bf16.mxu0 0
  %1301 = vmatmul.mubr.bf16.gmra.mrb[0].mxu0 %v263
  %v1302 = vpop.f32.mrb[0].mxu0
  %v1303 = vadd.f32 0.0, %v1302
  %v1304 = vpop.f32.mrb[0].mxu0
  %v1305 = vpop.f32.mrb[0].mxu0
  %v1306 = vadd.f32 0.0, %v1305
  %v1307 = vpop.f32.mrb[0].mxu0
  %1308 = vmatprep.mubr.bf16.mxu0 0
  %1309 = vmatmul.mubr.bf16.gmra.mrb[0].mxu0 %v266
  %v1310 = vpop.f32.mrb[0].mxu0
  %v1311 = vadd.f32 0.0, %v1310
  %v1312 = vpop.f32.mrb[0].mxu0
  %v1313 = vpop.f32.mrb[0].mxu0
  %v1314 = vadd.f32 0.0, %v1313
  %v1315 = vpop.f32.mrb[0].mxu0
  %1316 = vmatprep.mubr.bf16.mxu0 0
  %1317 = vmatmul.mubr.bf16.gmra.mrb[0].mxu0 %v269
  %v1318 = vpop.f32.mrb[0].mxu0
  %v1319 = vadd.f32 0.0, %v1318
  %v1320 = vpop.f32.mrb[0].mxu0
  %v1321 = vpop.f32.mrb[0].mxu0
  %v1322 = vpop.f32.mrb[0].mxu0
  %1323 = vdwg.mxu0
  %v1324 = vmax.f32 %v1034, %v1127
  %v1325 = vmax.f32 %v1035, %v1130
  %v1326 = vmax.f32 %v1036, %v1135
  %v1327 = vmax.f32 %v1037, %v1138
  %v1328 = vmax.f32 %v1038, %v1143
  %v1329 = vmax.f32 %v1039, %v1146
  %v1330 = vmax.f32 %v1040, %v1151
  %v1331 = vmax.f32 %v1041, %v1154
  %v1332 = vmax.f32 %v1042, %v1159
  %v1333 = vmax.f32 %v1043, %v1162
  %v1334 = vmax.f32 %v1044, %v1167
  %v1335 = vmax.f32 %v1045, %v1170
  %v1336 = vmax.f32 %v1046, %v1175
  %v1337 = vmax.f32 %v1047, %v1178
  %v1338 = vmax.f32 %v1048, %v1183
  %v1339 = vmax.f32 %v1049, %v1186
  %v1340 = vmax.f32 %v1050, %v1191
  %v1341 = vmax.f32 %v1051, %v1194
  %v1342 = vmax.f32 %v1052, %v1199
  %v1343 = vmax.f32 %v1053, %v1202
  %v1344 = vmax.f32 %v1054, %v1207
  %v1345 = vmax.f32 %v1055, %v1210
  %v1346 = vmax.f32 %v1056, %v1215
  %v1347 = vmax.f32 %v1057, %v1218
  %v1348 = vmax.f32 %v1058, %v1223
  %v1349 = vmax.f32 %v1059, %v1226
  %v1350 = vmax.f32 %v1060, %v1231
  %v1351 = vmax.f32 %v1061, %v1234
  %v1352 = vmax.f32 %v1062, %v1239
  %v1353 = vmax.f32 %v1063, %v1242
  %v1354 = vmax.f32 %v1064, %v1247
  %v1355 = vmax.f32 %v1065, %v1250
  %v1356 = vmax.f32 %v1066, %v1255
  %v1357 = vmax.f32 %v1067, %v1258
  %v1358 = vmax.f32 %v1068, %v1263
  %v1359 = vmax.f32 %v1069, %v1266
  %v1360 = vmax.f32 %v1070, %v1271
  %v1361 = vmax.f32 %v1071, %v1274
  %v1362 = vmax.f32 %v1072, %v1279
  %v1363 = vmax.f32 %v1073, %v1282
  %v1364 = vmax.f32 %v1074, %v1287
  %v1365 = vmax.f32 %v1075, %v1290
  %v1366 = vmax.f32 %v1076, %v1295
  %v1367 = vmax.f32 %v1077, %v1298
  %v1368 = vmax.f32 %v1078, %v1303
  %v1369 = vmax.f32 %v1079, %v1306
  %v1370 = vmax.f32 %v1080, %v1311
  %v1371 = vmax.f32 %v1081, %v1314
  %v1372 = vmax.f32 %v1082, %v1319
  %v1373 = vld [vmem:[%s2] sm:$0x1]
  %v1375 = vlaneseq
  %v1376 = vshrl.u32 %v1375, 7
  %v1377 = vsub.s32 0, %v1376
  %v1378 = vrot.slane %v1373, %v1377
  %v1380 = vadd.f32 %v1324, %v1378
  %v1381 = vadd.f32 %v1325, %v1378
  %v1382 = vadd.f32 %v1326, %v1378
  %v1383 = vadd.f32 %v1327, %v1378
  %v1384 = vadd.f32 %v1328, %v1378
  %v1385 = vadd.f32 %v1329, %v1378
  %v1386 = vadd.f32 %v1330, %v1378
  %v1387 = vadd.f32 %v1331, %v1378
  %v1388 = vadd.f32 %v1332, %v1378
  %v1389 = vadd.f32 %v1333, %v1378
  %v1390 = vadd.f32 %v1334, %v1378
  %v1391 = vadd.f32 %v1335, %v1378
  %v1392 = vadd.f32 %v1336, %v1378
  %v1393 = vadd.f32 %v1337, %v1378
  %v1394 = vadd.f32 %v1338, %v1378
  %v1395 = vadd.f32 %v1339, %v1378
  %v1396 = vadd.f32 %v1340, %v1378
  %v1397 = vadd.f32 %v1341, %v1378
  %v1398 = vadd.f32 %v1342, %v1378
  %v1399 = vadd.f32 %v1343, %v1378
  %v1400 = vadd.f32 %v1344, %v1378
  %v1401 = vadd.f32 %v1345, %v1378
  %v1402 = vadd.f32 %v1346, %v1378
  %v1403 = vadd.f32 %v1347, %v1378
  %v1404 = vadd.f32 %v1348, %v1378
  %v1405 = vadd.f32 %v1349, %v1378
  %v1406 = vadd.f32 %v1350, %v1378
  %v1407 = vadd.f32 %v1351, %v1378
  %v1408 = vadd.f32 %v1352, %v1378
  %v1409 = vadd.f32 %v1353, %v1378
  %v1410 = vadd.f32 %v1354, %v1378
  %v1411 = vadd.f32 %v1355, %v1378
  %v1412 = vadd.f32 %v1356, %v1378
  %v1413 = vadd.f32 %v1357, %v1378
  %v1414 = vadd.f32 %v1358, %v1378
  %v1415 = vadd.f32 %v1359, %v1378
  %v1416 = vadd.f32 %v1360, %v1378
  %v1417 = vadd.f32 %v1361, %v1378
  %v1418 = vadd.f32 %v1362, %v1378
  %v1419 = vadd.f32 %v1363, %v1378
  %v1420 = vadd.f32 %v1364, %v1378
  %v1421 = vadd.f32 %v1365, %v1378
  %v1422 = vadd.f32 %v1366, %v1378
  %v1423 = vadd.f32 %v1367, %v1378
  %v1424 = vadd.f32 %v1368, %v1378
  %v1425 = vadd.f32 %v1369, %v1378
  %v1426 = vadd.f32 %v1370, %v1378
  %v1427 = vadd.f32 %v1371, %v1378
  %v1428 = vadd.f32 %v1372, %v1378
  %v1429 = vmax.f32 %v1380, 0.0
  %v1430 = vmax.f32 %v1381, 0.0
  %v1431 = vmax.f32 %v1382, 0.0
  %v1432 = vmax.f32 %v1383, 0.0
  %v1433 = vmax.f32 %v1384, 0.0
  %v1434 = vmax.f32 %v1385, 0.0
  %v1435 = vmax.f32 %v1386, 0.0
  %v1436 = vmax.f32 %v1387, 0.0
  %v1437 = vmax.f32 %v1388, 0.0
  %v1438 = vmax.f32 %v1389, 0.0
  %v1439 = vmax.f32 %v1390, 0.0
  %v1440 = vmax.f32 %v1391, 0.0
  %v1441 = vmax.f32 %v1392, 0.0
  %v1442 = vmax.f32 %v1393, 0.0
  %v1443 = vmax.f32 %v1394, 0.0
  %v1444 = vmax.f32 %v1395, 0.0
  %v1445 = vmax.f32 %v1396, 0.0
  %v1446 = vmax.f32 %v1397, 0.0
  %v1447 = vmax.f32 %v1398, 0.0
  %v1448 = vmax.f32 %v1399, 0.0
  %v1449 = vmax.f32 %v1400, 0.0
  %v1450 = vmax.f32 %v1401, 0.0
  %v1451 = vmax.f32 %v1402, 0.0
  %v1452 = vmax.f32 %v1403, 0.0
  %v1453 = vmax.f32 %v1404, 0.0
  %v1454 = vmax.f32 %v1405, 0.0
  %v1455 = vmax.f32 %v1406, 0.0
  %v1456 = vmax.f32 %v1407, 0.0
  %v1457 = vmax.f32 %v1408, 0.0
  %v1458 = vmax.f32 %v1409, 0.0
  %v1459 = vmax.f32 %v1410, 0.0
  %v1460 = vmax.f32 %v1411, 0.0
  %v1461 = vmax.f32 %v1412, 0.0
  %v1462 = vmax.f32 %v1413, 0.0
  %v1463 = vmax.f32 %v1414, 0.0
  %v1464 = vmax.f32 %v1415, 0.0
  %v1465 = vmax.f32 %v1416, 0.0
  %v1466 = vmax.f32 %v1417, 0.0
  %v1467 = vmax.f32 %v1418, 0.0
  %v1468 = vmax.f32 %v1419, 0.0
  %v1469 = vmax.f32 %v1420, 0.0
  %v1470 = vmax.f32 %v1421, 0.0
  %v1471 = vmax.f32 %v1422, 0.0
  %v1472 = vmax.f32 %v1423, 0.0
  %v1473 = vmax.f32 %v1424, 0.0
  %v1474 = vmax.f32 %v1425, 0.0
  %v1475 = vmax.f32 %v1426, 0.0
  %v1476 = vmax.f32 %v1427, 0.0
  %v1477 = vmax.f32 %v1428, 0.0
  %v1478 = vpack.c.bf16 %v1430, %v1429
  %v1479 = vpack.c.bf16 %v1432, %v1431
  %v1480 = vpack.c.bf16 %v1434, %v1433
  %v1481 = vpack.c.bf16 %v1436, %v1435
  %v1482 = vpack.c.bf16 %v1438, %v1437
  %v1483 = vpack.c.bf16 %v1440, %v1439
  %v1484 = vpack.c.bf16 %v1442, %v1441
  %v1485 = vpack.c.bf16 %v1444, %v1443
  %v1486 = vpack.c.bf16 %v1446, %v1445
  %v1487 = vpack.c.bf16 %v1448, %v1447
  %v1488 = vpack.c.bf16 %v1450, %v1449
  %v1489 = vpack.c.bf16 %v1452, %v1451
  %v1490 = vpack.c.bf16 %v1454, %v1453
  %v1491 = vpack.c.bf16 %v1456, %v1455
  %v1492 = vpack.c.bf16 %v1458, %v1457
  %v1493 = vpack.c.bf16 %v1460, %v1459
  %v1494 = vpack.c.bf16 %v1462, %v1461
  %v1495 = vpack.c.bf16 %v1464, %v1463
  %v1496 = vpack.c.bf16 %v1466, %v1465
  %v1497 = vpack.c.bf16 %v1468, %v1467
  %v1498 = vpack.c.bf16 %v1470, %v1469
  %v1499 = vpack.c.bf16 %v1472, %v1471
  %v1500 = vpack.c.bf16 %v1474, %v1473
  %v1501 = vpack.c.bf16 %v1476, %v1475
  %v1502 = vpack.c.bf16 %v1477, %v1477
  %v1528 = vunpack.c.l.b16 %v1478
  %v1529 = vunpack.c.h.b16 %v1478
  %v1530 = vunpack.c.l.b16 %v1479
  %v1531 = vunpack.c.h.b16 %v1479
  %v1532 = vunpack.c.l.b16 %v1480
  %v1533 = vunpack.c.h.b16 %v1480
  %v1534 = vunpack.c.l.b16 %v1481
  %v1535 = vunpack.c.h.b16 %v1481
  %v1536 = vunpack.c.l.b16 %v1482
  %v1537 = vunpack.c.h.b16 %v1482
  %v1538 = vunpack.c.l.b16 %v1483
  %v1539 = vunpack.c.h.b16 %v1483
  %v1540 = vunpack.c.l.b16 %v1484
  %v1541 = vunpack.c.h.b16 %v1484
  %v1542 = vunpack.c.l.b16 %v1485
  %v1543 = vunpack.c.h.b16 %v1485
  %v1544 = vunpack.c.l.b16 %v1486
  %v1545 = vunpack.c.h.b16 %v1486
  %v1546 = vunpack.c.l.b16 %v1487
  %v1547 = vunpack.c.h.b16 %v1487
  %v1548 = vunpack.c.l.b16 %v1488
  %v1549 = vunpack.c.h.b16 %v1488
  %v1550 = vunpack.c.l.b16 %v1489
  %v1551 = vunpack.c.h.b16 %v1489
  %v1552 = vunpack.c.l.b16 %v1490
  %v1553 = vunpack.c.h.b16 %v1490
  %v1554 = vunpack.c.l.b16 %v1491
  %v1555 = vunpack.c.h.b16 %v1491
  %v1556 = vunpack.c.l.b16 %v1492
  %v1557 = vunpack.c.h.b16 %v1492
  %v1558 = vunpack.c.l.b16 %v1493
  %v1559 = vunpack.c.h.b16 %v1493
  %v1560 = vunpack.c.l.b16 %v1494
  %v1561 = vunpack.c.h.b16 %v1494
  %v1562 = vunpack.c.l.b16 %v1495
  %v1563 = vunpack.c.h.b16 %v1495
  %v1564 = vunpack.c.l.b16 %v1496
  %v1565 = vunpack.c.h.b16 %v1496
  %v1566 = vunpack.c.l.b16 %v1497
  %v1567 = vunpack.c.h.b16 %v1497
  %v1568 = vunpack.c.l.b16 %v1498
  %v1569 = vunpack.c.h.b16 %v1498
  %v1570 = vunpack.c.l.b16 %v1499
  %v1571 = vunpack.c.h.b16 %v1499
  %v1572 = vunpack.c.l.b16 %v1500
  %v1573 = vunpack.c.h.b16 %v1500
  %v1574 = vunpack.c.l.b16 %v1501
  %v1575 = vunpack.c.h.b16 %v1501
  %v1576 = vunpack.c.l.b16 %v1502
  %v1577 = vpack.c.b16 %v1528, %v1528
  %v1578 = vpack.c.b16 %v1529, %v1529
  %v1579 = vpack.c.b16 %v1530, %v1530
  %v1580 = vpack.c.b16 %v1531, %v1531
  %v1581 = vpack.c.b16 %v1532, %v1532
  %v1582 = vpack.c.b16 %v1533, %v1533
  %v1583 = vpack.c.b16 %v1534, %v1534
  %v1584 = vpack.c.b16 %v1535, %v1535
  %v1585 = vpack.c.b16 %v1536, %v1536
  %v1586 = vpack.c.b16 %v1537, %v1537
  %v1587 = vpack.c.b16 %v1538, %v1538
  %v1588 = vpack.c.b16 %v1539, %v1539
  %v1589 = vpack.c.b16 %v1540, %v1540
  %v1590 = vpack.c.b16 %v1541, %v1541
  %v1591 = vpack.c.b16 %v1542, %v1542
  %v1592 = vpack.c.b16 %v1543, %v1543
  %v1593 = vpack.c.b16 %v1544, %v1544
  %v1594 = vpack.c.b16 %v1545, %v1545
  %v1595 = vpack.c.b16 %v1546, %v1546
  %v1596 = vpack.c.b16 %v1547, %v1547
  %v1597 = vpack.c.b16 %v1548, %v1548
  %v1598 = vpack.c.b16 %v1549, %v1549
  %v1599 = vpack.c.b16 %v1550, %v1550
  %v1600 = vpack.c.b16 %v1551, %v1551
  %v1601 = vpack.c.b16 %v1552, %v1552
  %v1602 = vpack.c.b16 %v1553, %v1553
  %v1603 = vpack.c.b16 %v1554, %v1554
  %v1604 = vpack.c.b16 %v1555, %v1555
  %v1605 = vpack.c.b16 %v1556, %v1556
  %v1606 = vpack.c.b16 %v1557, %v1557
  %v1607 = vpack.c.b16 %v1558, %v1558
  %v1608 = vpack.c.b16 %v1559, %v1559
  %v1609 = vpack.c.b16 %v1560, %v1560
  %v1610 = vpack.c.b16 %v1561, %v1561
  %v1611 = vpack.c.b16 %v1562, %v1562
  %v1612 = vpack.c.b16 %v1563, %v1563
  %v1613 = vpack.c.b16 %v1564, %v1564
  %v1614 = vpack.c.b16 %v1565, %v1565
  %v1615 = vpack.c.b16 %v1566, %v1566
  %v1616 = vpack.c.b16 %v1567, %v1567
  %v1617 = vpack.c.b16 %v1568, %v1568
  %v1618 = vpack.c.b16 %v1569, %v1569
  %v1619 = vpack.c.b16 %v1570, %v1570
  %v1620 = vpack.c.b16 %v1571, %v1571
  %v1621 = vpack.c.b16 %v1572, %v1572
  %v1622 = vpack.c.b16 %v1573, %v1573
  %v1623 = vpack.c.b16 %v1574, %v1574
  %v1624 = vpack.c.b16 %v1575, %v1575
  %v1625 = vpack.c.b16 %v1576, %v1576
  %vm1675 = vcmask 60416
  %1676 = vst.msk [vmem:[%s3] sm:$0xf] %vm1675, %v1577
  %1677 = vst.msk [vmem:[%s3 + $0x4] sm:$0xf] %vm1675, %v1578
  %1678 = vst.msk [vmem:[%s3 + $0x8] sm:$0xf] %vm1675, %v1579
  %1679 = vst.msk [vmem:[%s3 + $0xc] sm:$0xf] %vm1675, %v1580
  %1680 = vst.msk [vmem:[%s3 + $0x10] sm:$0xf] %vm1675, %v1581
  %1681 = vst.msk [vmem:[%s3 + $0x14] sm:$0xf] %vm1675, %v1582
  %1682 = vst.msk [vmem:[%s3 + $0x18] sm:$0xf] %vm1675, %v1583
  %1683 = vst.msk [vmem:[%s3 + $0x1c] sm:$0xf] %vm1675, %v1584
  %1684 = vst.msk [vmem:[%s3 + $0x20] sm:$0xf] %vm1675, %v1585
  %1685 = vst.msk [vmem:[%s3 + $0x24] sm:$0xf] %vm1675, %v1586
  %1686 = vst.msk [vmem:[%s3 + $0x28] sm:$0xf] %vm1675, %v1587
  %1687 = vst.msk [vmem:[%s3 + $0x2c] sm:$0xf] %vm1675, %v1588
  %1688 = vst.msk [vmem:[%s3 + $0x30] sm:$0xf] %vm1675, %v1589
  %1689 = vst.msk [vmem:[%s3 + $0x34] sm:$0xf] %vm1675, %v1590
  %1690 = vst.msk [vmem:[%s3 + $0x38] sm:$0xf] %vm1675, %v1591
  %1691 = vst.msk [vmem:[%s3 + $0x3c] sm:$0xf] %vm1675, %v1592
  %1692 = vst.msk [vmem:[%s3 + $0x40] sm:$0xf] %vm1675, %v1593
  %1693 = vst.msk [vmem:[%s3 + $0x44] sm:$0xf] %vm1675, %v1594
  %1694 = vst.msk [vmem:[%s3 + $0x48] sm:$0xf] %vm1675, %v1595
  %1695 = vst.msk [vmem:[%s3 + $0x4c] sm:$0xf] %vm1675, %v1596
  %1696 = vst.msk [vmem:[%s3 + $0x50] sm:$0xf] %vm1675, %v1597
  %1697 = vst.msk [vmem:[%s3 + $0x54] sm:$0xf] %vm1675, %v1598
  %1698 = vst.msk [vmem:[%s3 + $0x58] sm:$0xf] %vm1675, %v1599
  %1699 = vst.msk [vmem:[%s3 + $0x5c] sm:$0xf] %vm1675, %v1600
  %1700 = vst.msk [vmem:[%s3 + $0x60] sm:$0xf] %vm1675, %v1601
  %1701 = vst.msk [vmem:[%s3 + $0x64] sm:$0xf] %vm1675, %v1602
  %1702 = vst.msk [vmem:[%s3 + $0x68] sm:$0xf] %vm1675, %v1603
  %1703 = vst.msk [vmem:[%s3 + $0x6c] sm:$0xf] %vm1675, %v1604
  %1704 = vst.msk [vmem:[%s3 + $0x70] sm:$0xf] %vm1675, %v1605
  %1705 = vst.msk [vmem:[%s3 + $0x74] sm:$0xf] %vm1675, %v1606
  %1706 = vst.msk [vmem:[%s3 + $0x78] sm:$0xf] %vm1675, %v1607
  %1707 = vst.msk [vmem:[%s3 + $0x7c] sm:$0xf] %vm1675, %v1608
  %1708 = vst.msk [vmem:[%s3 + $0x80] sm:$0xf] %vm1675, %v1609
  %1709 = vst.msk [vmem:[%s3 + $0x84] sm:$0xf] %vm1675, %v1610
  %1710 = vst.msk [vmem:[%s3 + $0x88] sm:$0xf] %vm1675, %v1611
  %1711 = vst.msk [vmem:[%s3 + $0x8c] sm:$0xf] %vm1675, %v1612
  %1712 = vst.msk [vmem:[%s3 + $0x90] sm:$0xf] %vm1675, %v1613
  %1713 = vst.msk [vmem:[%s3 + $0x94] sm:$0xf] %vm1675, %v1614
  %1714 = vst.msk [vmem:[%s3 + $0x98] sm:$0xf] %vm1675, %v1615
  %1715 = vst.msk [vmem:[%s3 + $0x9c] sm:$0xf] %vm1675, %v1616
  %1716 = vst.msk [vmem:[%s3 + $0xa0] sm:$0xf] %vm1675, %v1617
  %1717 = vst.msk [vmem:[%s3 + $0xa4] sm:$0xf] %vm1675, %v1618
  %1718 = vst.msk [vmem:[%s3 + $0xa8] sm:$0xf] %vm1675, %v1619
  %1719 = vst.msk [vmem:[%s3 + $0xac] sm:$0xf] %vm1675, %v1620
  %1720 = vst.msk [vmem:[%s3 + $0xb0] sm:$0xf] %vm1675, %v1621
  %1721 = vst.msk [vmem:[%s3 + $0xb4] sm:$0xf] %vm1675, %v1622
  %1722 = vst.msk [vmem:[%s3 + $0xb8] sm:$0xf] %vm1675, %v1623
  %1723 = vst.msk [vmem:[%s3 + $0xbc] sm:$0xf] %vm1675, %v1624
  %1724 = vst.msk [vmem:[%s3 + $0xc0] sm:$0xf] %vm1675, %v1625
  // Predicated region
  $region14: #{_lambda_.3} parent=0 // pred_check
    _
  $region15: #{_lambda_.3} parent=0 // pred_check_branch
    %1726 = sbr.rel (0) target = $region17
  $region16: #{_lambda_.3} parent=0 // pred_region
    _
  $region17: #{_lambda_.3} parent=0 // pred_fallthru
    _
  // Predicated region
  $region18: #{_lambda_.3} parent=0 // pred_check
    _
  $region19: #{_lambda_.3} parent=0 // pred_check_branch
    %1728 = sbr.rel (0) target = $region21
  $region20: #{_lambda_.3} parent=0 // pred_region
    _
  $region21: #{_lambda_.3} parent=0 // pred_fallthru
    _

// kernel: _lambda_.4
$region0: #{_lambda_.4}
  #allocation0 [shape = 'u32[]', space=smem, size = 0x4, offset = 0x4, fixed_abs, tag = 'smem constant byte address 0x4 - core index']
  #allocation1 [shape = 'u32[144,128]{1,0:T(1,128)}', space=vmem, size = 0x12000, scoped, tag = 'internal scratch']
  %s0 = inlined_call_operand.vmem [shape: bf16[98,128], index: 0, kind: input, shape index: {}]
  %s1 = inlined_call_operand.vmem [shape: bf16[4,128,32], index: 1, kind: input, shape index: {}]
  %s2 = inlined_call_operand.vmem [shape: f32[1,32], index: 2, kind: input, shape index: {}]
  %s3 = inlined_call_operand.vmem [shape: bf16[98,32], index: 3, kind: output, shape index: {}]
  %s4 = sld [smem:[#allocation0]]
  $region22: #{_lambda_.4} parent=0
    _
  %s6 = ssub.s32 1, %s4
  %s7 = scalar_select 0, %s6, %s4
  // Predicated region
  $region2: #{_lambda_.4} parent=0 // pred_check
    _
  $region3: #{_lambda_.4} parent=0 // pred_check_branch
    %9 = sbr.rel (0) target = $region5
  $region4: #{_lambda_.4} parent=0 // pred_region
    _
  $region5: #{_lambda_.4} parent=0 // pred_fallthru
    _
  // Predicated region
  $region6: #{_lambda_.4} parent=0 // pred_check
    _
  $region7: #{_lambda_.4} parent=0 // pred_check_branch
    %11 = sbr.rel (0) target = $region9
  $region8: #{_lambda_.4} parent=0 // pred_region
    _
  $region9: #{_lambda_.4} parent=0 // pred_fallthru
    _
  // Predicated region
  $region10: #{_lambda_.4} parent=0 // pred_check
    _
  $region11: #{_lambda_.4} parent=0 // pred_check_branch
    %13 = sbr.rel (0) target = $region13
  $region12: #{_lambda_.4} parent=0 // pred_region
    _
  $region13: #{_lambda_.4} parent=0 // pred_fallthru
    _
  %v15 = vld [vmem:[%s0] sm:$0xf]
  %v16 = vld [vmem:[%s0 + $0x4] sm:$0xf]
  %v17 = vld [vmem:[%s0 + $0x8] sm:$0xf]
  %v18 = vld [vmem:[%s0 + $0xc] sm:$0xf]
  %v19 = vld [vmem:[%s0 + $0x10] sm:$0xf]
  %v20 = vld [vmem:[%s0 + $0x14] sm:$0xf]
  %v21 = vld [vmem:[%s0 + $0x18] sm:$0xf]
  %v22 = vld [vmem:[%s0 + $0x1c] sm:$0xf]
  %v23 = vld [vmem:[%s0 + $0x20] sm:$0xf]
  %v24 = vld [vmem:[%s0 + $0x24] sm:$0xf]
  %v25 = vld [vmem:[%s0 + $0x28] sm:$0xf]
  %v26 = vld [vmem:[%s0 + $0x2c] sm:$0xf]
  %v27 = vld [vmem:[%s0 + $0x30] sm:$0x1]
  %v28 = vld [vmem:[%s1] sm:$0xf]
  %v29 = vld [vmem:[%s1 + $0x4] sm:$0xf]
  %v30 = vld [vmem:[%s1 + $0x8] sm:$0xf]
  %v31 = vld [vmem:[%s1 + $0xc] sm:$0xf]
  %v32 = vld [vmem:[%s1 + $0x10] sm:$0xf]
  %v33 = vld [vmem:[%s1 + $0x14] sm:$0xf]
  %v34 = vld [vmem:[%s1 + $0x18] sm:$0xf]
  %v35 = vld [vmem:[%s1 + $0x1c] sm:$0xf]
  %v36 = vld [vmem:[%s1 + $0x20] sm:$0xf]
  %v37 = vld [vmem:[%s1 + $0x24] sm:$0xf]
  %v38 = vld [vmem:[%s1 + $0x28] sm:$0xf]
  %v39 = vld [vmem:[%s1 + $0x2c] sm:$0xf]
  %v40 = vld [vmem:[%s1 + $0x30] sm:$0xf]
  %v41 = vld [vmem:[%s1 + $0x34] sm:$0xf]
  %v42 = vld [vmem:[%s1 + $0x38] sm:$0xf]
  %v43 = vld [vmem:[%s1 + $0x3c] sm:$0xf]
  %v57 = vunpack.c.l.b16 %v15
  %v58 = vunpack.c.l.b16 %v16
  %v59 = vunpack.c.l.b16 %v17
  %v60 = vunpack.c.l.b16 %v18
  %v61 = vunpack.c.l.b16 %v19
  %v62 = vunpack.c.l.b16 %v20
  %v63 = vunpack.c.l.b16 %v21
  %v64 = vunpack.c.l.b16 %v22
  %v65 = vunpack.c.l.b16 %v23
  %v66 = vunpack.c.l.b16 %v24
  %v67 = vunpack.c.l.b16 %v25
  %v68 = vunpack.c.l.b16 %v26
  %v69 = vunpack.c.l.b16 %v27
  %v70 = vpack.c.b16 %v58, %v57
  %v71 = vpack.c.b16 %v60, %v59
  %v72 = vpack.c.b16 %v62, %v61
  %v73 = vpack.c.b16 %v64, %v63
  %v74 = vpack.c.b16 %v66, %v65
  %v75 = vpack.c.b16 %v68, %v67
  %v76 = vpack.c.b16 %v69, %v69
  %v100 = vunpack.c.l.b16 %v28
  %v101 = vunpack.c.l.b16 %v29
  %v102 = vunpack.c.l.b16 %v30
  %v103 = vunpack.c.l.b16 %v31
  %v104 = vunpack.c.l.b16 %v32
  %v105 = vunpack.c.l.b16 %v33
  %v106 = vunpack.c.l.b16 %v34
  %v107 = vunpack.c.l.b16 %v35
  %v108 = vunpack.c.l.b16 %v36
  %v109 = vunpack.c.l.b16 %v37
  %v110 = vunpack.c.l.b16 %v38
  %v111 = vunpack.c.l.b16 %v39
  %v112 = vunpack.c.l.b16 %v40
  %v113 = vunpack.c.l.b16 %v41
  %v114 = vunpack.c.l.b16 %v42
  %v115 = vunpack.c.l.b16 %v43
  %v116 = vpack.c.b16 %v101, %v100
  %v117 = vpack.c.b16 %v103, %v102
  %v118 = vpack.c.b16 %v105, %v104
  %v119 = vpack.c.b16 %v107, %v106
  %v120 = vpack.c.b16 %v109, %v108
  %v121 = vpack.c.b16 %v111, %v110
  %v122 = vpack.c.b16 %v113, %v112
  %v123 = vpack.c.b16 %v115, %v114
  %132 = vmatprep.subr.bf16.mxu0 0
  %133 = vmatpush1.bf16.msra.mxu0 %v116
  %134 = vmatprep.subr.bf16.mxu0 0
  %135 = vmatpush1.bf16.msra.mxu0 %v117
  %136 = vmatprep.subr.bf16.mxu0 0
  %137 = vmatpush1.bf16.msra.mxu0 %v118
  %138 = vmatprep.subr.bf16.mxu0 0
  %139 = vmatpush1.bf16.msra.mxu0 %v119
  %140 = vmatprep.subr.bf16.mxu0 0
  %141 = vmatpush1.bf16.msra.mxu0 %v120
  %142 = vmatprep.subr.bf16.mxu0 0
  %143 = vmatpush1.bf16.msra.mxu0 %v121
  %144 = vmatprep.subr.bf16.mxu0 0
  %145 = vmatpush1.bf16.msra.mxu0 %v122
  %146 = vmatprep.subr.bf16.mxu0 0
  %147 = vmatpush1.bf16.msra.mxu0 %v123
  %148 = vmatprep.subr.bf16.mxu0 0
  %149 = vmatpush1.bf16.msra.mxu0 0
  %150 = vmatprep.subr.bf16.mxu0 0
  %151 = vmatpush1.bf16.msra.mxu0 0
  %152 = vmatprep.subr.bf16.mxu0 0
  %153 = vmatpush1.bf16.msra.mxu0 0
  %154 = vmatprep.subr.bf16.mxu0 0
  %155 = vmatpush1.bf16.msra.mxu0 0
  %156 = vmatprep.subr.bf16.mxu0 0
  %157 = vmatpush1.bf16.msra.mxu0 0
  %158 = vmatprep.subr.bf16.mxu0 0
  %159 = vmatpush1.bf16.msra.mxu0 0
  %160 = vmatprep.subr.bf16.mxu0 0
  %161 = vmatpush1.bf16.msra.mxu0 0
  %162 = vmatprep.subr.bf16.mxu0 0
  %163 = vmatpush1.bf16.msra.mxu0 0
  %164 = vmatprep.mubr.bf16.mxu0 0
  %165 = vmatmul.mubr.bf16.gmra.mrb[0].mxu0 %v70
  %v166 = vpop.f32.mrb[0].mxu0
  %v167 = vadd.f32 0.0, %v166
  %v168 = vpop.f32.mrb[0].mxu0
  %v169 = vpop.f32.mrb[0].mxu0
  %v170 = vadd.f32 0.0, %v169
  %v171 = vpop.f32.mrb[0].mxu0
  %172 = vmatprep.mubr.bf16.mxu0 0
  %173 = vmatmul.mubr.bf16.gmra.mrb[0].mxu0 %v71
  %v174 = vpop.f32.mrb[0].mxu0
  %v175 = vadd.f32 0.0, %v174
  %v176 = vpop.f32.mrb[0].mxu0
  %v177 = vpop.f32.mrb[0].mxu0
  %v178 = vadd.f32 0.0, %v177
  %v179 = vpop.f32.mrb[0].mxu0
  %180 = vmatprep.mubr.bf16.mxu0 0
  %181 = vmatmul.mubr.bf16.gmra.mrb[0].mxu0 %v72
  %v182 = vpop.f32.mrb[0].mxu0
  %v183 = vadd.f32 0.0, %v182
  %v184 = vpop.f32.mrb[0].mxu0
  %v185 = vpop.f32.mrb[0].mxu0
  %v186 = vadd.f32 0.0, %v185
  %v187 = vpop.f32.mrb[0].mxu0
  %188 = vmatprep.mubr.bf16.mxu0 0
  %189 = vmatmul.mubr.bf16.gmra.mrb[0].mxu0 %v73
  %v190 = vpop.f32.mrb[0].mxu0
  %v191 = vadd.f32 0.0, %v190
  %v192 = vpop.f32.mrb[0].mxu0
  %v193 = vpop.f32.mrb[0].mxu0
  %v194 = vadd.f32 0.0, %v193
  %v195 = vpop.f32.mrb[0].mxu0
  %196 = vmatprep.mubr.bf16.mxu0 0
  %197 = vmatmul.mubr.bf16.gmra.mrb[0].mxu0 %v74
  %v198 = vpop.f32.mrb[0].mxu0
  %v199 = vadd.f32 0.0, %v198
  %v200 = vpop.f32.mrb[0].mxu0
  %v201 = vpop.f32.mrb[0].mxu0
  %v202 = vadd.f32 0.0, %v201
  %v203 = vpop.f32.mrb[0].mxu0
  %204 = vmatprep.mubr.bf16.mxu0 0
  %205 = vmatmul.mubr.bf16.gmra.mrb[0].mxu0 %v75
  %v206 = vpop.f32.mrb[0].mxu0
  %v207 = vadd.f32 0.0, %v206
  %v208 = vpop.f32.mrb[0].mxu0
  %v209 = vpop.f32.mrb[0].mxu0
  %v210 = vadd.f32 0.0, %v209
  %v211 = vpop.f32.mrb[0].mxu0
  %212 = vmatprep.mubr.bf16.mxu0 0
  %213 = vmatmul.mubr.bf16.gmra.mrb[0].mxu0 %v76
  %v214 = vpop.f32.mrb[0].mxu0
  %v215 = vadd.f32 0.0, %v214
  %v216 = vpop.f32.mrb[0].mxu0
  %v217 = vpop.f32.mrb[0].mxu0
  %v218 = vpop.f32.mrb[0].mxu0
  %219 = vdwg.mxu0
  %s220 = scalar_lea.vmem %s1, 64
  %v221 = vld [vmem:[%s220] sm:$0xf]
  %v222 = vld [vmem:[%s220 + $0x4] sm:$0xf]
  %v223 = vld [vmem:[%s220 + $0x8] sm:$0xf]
  %v224 = vld [vmem:[%s220 + $0xc] sm:$0xf]
  %v225 = vld [vmem:[%s220 + $0x10] sm:$0xf]
  %v226 = vld [vmem:[%s220 + $0x14] sm:$0xf]
  %v227 = vld [vmem:[%s220 + $0x18] sm:$0xf]
  %v228 = vld [vmem:[%s220 + $0x1c] sm:$0xf]
  %v229 = vld [vmem:[%s220 + $0x20] sm:$0xf]
  %v230 = vld [vmem:[%s220 + $0x24] sm:$0xf]
  %v231 = vld [vmem:[%s220 + $0x28] sm:$0xf]
  %v232 = vld [vmem:[%s220 + $0x2c] sm:$0xf]
  %v233 = vld [vmem:[%s220 + $0x30] sm:$0xf]
  %v234 = vld [vmem:[%s220 + $0x34] sm:$0xf]
  %v235 = vld [vmem:[%s220 + $0x38] sm:$0xf]
  %v236 = vld [vmem:[%s220 + $0x3c] sm:$0xf]
  %v253 = vunpack.c.l.b16 %v221
  %v254 = vunpack.c.l.b16 %v222
  %v255 = vunpack.c.l.b16 %v223
  %v256 = vunpack.c.l.b16 %v224
  %v257 = vunpack.c.l.b16 %v225
  %v258 = vunpack.c.l.b16 %v226
  %v259 = vunpack.c.l.b16 %v227
  %v260 = vunpack.c.l.b16 %v228
  %v261 = vunpack.c.l.b16 %v229
  %v262 = vunpack.c.l.b16 %v230
  %v263 = vunpack.c.l.b16 %v231
  %v264 = vunpack.c.l.b16 %v232
  %v265 = vunpack.c.l.b16 %v233
  %v266 = vunpack.c.l.b16 %v234
  %v267 = vunpack.c.l.b16 %v235
  %v268 = vunpack.c.l.b16 %v236
  %v269 = vpack.c.b16 %v254, %v253
  %v270 = vpack.c.b16 %v256, %v255
  %v271 = vpack.c.b16 %v258, %v257
  %v272 = vpack.c.b16 %v260, %v259
  %v273 = vpack.c.b16 %v262, %v261
  %v274 = vpack.c.b16 %v264, %v263
  %v275 = vpack.c.b16 %v266, %v265
  %v276 = vpack.c.b16 %v268, %v267
  %285 = vmatprep.subr.bf16.mxu0 0
  %286 = vmatpush1.bf16.msra.mxu0 %v269
  %287 = vmatprep.subr.bf16.mxu0 0
  %288 = vmatpush1.bf16.msra.mxu0 %v270
  %289 = vmatprep.subr.bf16.mxu0 0
  %290 = vmatpush1.bf16.msra.mxu0 %v271
  %291 = vmatprep.subr.bf16.mxu0 0
  %292 = vmatpush1.bf16.msra.mxu0 %v272
  %293 = vmatprep.subr.bf16.mxu0 0
  %294 = vmatpush1.bf16.msra.mxu0 %v273
  %295 = vmatprep.subr.bf16.mxu0 0
  %296 = vmatpush1.bf16.msra.mxu0 %v274
  %297 = vmatprep.subr.bf16.mxu0 0
  %298 = vmatpush1.bf16.msra.mxu0 %v275
  %299 = vmatprep.subr.bf16.mxu0 0
  %300 = vmatpush1.bf16.msra.mxu0 %v276
  %301 = vmatprep.subr.bf16.mxu0 0
  %302 = vmatpush1.bf16.msra.mxu0 0
  %303 = vmatprep.subr.bf16.mxu0 0
  %304 = vmatpush1.bf16.msra.mxu0 0
  %305 = vmatprep.subr.bf16.mxu0 0
  %306 = vmatpush1.bf16.msra.mxu0 0
  %307 = vmatprep.subr.bf16.mxu0 0
  %308 = vmatpush1.bf16.msra.mxu0 0
  %309 = vmatprep.subr.bf16.mxu0 0
  %310 = vmatpush1.bf16.msra.mxu0 0
  %311 = vmatprep.subr.bf16.mxu0 0
  %312 = vmatpush1.bf16.msra.mxu0 0
  %313 = vmatprep.subr.bf16.mxu0 0
  %314 = vmatpush1.bf16.msra.mxu0 0
  %315 = vmatprep.subr.bf16.mxu0 0
  %316 = vmatpush1.bf16.msra.mxu0 0
  %317 = vmatprep.mubr.bf16.mxu0 0
  %318 = vmatmul.mubr.bf16.gmra.mrb[0].mxu0 %v70
  %v319 = vpop.f32.mrb[0].mxu0
  %v320 = vadd.f32 0.0, %v319
  %v321 = vpop.f32.mrb[0].mxu0
  %v322 = vpop.f32.mrb[0].mxu0
  %v323 = vadd.f32 0.0, %v322
  %v324 = vpop.f32.mrb[0].mxu0
  %325 = vmatprep.mubr.bf16.mxu0 0
  %326 = vmatmul.mubr.bf16.gmra.mrb[0].mxu0 %v71
  %v327 = vpop.f32.mrb[0].mxu0
  %v328 = vadd.f32 0.0, %v327
  %v329 = vpop.f32.mrb[0].mxu0
  %v330 = vpop.f32.mrb[0].mxu0
  %v331 = vadd.f32 0.0, %v330
  %v332 = vpop.f32.mrb[0].mxu0
  %333 = vmatprep.mubr.bf16.mxu0 0
  %334 = vmatmul.mubr.bf16.gmra.mrb[0].mxu0 %v72
  %v335 = vpop.f32.mrb[0].mxu0
  %v336 = vadd.f32 0.0, %v335
  %v337 = vpop.f32.mrb[0].mxu0
  %v338 = vpop.f32.mrb[0].mxu0
  %v339 = vadd.f32 0.0, %v338
  %v340 = vpop.f32.mrb[0].mxu0
  %341 = vmatprep.mubr.bf16.mxu0 0
  %342 = vmatmul.mubr.bf16.gmra.mrb[0].mxu0 %v73
  %v343 = vpop.f32.mrb[0].mxu0
  %v344 = vadd.f32 0.0, %v343
  %v345 = vpop.f32.mrb[0].mxu0
  %v346 = vpop.f32.mrb[0].mxu0
  %v347 = vadd.f32 0.0, %v346
  %v348 = vpop.f32.mrb[0].mxu0
  %349 = vmatprep.mubr.bf16.mxu0 0
  %350 = vmatmul.mubr.bf16.gmra.mrb[0].mxu0 %v74
  %v351 = vpop.f32.mrb[0].mxu0
  %v352 = vadd.f32 0.0, %v351
  %v353 = vpop.f32.mrb[0].mxu0
  %v354 = vpop.f32.mrb[0].mxu0
  %v355 = vadd.f32 0.0, %v354
  %v356 = vpop.f32.mrb[0].mxu0
  %357 = vmatprep.mubr.bf16.mxu0 0
  %358 = vmatmul.mubr.bf16.gmra.mrb[0].mxu0 %v75
  %v359 = vpop.f32.mrb[0].mxu0
  %v360 = vadd.f32 0.0, %v359
  %v361 = vpop.f32.mrb[0].mxu0
  %v362 = vpop.f32.mrb[0].mxu0
  %v363 = vadd.f32 0.0, %v362
  %v364 = vpop.f32.mrb[0].mxu0
  %365 = vmatprep.mubr.bf16.mxu0 0
  %366 = vmatmul.mubr.bf16.gmra.mrb[0].mxu0 %v76
  %v367 = vpop.f32.mrb[0].mxu0
  %v368 = vadd.f32 0.0, %v367
  %v369 = vpop.f32.mrb[0].mxu0
  %v370 = vpop.f32.mrb[0].mxu0
  %v371 = vpop.f32.mrb[0].mxu0
  %372 = vdwg.mxu0
  %v373 = vmax.f32 %v167, %v320
  %v374 = vmax.f32 %v170, %v323
  %v375 = vmax.f32 %v175, %v328
  %v376 = vmax.f32 %v178, %v331
  %v377 = vmax.f32 %v183, %v336
  %v378 = vmax.f32 %v186, %v339
  %v379 = vmax.f32 %v191, %v344
  %v380 = vmax.f32 %v194, %v347
  %v381 = vmax.f32 %v199, %v352
  %v382 = vmax.f32 %v202, %v355
  %v383 = vmax.f32 %v207, %v360
  %v384 = vmax.f32 %v210, %v363
  %v385 = vmax.f32 %v215, %v368
  %s386 = scalar_lea.vmem %s1, 128
  %v387 = vld [vmem:[%s386] sm:$0xf]
  %v388 = vld [vmem:[%s386 + $0x4] sm:$0xf]
  %v389 = vld [vmem:[%s386 + $0x8] sm:$0xf]
  %v390 = vld [vmem:[%s386 + $0xc] sm:$0xf]
  %v391 = vld [vmem:[%s386 + $0x10] sm:$0xf]
  %v392 = vld [vmem:[%s386 + $0x14] sm:$0xf]
  %v393 = vld [vmem:[%s386 + $0x18] sm:$0xf]
  %v394 = vld [vmem:[%s386 + $0x1c] sm:$0xf]
  %v395 = vld [vmem:[%s386 + $0x20] sm:$0xf]
  %v396 = vld [vmem:[%s386 + $0x24] sm:$0xf]
  %v397 = vld [vmem:[%s386 + $0x28] sm:$0xf]
  %v398 = vld [vmem:[%s386 + $0x2c] sm:$0xf]
  %v399 = vld [vmem:[%s386 + $0x30] sm:$0xf]
  %v400 = vld [vmem:[%s386 + $0x34] sm:$0xf]
  %v401 = vld [vmem:[%s386 + $0x38] sm:$0xf]
  %v402 = vld [vmem:[%s386 + $0x3c] sm:$0xf]
  %v419 = vunpack.c.l.b16 %v387
  %v420 = vunpack.c.l.b16 %v388
  %v421 = vunpack.c.l.b16 %v389
  %v422 = vunpack.c.l.b16 %v390
  %v423 = vunpack.c.l.b16 %v391
  %v424 = vunpack.c.l.b16 %v392
  %v425 = vunpack.c.l.b16 %v393
  %v426 = vunpack.c.l.b16 %v394
  %v427 = vunpack.c.l.b16 %v395
  %v428 = vunpack.c.l.b16 %v396
  %v429 = vunpack.c.l.b16 %v397
  %v430 = vunpack.c.l.b16 %v398
  %v431 = vunpack.c.l.b16 %v399
  %v432 = vunpack.c.l.b16 %v400
  %v433 = vunpack.c.l.b16 %v401
  %v434 = vunpack.c.l.b16 %v402
  %v435 = vpack.c.b16 %v420, %v419
  %v436 = vpack.c.b16 %v422, %v421
  %v437 = vpack.c.b16 %v424, %v423
  %v438 = vpack.c.b16 %v426, %v425
  %v439 = vpack.c.b16 %v428, %v427
  %v440 = vpack.c.b16 %v430, %v429
  %v441 = vpack.c.b16 %v432, %v431
  %v442 = vpack.c.b16 %v434, %v433
  %451 = vmatprep.subr.bf16.mxu0 0
  %452 = vmatpush1.bf16.msra.mxu0 %v435
  %453 = vmatprep.subr.bf16.mxu0 0
  %454 = vmatpush1.bf16.msra.mxu0 %v436
  %455 = vmatprep.subr.bf16.mxu0 0
  %456 = vmatpush1.bf16.msra.mxu0 %v437
  %457 = vmatprep.subr.bf16.mxu0 0
  %458 = vmatpush1.bf16.msra.mxu0 %v438
  %459 = vmatprep.subr.bf16.mxu0 0
  %460 = vmatpush1.bf16.msra.mxu0 %v439
  %461 = vmatprep.subr.bf16.mxu0 0
  %462 = vmatpush1.bf16.msra.mxu0 %v440
  %463 = vmatprep.subr.bf16.mxu0 0
  %464 = vmatpush1.bf16.msra.mxu0 %v441
  %465 = vmatprep.subr.bf16.mxu0 0
  %466 = vmatpush1.bf16.msra.mxu0 %v442
  %467 = vmatprep.subr.bf16.mxu0 0
  %468 = vmatpush1.bf16.msra.mxu0 0
  %469 = vmatprep.subr.bf16.mxu0 0
  %470 = vmatpush1.bf16.msra.mxu0 0
  %471 = vmatprep.subr.bf16.mxu0 0
  %472 = vmatpush1.bf16.msra.mxu0 0
  %473 = vmatprep.subr.bf16.mxu0 0
  %474 = vmatpush1.bf16.msra.mxu0 0
  %475 = vmatprep.subr.bf16.mxu0 0
  %476 = vmatpush1.bf16.msra.mxu0 0
  %477 = vmatprep.subr.bf16.mxu0 0
  %478 = vmatpush1.bf16.msra.mxu0 0
  %479 = vmatprep.subr.bf16.mxu0 0
  %480 = vmatpush1.bf16.msra.mxu0 0
  %481 = vmatprep.subr.bf16.mxu0 0
  %482 = vmatpush1.bf16.msra.mxu0 0
  %483 = vmatprep.mubr.bf16.mxu0 0
  %484 = vmatmul.mubr.bf16.gmra.mrb[0].mxu0 %v70
  %v485 = vpop.f32.mrb[0].mxu0
  %v486 = vadd.f32 0.0, %v485
  %v487 = vpop.f32.mrb[0].mxu0
  %v488 = vpop.f32.mrb[0].mxu0
  %v489 = vadd.f32 0.0, %v488
  %v490 = vpop.f32.mrb[0].mxu0
  %491 = vmatprep.mubr.bf16.mxu0 0
  %492 = vmatmul.mubr.bf16.gmra.mrb[0].mxu0 %v71
  %v493 = vpop.f32.mrb[0].mxu0
  %v494 = vadd.f32 0.0, %v493
  %v495 = vpop.f32.mrb[0].mxu0
  %v496 = vpop.f32.mrb[0].mxu0
  %v497 = vadd.f32 0.0, %v496
  %v498 = vpop.f32.mrb[0].mxu0
  %499 = vmatprep.mubr.bf16.mxu0 0
  %500 = vmatmul.mubr.bf16.gmra.mrb[0].mxu0 %v72
  %v501 = vpop.f32.mrb[0].mxu0
  %v502 = vadd.f32 0.0, %v501
  %v503 = vpop.f32.mrb[0].mxu0
  %v504 = vpop.f32.mrb[0].mxu0
  %v505 = vadd.f32 0.0, %v504
  %v506 = vpop.f32.mrb[0].mxu0
  %507 = vmatprep.mubr.bf16.mxu0 0
  %508 = vmatmul.mubr.bf16.gmra.mrb[0].mxu0 %v73
  %v509 = vpop.f32.mrb[0].mxu0
  %v510 = vadd.f32 0.0, %v509
  %v511 = vpop.f32.mrb[0].mxu0
  %v512 = vpop.f32.mrb[0].mxu0
  %v513 = vadd.f32 0.0, %v512
  %v514 = vpop.f32.mrb[0].mxu0
  %515 = vmatprep.mubr.bf16.mxu0 0
  %516 = vmatmul.mubr.bf16.gmra.mrb[0].mxu0 %v74
  %v517 = vpop.f32.mrb[0].mxu0
  %v518 = vadd.f32 0.0, %v517
  %v519 = vpop.f32.mrb[0].mxu0
  %v520 = vpop.f32.mrb[0].mxu0
  %v521 = vadd.f32 0.0, %v520
  %v522 = vpop.f32.mrb[0].mxu0
  %523 = vmatprep.mubr.bf16.mxu0 0
  %524 = vmatmul.mubr.bf16.gmra.mrb[0].mxu0 %v75
  %v525 = vpop.f32.mrb[0].mxu0
  %v526 = vadd.f32 0.0, %v525
  %v527 = vpop.f32.mrb[0].mxu0
  %v528 = vpop.f32.mrb[0].mxu0
  %v529 = vadd.f32 0.0, %v528
  %v530 = vpop.f32.mrb[0].mxu0
  %531 = vmatprep.mubr.bf16.mxu0 0
  %532 = vmatmul.mubr.bf16.gmra.mrb[0].mxu0 %v76
  %v533 = vpop.f32.mrb[0].mxu0
  %v534 = vadd.f32 0.0, %v533
  %v535 = vpop.f32.mrb[0].mxu0
  %v536 = vpop.f32.mrb[0].mxu0
  %v537 = vpop.f32.mrb[0].mxu0
  %538 = vdwg.mxu0
  %v539 = vmax.f32 %v373, %v486
  %v540 = vmax.f32 %v374, %v489
  %v541 = vmax.f32 %v375, %v494
  %v542 = vmax.f32 %v376, %v497
  %v543 = vmax.f32 %v377, %v502
  %v544 = vmax.f32 %v378, %v505
  %v545 = vmax.f32 %v379, %v510
  %v546 = vmax.f32 %v380, %v513
  %v547 = vmax.f32 %v381, %v518
  %v548 = vmax.f32 %v382, %v521
  %v549 = vmax.f32 %v383, %v526
  %v550 = vmax.f32 %v384, %v529
  %v551 = vmax.f32 %v385, %v534
  %s552 = scalar_lea.vmem %s1, 192
  %v553 = vld [vmem:[%s552] sm:$0xf]
  %v554 = vld [vmem:[%s552 + $0x4] sm:$0xf]
  %v555 = vld [vmem:[%s552 + $0x8] sm:$0xf]
  %v556 = vld [vmem:[%s552 + $0xc] sm:$0xf]
  %v557 = vld [vmem:[%s552 + $0x10] sm:$0xf]
  %v558 = vld [vmem:[%s552 + $0x14] sm:$0xf]
  %v559 = vld [vmem:[%s552 + $0x18] sm:$0xf]
  %v560 = vld [vmem:[%s552 + $0x1c] sm:$0xf]
  %v561 = vld [vmem:[%s552 + $0x20] sm:$0xf]
  %v562 = vld [vmem:[%s552 + $0x24] sm:$0xf]
  %v563 = vld [vmem:[%s552 + $0x28] sm:$0xf]
  %v564 = vld [vmem:[%s552 + $0x2c] sm:$0xf]
  %v565 = vld [vmem:[%s552 + $0x30] sm:$0xf]
  %v566 = vld [vmem:[%s552 + $0x34] sm:$0xf]
  %v567 = vld [vmem:[%s552 + $0x38] sm:$0xf]
  %v568 = vld [vmem:[%s552 + $0x3c] sm:$0xf]
  %v585 = vunpack.c.l.b16 %v553
  %v586 = vunpack.c.l.b16 %v554
  %v587 = vunpack.c.l.b16 %v555
  %v588 = vunpack.c.l.b16 %v556
  %v589 = vunpack.c.l.b16 %v557
  %v590 = vunpack.c.l.b16 %v558
  %v591 = vunpack.c.l.b16 %v559
  %v592 = vunpack.c.l.b16 %v560
  %v593 = vunpack.c.l.b16 %v561
  %v594 = vunpack.c.l.b16 %v562
  %v595 = vunpack.c.l.b16 %v563
  %v596 = vunpack.c.l.b16 %v564
  %v597 = vunpack.c.l.b16 %v565
  %v598 = vunpack.c.l.b16 %v566
  %v599 = vunpack.c.l.b16 %v567
  %v600 = vunpack.c.l.b16 %v568
  %v601 = vpack.c.b16 %v586, %v585
  %v602 = vpack.c.b16 %v588, %v587
  %v603 = vpack.c.b16 %v590, %v589
  %v604 = vpack.c.b16 %v592, %v591
  %v605 = vpack.c.b16 %v594, %v593
  %v606 = vpack.c.b16 %v596, %v595
  %v607 = vpack.c.b16 %v598, %v597
  %v608 = vpack.c.b16 %v600, %v599
  %617 = vmatprep.subr.bf16.mxu0 0
  %618 = vmatpush1.bf16.msra.mxu0 %v601
  %619 = vmatprep.subr.bf16.mxu0 0
  %620 = vmatpush1.bf16.msra.mxu0 %v602
  %621 = vmatprep.subr.bf16.mxu0 0
  %622 = vmatpush1.bf16.msra.mxu0 %v603
  %623 = vmatprep.subr.bf16.mxu0 0
  %624 = vmatpush1.bf16.msra.mxu0 %v604
  %625 = vmatprep.subr.bf16.mxu0 0
  %626 = vmatpush1.bf16.msra.mxu0 %v605
  %627 = vmatprep.subr.bf16.mxu0 0
  %628 = vmatpush1.bf16.msra.mxu0 %v606
  %629 = vmatprep.subr.bf16.mxu0 0
  %630 = vmatpush1.bf16.msra.mxu0 %v607
  %631 = vmatprep.subr.bf16.mxu0 0
  %632 = vmatpush1.bf16.msra.mxu0 %v608
  %633 = vmatprep.subr.bf16.mxu0 0
  %634 = vmatpush1.bf16.msra.mxu0 0
  %635 = vmatprep.subr.bf16.mxu0 0
  %636 = vmatpush1.bf16.msra.mxu0 0
  %637 = vmatprep.subr.bf16.mxu0 0
  %638 = vmatpush1.bf16.msra.mxu0 0
  %639 = vmatprep.subr.bf16.mxu0 0
  %640 = vmatpush1.bf16.msra.mxu0 0
  %641 = vmatprep.subr.bf16.mxu0 0
  %642 = vmatpush1.bf16.msra.mxu0 0
  %643 = vmatprep.subr.bf16.mxu0 0
  %644 = vmatpush1.bf16.msra.mxu0 0
  %645 = vmatprep.subr.bf16.mxu0 0
  %646 = vmatpush1.bf16.msra.mxu0 0
  %647 = vmatprep.subr.bf16.mxu0 0
  %648 = vmatpush1.bf16.msra.mxu0 0
  %649 = vmatprep.mubr.bf16.mxu0 0
  %650 = vmatmul.mubr.bf16.gmra.mrb[0].mxu0 %v70
  %v651 = vpop.f32.mrb[0].mxu0
  %v652 = vadd.f32 0.0, %v651
  %v653 = vpop.f32.mrb[0].mxu0
  %v654 = vpop.f32.mrb[0].mxu0
  %v655 = vadd.f32 0.0, %v654
  %v656 = vpop.f32.mrb[0].mxu0
  %657 = vmatprep.mubr.bf16.mxu0 0
  %658 = vmatmul.mubr.bf16.gmra.mrb[0].mxu0 %v71
  %v659 = vpop.f32.mrb[0].mxu0
  %v660 = vadd.f32 0.0, %v659
  %v661 = vpop.f32.mrb[0].mxu0
  %v662 = vpop.f32.mrb[0].mxu0
  %v663 = vadd.f32 0.0, %v662
  %v664 = vpop.f32.mrb[0].mxu0
  %665 = vmatprep.mubr.bf16.mxu0 0
  %666 = vmatmul.mubr.bf16.gmra.mrb[0].mxu0 %v72
  %v667 = vpop.f32.mrb[0].mxu0
  %v668 = vadd.f32 0.0, %v667
  %v669 = vpop.f32.mrb[0].mxu0
  %v670 = vpop.f32.mrb[0].mxu0
  %v671 = vadd.f32 0.0, %v670
  %v672 = vpop.f32.mrb[0].mxu0
  %673 = vmatprep.mubr.bf16.mxu0 0
  %674 = vmatmul.mubr.bf16.gmra.mrb[0].mxu0 %v73
  %v675 = vpop.f32.mrb[0].mxu0
  %v676 = vadd.f32 0.0, %v675
  %v677 = vpop.f32.mrb[0].mxu0
  %v678 = vpop.f32.mrb[0].mxu0
  %v679 = vadd.f32 0.0, %v678
  %v680 = vpop.f32.mrb[0].mxu0
  %681 = vmatprep.mubr.bf16.mxu0 0
  %682 = vmatmul.mubr.bf16.gmra.mrb[0].mxu0 %v74
  %v683 = vpop.f32.mrb[0].mxu0
  %v684 = vadd.f32 0.0, %v683
  %v685 = vpop.f32.mrb[0].mxu0
  %v686 = vpop.f32.mrb[0].mxu0
  %v687 = vadd.f32 0.0, %v686
  %v688 = vpop.f32.mrb[0].mxu0
  %689 = vmatprep.mubr.bf16.mxu0 0
  %690 = vmatmul.mubr.bf16.gmra.mrb[0].mxu0 %v75
  %v691 = vpop.f32.mrb[0].mxu0
  %v692 = vadd.f32 0.0, %v691
  %v693 = vpop.f32.mrb[0].mxu0
  %v694 = vpop.f32.mrb[0].mxu0
  %v695 = vadd.f32 0.0, %v694
  %v696 = vpop.f32.mrb[0].mxu0
  %697 = vmatprep.mubr.bf16.mxu0 0
  %698 = vmatmul.mubr.bf16.gmra.mrb[0].mxu0 %v76
  %v699 = vpop.f32.mrb[0].mxu0
  %v700 = vadd.f32 0.0, %v699
  %v701 = vpop.f32.mrb[0].mxu0
  %v702 = vpop.f32.mrb[0].mxu0
  %v703 = vpop.f32.mrb[0].mxu0
  %704 = vdwg.mxu0
  %v705 = vmax.f32 %v539, %v652
  %v706 = vmax.f32 %v540, %v655
  %v707 = vmax.f32 %v541, %v660
  %v708 = vmax.f32 %v542, %v663
  %v709 = vmax.f32 %v543, %v668
  %v710 = vmax.f32 %v544, %v671
  %v711 = vmax.f32 %v545, %v676
  %v712 = vmax.f32 %v546, %v679
  %v713 = vmax.f32 %v547, %v684
  %v714 = vmax.f32 %v548, %v687
  %v715 = vmax.f32 %v549, %v692
  %v716 = vmax.f32 %v550, %v695
  %v717 = vmax.f32 %v551, %v700
  %v718 = vld [vmem:[%s2] sm:$0x1]
  %v720 = vlaneseq
  %v721 = vshrl.u32 %v720, 7
  %v722 = vsub.s32 0, %v721
  %v723 = vrot.slane %v718, %v722
  %v725 = vadd.f32 %v705, %v723
  %v726 = vadd.f32 %v706, %v723
  %v727 = vadd.f32 %v707, %v723
  %v728 = vadd.f32 %v708, %v723
  %v729 = vadd.f32 %v709, %v723
  %v730 = vadd.f32 %v710, %v723
  %v731 = vadd.f32 %v711, %v723
  %v732 = vadd.f32 %v712, %v723
  %v733 = vadd.f32 %v713, %v723
  %v734 = vadd.f32 %v714, %v723
  %v735 = vadd.f32 %v715, %v723
  %v736 = vadd.f32 %v716, %v723
  %v737 = vadd.f32 %v717, %v723
  %v738 = vmax.f32 %v725, 0.0
  %v739 = vmax.f32 %v726, 0.0
  %v740 = vmax.f32 %v727, 0.0
  %v741 = vmax.f32 %v728, 0.0
  %v742 = vmax.f32 %v729, 0.0
  %v743 = vmax.f32 %v730, 0.0
  %v744 = vmax.f32 %v731, 0.0
  %v745 = vmax.f32 %v732, 0.0
  %v746 = vmax.f32 %v733, 0.0
  %v747 = vmax.f32 %v734, 0.0
  %v748 = vmax.f32 %v735, 0.0
  %v749 = vmax.f32 %v736, 0.0
  %v750 = vmax.f32 %v737, 0.0
  %v751 = vpack.c.bf16 %v739, %v738
  %v752 = vpack.c.bf16 %v741, %v740
  %v753 = vpack.c.bf16 %v743, %v742
  %v754 = vpack.c.bf16 %v745, %v744
  %v755 = vpack.c.bf16 %v747, %v746
  %v756 = vpack.c.bf16 %v749, %v748
  %v757 = vpack.c.bf16 %v750, %v750
  %v765 = vunpack.c.l.b16 %v751
  %v766 = vunpack.c.h.b16 %v751
  %v767 = vunpack.c.l.b16 %v752
  %v768 = vunpack.c.h.b16 %v752
  %v769 = vunpack.c.l.b16 %v753
  %v770 = vunpack.c.h.b16 %v753
  %v771 = vunpack.c.l.b16 %v754
  %v772 = vunpack.c.h.b16 %v754
  %v773 = vunpack.c.l.b16 %v755
  %v774 = vunpack.c.h.b16 %v755
  %v775 = vunpack.c.l.b16 %v756
  %v776 = vunpack.c.h.b16 %v756
  %v777 = vunpack.c.l.b16 %v757
  %v778 = vpack.c.b16 %v765, %v765
  %v779 = vpack.c.b16 %v766, %v766
  %v780 = vpack.c.b16 %v767, %v767
  %v781 = vpack.c.b16 %v768, %v768
  %v782 = vpack.c.b16 %v769, %v769
  %v783 = vpack.c.b16 %v770, %v770
  %v784 = vpack.c.b16 %v771, %v771
  %v785 = vpack.c.b16 %v772, %v772
  %v786 = vpack.c.b16 %v773, %v773
  %v787 = vpack.c.b16 %v774, %v774
  %v788 = vpack.c.b16 %v775, %v775
  %v789 = vpack.c.b16 %v776, %v776
  %v790 = vpack.c.b16 %v777, %v777
  %vm804 = vcmask 257024
  %805 = vst.msk [vmem:[%s3] sm:$0xf] %vm804, %v778
  %806 = vst.msk [vmem:[%s3 + $0x4] sm:$0xf] %vm804, %v779
  %807 = vst.msk [vmem:[%s3 + $0x8] sm:$0xf] %vm804, %v780
  %808 = vst.msk [vmem:[%s3 + $0xc] sm:$0xf] %vm804, %v781
  %809 = vst.msk [vmem:[%s3 + $0x10] sm:$0xf] %vm804, %v782
  %810 = vst.msk [vmem:[%s3 + $0x14] sm:$0xf] %vm804, %v783
  %811 = vst.msk [vmem:[%s3 + $0x18] sm:$0xf] %vm804, %v784
  %812 = vst.msk [vmem:[%s3 + $0x1c] sm:$0xf] %vm804, %v785
  %813 = vst.msk [vmem:[%s3 + $0x20] sm:$0xf] %vm804, %v786
  %814 = vst.msk [vmem:[%s3 + $0x24] sm:$0xf] %vm804, %v787
  %815 = vst.msk [vmem:[%s3 + $0x28] sm:$0xf] %vm804, %v788
  %816 = vst.msk [vmem:[%s3 + $0x2c] sm:$0xf] %vm804, %v789
  %vm817 = vcmask 253952
  %818 = vst.msk [vmem:[%s3 + $0x30] sm:$0x1] %vm817, %v790
  // Predicated region
  $region14: #{_lambda_.4} parent=0 // pred_check
    _
  $region15: #{_lambda_.4} parent=0 // pred_check_branch
    %820 = sbr.rel (0) target = $region17
  $region16: #{_lambda_.4} parent=0 // pred_region
    _
  $region17: #{_lambda_.4} parent=0 // pred_fallthru
    _
  // Predicated region
  $region18: #{_lambda_.4} parent=0 // pred_check
    _
  $region19: #{_lambda_.4} parent=0 // pred_check_branch
    %822 = sbr.rel (0) target = $region21
  $region20: #{_lambda_.4} parent=0 // pred_region
    _
  $region21: #{_lambda_.4} parent=0 // pred_fallthru
    _

// kernel: _lambda_.5
$region0: #{_lambda_.5}
  #allocation0 [shape = 'u32[]', space=smem, size = 0x4, offset = 0x4, fixed_abs, tag = 'smem constant byte address 0x4 - core index']
  #allocation1 [shape = 'u32[144,128]{1,0:T(1,128)}', space=vmem, size = 0x12000, scoped, tag = 'internal scratch']
  %s0 = inlined_call_operand.vmem [shape: bf16[2,1568], index: 0, kind: input, shape index: {}]
  %s1 = inlined_call_operand.vmem [shape: bf16[1568,128], index: 1, kind: input, shape index: {}]
  %s2 = inlined_call_operand.vmem [shape: f32[1,128], index: 2, kind: input, shape index: {}]
  %s3 = inlined_call_operand.vmem [shape: bf16[128,10], index: 3, kind: input, shape index: {}]
  %s4 = inlined_call_operand.vmem [shape: f32[1,10], index: 4, kind: input, shape index: {}]
  %s5 = inlined_call_operand.hbm [shape: f32[2,10], index: 5, kind: output, shape index: {}]
  %s6 = sld [smem:[#allocation0]]
  $region30: #{_lambda_.5} parent=0
    _
  %s8 = ssub.s32 1, %s6
  %s9 = scalar_select 0, %s8, %s6
  $region1: #{_lambda_.5} parent=0
    #allocation2 [shape = 'u8[1024]{0}', space=vmem, size = 0x400, scoped, tag = 'output window, operand 0, single buffered']
    #allocation3 [shape = 's32[1]{0}', space=sflag, size = 0x4, scoped, tag = 'scoped memory for _lambda_.5']
    %10 = vsyncpa [#allocation3], 0
    // Predicated region
    $region2: #{_lambda_.5} parent=1 // pred_check
      _
    $region3: #{_lambda_.5} parent=1 // pred_check_branch
      %12 = sbr.rel (0) target = $region5
    $region4: #{_lambda_.5} parent=1 // pred_region
      _
    $region5: #{_lambda_.5} parent=1 // pred_fallthru
      _
    // Predicated region
    $region6: #{_lambda_.5} parent=1 // pred_check
      _
    $region7: #{_lambda_.5} parent=1 // pred_check_branch
      %14 = sbr.rel (0) target = $region9
    $region8: #{_lambda_.5} parent=1 // pred_region
      _
    $region9: #{_lambda_.5} parent=1 // pred_fallthru
      _
    // Predicated region
    $region10: #{_lambda_.5} parent=1 // pred_check
      _
    $region11: #{_lambda_.5} parent=1 // pred_check_branch
      %16 = sbr.rel (0) target = $region13
    $region12: #{_lambda_.5} parent=1 // pred_region
      _
    $region13: #{_lambda_.5} parent=1 // pred_fallthru
      _
    // Predicated region
    $region14: #{_lambda_.5} parent=1 // pred_check
      _
    $region15: #{_lambda_.5} parent=1 // pred_check_branch
      %18 = sbr.rel (0) target = $region17
    $region16: #{_lambda_.5} parent=1 // pred_region
      _
    $region17: #{_lambda_.5} parent=1 // pred_fallthru
      _
    // Predicated region
    $region18: #{_lambda_.5} parent=1 // pred_check
      _
    $region19: #{_lambda_.5} parent=1 // pred_check_branch
      %20 = sbr.rel (0) target = $region21
    $region20: #{_lambda_.5} parent=1 // pred_region
      _
    $region21: #{_lambda_.5} parent=1 // pred_fallthru
      _
    %v22 = vld [vmem:[%s0] sm:$0xff]
    %v23 = vld [vmem:[%s0 + $0x8] sm:$0x1f]
    %v24 = vld [vmem:[%s1] sm:$0xf]
    %v25 = vld [vmem:[%s1 + $0x4] sm:$0xf]
    %v26 = vld [vmem:[%s1 + $0x8] sm:$0xf]
    %v27 = vld [vmem:[%s1 + $0xc] sm:$0xf]
    %v28 = vld [vmem:[%s1 + $0x10] sm:$0xf]
    %v29 = vld [vmem:[%s1 + $0x14] sm:$0xf]
    %v30 = vld [vmem:[%s1 + $0x18] sm:$0xf]
    %v31 = vld [vmem:[%s1 + $0x1c] sm:$0xf]
    %v32 = vld [vmem:[%s1 + $0x20] sm:$0xf]
    %v33 = vld [vmem:[%s1 + $0x24] sm:$0xf]
    %v34 = vld [vmem:[%s1 + $0x28] sm:$0xf]
    %v35 = vld [vmem:[%s1 + $0x2c] sm:$0xf]
    %v36 = vld [vmem:[%s1 + $0x30] sm:$0xf]
    %v37 = vld [vmem:[%s1 + $0x34] sm:$0xf]
    %v38 = vld [vmem:[%s1 + $0x38] sm:$0xf]
    %v39 = vld [vmem:[%s1 + $0x3c] sm:$0xf]
    %v40 = vld [vmem:[%s1 + $0x40] sm:$0xf]
    %v41 = vld [vmem:[%s1 + $0x44] sm:$0xf]
    %v42 = vld [vmem:[%s1 + $0x48] sm:$0xf]
    %v43 = vld [vmem:[%s1 + $0x4c] sm:$0xf]
    %v44 = vld [vmem:[%s1 + $0x50] sm:$0xf]
    %v45 = vld [vmem:[%s1 + $0x54] sm:$0xf]
    %v46 = vld [vmem:[%s1 + $0x58] sm:$0xf]
    %v47 = vld [vmem:[%s1 + $0x5c] sm:$0xf]
    %v48 = vld [vmem:[%s1 + $0x60] sm:$0xf]
    %v49 = vld [vmem:[%s1 + $0x64] sm:$0xf]
    %v50 = vld [vmem:[%s1 + $0x68] sm:$0xf]
    %v51 = vld [vmem:[%s1 + $0x6c] sm:$0xf]
    %v52 = vld [vmem:[%s1 + $0x70] sm:$0xf]
    %v53 = vld [vmem:[%s1 + $0x74] sm:$0xf]
    %v54 = vld [vmem:[%s1 + $0x78] sm:$0xf]
    %v55 = vld [vmem:[%s1 + $0x7c] sm:$0xf]
    %v56 = vld [vmem:[%s1 + $0x80] sm:$0xf]
    %v57 = vld [vmem:[%s1 + $0x84] sm:$0xf]
    %v58 = vld [vmem:[%s1 + $0x88] sm:$0xf]
    %v59 = vld [vmem:[%s1 + $0x8c] sm:$0xf]
    %v60 = vld [vmem:[%s1 + $0x90] sm:$0xf]
    %v61 = vld [vmem:[%s1 + $0x94] sm:$0xf]
    %v62 = vld [vmem:[%s1 + $0x98] sm:$0xf]
    %v63 = vld [vmem:[%s1 + $0x9c] sm:$0xf]
    %v64 = vld [vmem:[%s1 + $0xa0] sm:$0xf]
    %v65 = vld [vmem:[%s1 + $0xa4] sm:$0xf]
    %v66 = vld [vmem:[%s1 + $0xa8] sm:$0xf]
    %v67 = vld [vmem:[%s1 + $0xac] sm:$0xf]
    %v68 = vld [vmem:[%s1 + $0xb0] sm:$0xf]
    %v69 = vld [vmem:[%s1 + $0xb4] sm:$0xf]
    %v70 = vld [vmem:[%s1 + $0xb8] sm:$0xf]
    %v71 = vld [vmem:[%s1 + $0xbc] sm:$0xf]
    %v72 = vld [vmem:[%s1 + $0xc0] sm:$0xf]
    %v73 = vld [vmem:[%s1 + $0xc4] sm:$0xf]
    %v74 = vld [vmem:[%s1 + $0xc8] sm:$0xf]
    %v75 = vld [vmem:[%s1 + $0xcc] sm:$0xf]
    %v76 = vld [vmem:[%s1 + $0xd0] sm:$0xf]
    %v77 = vld [vmem:[%s1 + $0xd4] sm:$0xf]
    %v78 = vld [vmem:[%s1 + $0xd8] sm:$0xf]
    %v79 = vld [vmem:[%s1 + $0xdc] sm:$0xf]
    %v80 = vld [vmem:[%s1 + $0xe0] sm:$0xf]
    %v81 = vld [vmem:[%s1 + $0xe4] sm:$0xf]
    %v82 = vld [vmem:[%s1 + $0xe8] sm:$0xf]
    %v83 = vld [vmem:[%s1 + $0xec] sm:$0xf]
    %v84 = vld [vmem:[%s1 + $0xf0] sm:$0xf]
    %v85 = vld [vmem:[%s1 + $0xf4] sm:$0xf]
    %v86 = vld [vmem:[%s1 + $0xf8] sm:$0xf]
    %v87 = vld [vmem:[%s1 + $0xfc] sm:$0xf]
    %v88 = vld [vmem:[%s1 + $0x100] sm:$0xf]
    %v89 = vld [vmem:[%s1 + $0x104] sm:$0xf]
    %v90 = vld [vmem:[%s1 + $0x108] sm:$0xf]
    %v91 = vld [vmem:[%s1 + $0x10c] sm:$0xf]
    %v92 = vld [vmem:[%s1 + $0x110] sm:$0xf]
    %v93 = vld [vmem:[%s1 + $0x114] sm:$0xf]
    %v94 = vld [vmem:[%s1 + $0x118] sm:$0xf]
    %v95 = vld [vmem:[%s1 + $0x11c] sm:$0xf]
    %v96 = vld [vmem:[%s1 + $0x120] sm:$0xf]
    %v97 = vld [vmem:[%s1 + $0x124] sm:$0xf]
    %v98 = vld [vmem:[%s1 + $0x128] sm:$0xf]
    %v99 = vld [vmem:[%s1 + $0x12c] sm:$0xf]
    %v100 = vld [vmem:[%s1 + $0x130] sm:$0xf]
    %v101 = vld [vmem:[%s1 + $0x134] sm:$0xf]
    %v102 = vld [vmem:[%s1 + $0x138] sm:$0xf]
    %v103 = vld [vmem:[%s1 + $0x13c] sm:$0xf]
    %v104 = vld [vmem:[%s1 + $0x140] sm:$0xf]
    %v105 = vld [vmem:[%s1 + $0x144] sm:$0xf]
    %v106 = vld [vmem:[%s1 + $0x148] sm:$0xf]
    %v107 = vld [vmem:[%s1 + $0x14c] sm:$0xf]
    %v108 = vld [vmem:[%s1 + $0x150] sm:$0xf]
    %v109 = vld [vmem:[%s1 + $0x154] sm:$0xf]
    %v110 = vld [vmem:[%s1 + $0x158] sm:$0xf]
    %v111 = vld [vmem:[%s1 + $0x15c] sm:$0xf]
    %v112 = vld [vmem:[%s1 + $0x160] sm:$0xf]
    %v113 = vld [vmem:[%s1 + $0x164] sm:$0xf]
    %v114 = vld [vmem:[%s1 + $0x168] sm:$0xf]
    %v115 = vld [vmem:[%s1 + $0x16c] sm:$0xf]
    %v116 = vld [vmem:[%s1 + $0x170] sm:$0xf]
    %v117 = vld [vmem:[%s1 + $0x174] sm:$0xf]
    %v118 = vld [vmem:[%s1 + $0x178] sm:$0xf]
    %v119 = vld [vmem:[%s1 + $0x17c] sm:$0xf]
    %v120 = vld [vmem:[%s1 + $0x180] sm:$0xf]
    %v121 = vld [vmem:[%s1 + $0x184] sm:$0xf]
    %v122 = vld [vmem:[%s1 + $0x188] sm:$0xf]
    %v123 = vld [vmem:[%s1 + $0x18c] sm:$0xf]
    %v124 = vld [vmem:[%s1 + $0x190] sm:$0xf]
    %v125 = vld [vmem:[%s1 + $0x194] sm:$0xf]
    %v126 = vld [vmem:[%s1 + $0x198] sm:$0xf]
    %v127 = vld [vmem:[%s1 + $0x19c] sm:$0xf]
    %v128 = vld [vmem:[%s1 + $0x1a0] sm:$0xf]
    %v129 = vld [vmem:[%s1 + $0x1a4] sm:$0xf]
    %v130 = vld [vmem:[%s1 + $0x1a8] sm:$0xf]
    %v131 = vld [vmem:[%s1 + $0x1ac] sm:$0xf]
    %v132 = vld [vmem:[%s1 + $0x1b0] sm:$0xf]
    %v133 = vld [vmem:[%s1 + $0x1b4] sm:$0xf]
    %v134 = vld [vmem:[%s1 + $0x1b8] sm:$0xf]
    %v135 = vld [vmem:[%s1 + $0x1bc] sm:$0xf]
    %v136 = vld [vmem:[%s1 + $0x1c0] sm:$0xf]
    %v137 = vld [vmem:[%s1 + $0x1c4] sm:$0xf]
    %v138 = vld [vmem:[%s1 + $0x1c8] sm:$0xf]
    %v139 = vld [vmem:[%s1 + $0x1cc] sm:$0xf]
    %v140 = vld [vmem:[%s1 + $0x1d0] sm:$0xf]
    %v141 = vld [vmem:[%s1 + $0x1d4] sm:$0xf]
    %v142 = vld [vmem:[%s1 + $0x1d8] sm:$0xf]
    %v143 = vld [vmem:[%s1 + $0x1dc] sm:$0xf]
    %v144 = vld [vmem:[%s1 + $0x1e0] sm:$0xf]
    %v145 = vld [vmem:[%s1 + $0x1e4] sm:$0xf]
    %v146 = vld [vmem:[%s1 + $0x1e8] sm:$0xf]
    %v147 = vld [vmem:[%s1 + $0x1ec] sm:$0xf]
    %v148 = vld [vmem:[%s1 + $0x1f0] sm:$0xf]
    %v149 = vld [vmem:[%s1 + $0x1f4] sm:$0xf]
    %v150 = vld [vmem:[%s1 + $0x1f8] sm:$0xf]
    %v151 = vld [vmem:[%s1 + $0x1fc] sm:$0xf]
    %v152 = vld [vmem:[%s1 + $0x200] sm:$0xf]
    %v153 = vld [vmem:[%s1 + $0x204] sm:$0xf]
    %v154 = vld [vmem:[%s1 + $0x208] sm:$0xf]
    %v155 = vld [vmem:[%s1 + $0x20c] sm:$0xf]
    %v156 = vld [vmem:[%s1 + $0x210] sm:$0xf]
    %v157 = vld [vmem:[%s1 + $0x214] sm:$0xf]
    %v158 = vld [vmem:[%s1 + $0x218] sm:$0xf]
    %v159 = vld [vmem:[%s1 + $0x21c] sm:$0xf]
    %v160 = vld [vmem:[%s1 + $0x220] sm:$0xf]
    %v161 = vld [vmem:[%s1 + $0x224] sm:$0xf]
    %v162 = vld [vmem:[%s1 + $0x228] sm:$0xf]
    %v163 = vld [vmem:[%s1 + $0x22c] sm:$0xf]
    %v164 = vld [vmem:[%s1 + $0x230] sm:$0xf]
    %v165 = vld [vmem:[%s1 + $0x234] sm:$0xf]
    %v166 = vld [vmem:[%s1 + $0x238] sm:$0xf]
    %v167 = vld [vmem:[%s1 + $0x23c] sm:$0xf]
    %v168 = vld [vmem:[%s1 + $0x240] sm:$0xf]
    %v169 = vld [vmem:[%s1 + $0x244] sm:$0xf]
    %v170 = vld [vmem:[%s1 + $0x248] sm:$0xf]
    %v171 = vld [vmem:[%s1 + $0x24c] sm:$0xf]
    %v172 = vld [vmem:[%s1 + $0x250] sm:$0xf]
    %v173 = vld [vmem:[%s1 + $0x254] sm:$0xf]
    %v174 = vld [vmem:[%s1 + $0x258] sm:$0xf]
    %v175 = vld [vmem:[%s1 + $0x25c] sm:$0xf]
    %v176 = vld [vmem:[%s1 + $0x260] sm:$0xf]
    %v177 = vld [vmem:[%s1 + $0x264] sm:$0xf]
    %v178 = vld [vmem:[%s1 + $0x268] sm:$0xf]
    %v179 = vld [vmem:[%s1 + $0x26c] sm:$0xf]
    %v180 = vld [vmem:[%s1 + $0x270] sm:$0xf]
    %v181 = vld [vmem:[%s1 + $0x274] sm:$0xf]
    %v182 = vld [vmem:[%s1 + $0x278] sm:$0xf]
    %v183 = vld [vmem:[%s1 + $0x27c] sm:$0xf]
    %v184 = vld [vmem:[%s1 + $0x280] sm:$0xf]
    %v185 = vld [vmem:[%s1 + $0x284] sm:$0xf]
    %v186 = vld [vmem:[%s1 + $0x288] sm:$0xf]
    %v187 = vld [vmem:[%s1 + $0x28c] sm:$0xf]
    %v188 = vld [vmem:[%s1 + $0x290] sm:$0xf]
    %v189 = vld [vmem:[%s1 + $0x294] sm:$0xf]
    %v190 = vld [vmem:[%s1 + $0x298] sm:$0xf]
    %v191 = vld [vmem:[%s1 + $0x29c] sm:$0xf]
    %v192 = vld [vmem:[%s1 + $0x2a0] sm:$0xf]
    %v193 = vld [vmem:[%s1 + $0x2a4] sm:$0xf]
    %v194 = vld [vmem:[%s1 + $0x2a8] sm:$0xf]
    %v195 = vld [vmem:[%s1 + $0x2ac] sm:$0xf]
    %v196 = vld [vmem:[%s1 + $0x2b0] sm:$0xf]
    %v197 = vld [vmem:[%s1 + $0x2b4] sm:$0xf]
    %v198 = vld [vmem:[%s1 + $0x2b8] sm:$0xf]
    %v199 = vld [vmem:[%s1 + $0x2bc] sm:$0xf]
    %v200 = vld [vmem:[%s1 + $0x2c0] sm:$0xf]
    %v201 = vld [vmem:[%s1 + $0x2c4] sm:$0xf]
    %v202 = vld [vmem:[%s1 + $0x2c8] sm:$0xf]
    %v203 = vld [vmem:[%s1 + $0x2cc] sm:$0xf]
    %v204 = vld [vmem:[%s1 + $0x2d0] sm:$0xf]
    %v205 = vld [vmem:[%s1 + $0x2d4] sm:$0xf]
    %v206 = vld [vmem:[%s1 + $0x2d8] sm:$0xf]
    %v207 = vld [vmem:[%s1 + $0x2dc] sm:$0xf]
    %v208 = vld [vmem:[%s1 + $0x2e0] sm:$0xf]
    %v209 = vld [vmem:[%s1 + $0x2e4] sm:$0xf]
    %v210 = vld [vmem:[%s1 + $0x2e8] sm:$0xf]
    %v211 = vld [vmem:[%s1 + $0x2ec] sm:$0xf]
    %v212 = vld [vmem:[%s1 + $0x2f0] sm:$0xf]
    %v213 = vld [vmem:[%s1 + $0x2f4] sm:$0xf]
    %v214 = vld [vmem:[%s1 + $0x2f8] sm:$0xf]
    %v215 = vld [vmem:[%s1 + $0x2fc] sm:$0xf]
    %v216 = vld [vmem:[%s1 + $0x300] sm:$0xf]
    %v217 = vld [vmem:[%s1 + $0x304] sm:$0xf]
    %v218 = vld [vmem:[%s1 + $0x308] sm:$0xf]
    %v219 = vld [vmem:[%s1 + $0x30c] sm:$0xf]
    %v220 = vld [vmem:[%s2] sm:$0x1]
    %v222 = vlaneseq
    %v223 = vshrl.u32 %v222, 7
    %v224 = vsub.s32 0, %v223
    %v225 = vrot.slane %v220, %v224
    %v229 = vcombine.high %v22, %v22
    %v231 = vunpack.c.l.s4 1966171168
    %v232 = vunpack.c.0.s8 %v231
    %v233 = vlaneseq
    %v234 = vshrl.u32 %v233, 7
    %v235 = vsub.s32 %v232, %v234
    %v236 = vrot.slane %v22, %v235
    %v238 = vunpack.c.l.s4 1966171168
    %v239 = vunpack.c.0.s8 %v238
    %v240 = vlaneseq
    %v241 = vshrl.u32 %v240, 7
    %v242 = vsub.s32 %v239, %v241
    %v243 = vrot.slane %v229, %v242
    %v244 = vcombine.high %v236, %v236
    %v245 = vcombine.high %v243, %v243
    %v247 = vunpack.c.l.s4 1966171168
    %v248 = vunpack.c.0.s8 %v247
    %v249 = vlaneseq
    %v250 = vshrl.u32 %v249, 7
    %v251 = vsub.s32 %v248, %v250
    %v252 = vrot.slane %v236, %v251
    %v254 = vunpack.c.l.s4 1966171168
    %v255 = vunpack.c.0.s8 %v254
    %v256 = vlaneseq
    %v257 = vshrl.u32 %v256, 7
    %v258 = vsub.s32 %v255, %v257
    %v259 = vrot.slane %v243, %v258
    %v261 = vunpack.c.l.s4 1966171168
    %v262 = vunpack.c.0.s8 %v261
    %v263 = vlaneseq
    %v264 = vshrl.u32 %v263, 7
    %v265 = vsub.s32 %v262, %v264
    %v266 = vrot.slane %v244, %v265
    %v268 = vunpack.c.l.s4 1966171168
    %v269 = vunpack.c.0.s8 %v268
    %v270 = vlaneseq
    %v271 = vshrl.u32 %v270, 7
    %v272 = vsub.s32 %v269, %v271
    %v273 = vrot.slane %v245, %v272
    %v274 = vcombine.high %v252, %v252
    %v275 = vcombine.high %v259, %v259
    %v276 = vcombine.high %v266, %v266
    %v277 = vcombine.high %v273, %v273
    %v278 = vcombine.high %v23, %v23
    %v280 = vunpack.c.l.s4 1966171168
    %v281 = vunpack.c.0.s8 %v280
    %v282 = vlaneseq
    %v283 = vshrl.u32 %v282, 7
    %v284 = vsub.s32 %v281, %v283
    %v285 = vrot.slane %v23, %v284
    %v287 = vunpack.c.l.s4 1966171168
    %v288 = vunpack.c.0.s8 %v287
    %v289 = vlaneseq
    %v290 = vshrl.u32 %v289, 7
    %v291 = vsub.s32 %v288, %v290
    %v292 = vrot.slane %v278, %v291
    %v293 = vcombine.high %v285, %v285
    %v295 = vunpack.c.l.s4 1966171168
    %v296 = vunpack.c.0.s8 %v295
    %v297 = vlaneseq
    %v298 = vshrl.u32 %v297, 7
    %v299 = vsub.s32 %v296, %v298
    %v300 = vrot.slane %v285, %v299
    %v302 = vunpack.c.l.s4 1966171168
    %v303 = vunpack.c.0.s8 %v302
    %v304 = vlaneseq
    %v305 = vshrl.u32 %v304, 7
    %v306 = vsub.s32 %v303, %v305
    %v307 = vrot.slane %v292, %v306
    %v309 = vunpack.c.l.s4 1966171168
    %v310 = vunpack.c.0.s8 %v309
    %v311 = vlaneseq
    %v312 = vshrl.u32 %v311, 7
    %v313 = vsub.s32 %v310, %v312
    %v314 = vrot.slane %v293, %v313
    %v315 = vcombine.high %v300, %v300
    %v316 = vcombine.high %v314, %v314
    %v525 = vunpack.c.l.b16 %v24
    %v526 = vunpack.c.l.b16 %v25
    %v527 = vunpack.c.l.b16 %v26
    %v528 = vunpack.c.l.b16 %v27
    %v529 = vunpack.c.l.b16 %v28
    %v530 = vunpack.c.l.b16 %v29
    %v531 = vunpack.c.l.b16 %v30
    %v532 = vunpack.c.l.b16 %v31
    %v533 = vunpack.c.l.b16 %v32
    %v534 = vunpack.c.l.b16 %v33
    %v535 = vunpack.c.l.b16 %v34
    %v536 = vunpack.c.l.b16 %v35
    %v537 = vunpack.c.l.b16 %v36
    %v538 = vunpack.c.l.b16 %v37
    %v539 = vunpack.c.l.b16 %v38
    %v540 = vunpack.c.l.b16 %v39
    %v541 = vunpack.c.l.b16 %v40
    %v542 = vunpack.c.l.b16 %v41
    %v543 = vunpack.c.l.b16 %v42
    %v544 = vunpack.c.l.b16 %v43
    %v545 = vunpack.c.l.b16 %v44
    %v546 = vunpack.c.l.b16 %v45
    %v547 = vunpack.c.l.b16 %v46
    %v548 = vunpack.c.l.b16 %v47
    %v549 = vunpack.c.l.b16 %v48
    %v550 = vunpack.c.l.b16 %v49
    %v551 = vunpack.c.l.b16 %v50
    %v552 = vunpack.c.l.b16 %v51
    %v553 = vunpack.c.l.b16 %v52
    %v554 = vunpack.c.l.b16 %v53
    %v555 = vunpack.c.l.b16 %v54
    %v556 = vunpack.c.l.b16 %v55
    %v557 = vunpack.c.l.b16 %v56
    %v558 = vunpack.c.l.b16 %v57
    %v559 = vunpack.c.l.b16 %v58
    %v560 = vunpack.c.l.b16 %v59
    %v561 = vunpack.c.l.b16 %v60
    %v562 = vunpack.c.l.b16 %v61
    %v563 = vunpack.c.l.b16 %v62
    %v564 = vunpack.c.l.b16 %v63
    %v565 = vunpack.c.l.b16 %v64
    %v566 = vunpack.c.l.b16 %v65
    %v567 = vunpack.c.l.b16 %v66
    %v568 = vunpack.c.l.b16 %v67
    %v569 = vunpack.c.l.b16 %v68
    %v570 = vunpack.c.l.b16 %v69
    %v571 = vunpack.c.l.b16 %v70
    %v572 = vunpack.c.l.b16 %v71
    %v573 = vunpack.c.l.b16 %v72
    %v574 = vunpack.c.l.b16 %v73
    %v575 = vunpack.c.l.b16 %v74
    %v576 = vunpack.c.l.b16 %v75
    %v577 = vunpack.c.l.b16 %v76
    %v578 = vunpack.c.l.b16 %v77
    %v579 = vunpack.c.l.b16 %v78
    %v580 = vunpack.c.l.b16 %v79
    %v581 = vunpack.c.l.b16 %v80
    %v582 = vunpack.c.l.b16 %v81
    %v583 = vunpack.c.l.b16 %v82
    %v584 = vunpack.c.l.b16 %v83
    %v585 = vunpack.c.l.b16 %v84
    %v586 = vunpack.c.l.b16 %v85
    %v587 = vunpack.c.l.b16 %v86
    %v588 = vunpack.c.l.b16 %v87
    %v589 = vunpack.c.l.b16 %v88
    %v590 = vunpack.c.l.b16 %v89
    %v591 = vunpack.c.l.b16 %v90
    %v592 = vunpack.c.l.b16 %v91
    %v593 = vunpack.c.l.b16 %v92
    %v594 = vunpack.c.l.b16 %v93
    %v595 = vunpack.c.l.b16 %v94
    %v596 = vunpack.c.l.b16 %v95
    %v597 = vunpack.c.l.b16 %v96
    %v598 = vunpack.c.l.b16 %v97
    %v599 = vunpack.c.l.b16 %v98
    %v600 = vunpack.c.l.b16 %v99
    %v601 = vunpack.c.l.b16 %v100
    %v602 = vunpack.c.l.b16 %v101
    %v603 = vunpack.c.l.b16 %v102
    %v604 = vunpack.c.l.b16 %v103
    %v605 = vunpack.c.l.b16 %v104
    %v606 = vunpack.c.l.b16 %v105
    %v607 = vunpack.c.l.b16 %v106
    %v608 = vunpack.c.l.b16 %v107
    %v609 = vunpack.c.l.b16 %v108
    %v610 = vunpack.c.l.b16 %v109
    %v611 = vunpack.c.l.b16 %v110
    %v612 = vunpack.c.l.b16 %v111
    %v613 = vunpack.c.l.b16 %v112
    %v614 = vunpack.c.l.b16 %v113
    %v615 = vunpack.c.l.b16 %v114
    %v616 = vunpack.c.l.b16 %v115
    %v617 = vunpack.c.l.b16 %v116
    %v618 = vunpack.c.l.b16 %v117
    %v619 = vunpack.c.l.b16 %v118
    %v620 = vunpack.c.l.b16 %v119
    %v621 = vunpack.c.l.b16 %v120
    %v622 = vunpack.c.l.b16 %v121
    %v623 = vunpack.c.l.b16 %v122
    %v624 = vunpack.c.l.b16 %v123
    %v625 = vunpack.c.l.b16 %v124
    %v626 = vunpack.c.l.b16 %v125
    %v627 = vunpack.c.l.b16 %v126
    %v628 = vunpack.c.l.b16 %v127
    %v629 = vunpack.c.l.b16 %v128
    %v630 = vunpack.c.l.b16 %v129
    %v631 = vunpack.c.l.b16 %v130
    %v632 = vunpack.c.l.b16 %v131
    %v633 = vunpack.c.l.b16 %v132
    %v634 = vunpack.c.l.b16 %v133
    %v635 = vunpack.c.l.b16 %v134
    %v636 = vunpack.c.l.b16 %v135
    %v637 = vunpack.c.l.b16 %v136
    %v638 = vunpack.c.l.b16 %v137
    %v639 = vunpack.c.l.b16 %v138
    %v640 = vunpack.c.l.b16 %v139
    %v641 = vunpack.c.l.b16 %v140
    %v642 = vunpack.c.l.b16 %v141
    %v643 = vunpack.c.l.b16 %v142
    %v644 = vunpack.c.l.b16 %v143
    %v645 = vunpack.c.l.b16 %v144
    %v646 = vunpack.c.l.b16 %v145
    %v647 = vunpack.c.l.b16 %v146
    %v648 = vunpack.c.l.b16 %v147
    %v649 = vunpack.c.l.b16 %v148
    %v650 = vunpack.c.l.b16 %v149
    %v651 = vunpack.c.l.b16 %v150
    %v652 = vunpack.c.l.b16 %v151
    %v653 = vunpack.c.l.b16 %v152
    %v654 = vunpack.c.l.b16 %v153
    %v655 = vunpack.c.l.b16 %v154
    %v656 = vunpack.c.l.b16 %v155
    %v657 = vunpack.c.l.b16 %v156
    %v658 = vunpack.c.l.b16 %v157
    %v659 = vunpack.c.l.b16 %v158
    %v660 = vunpack.c.l.b16 %v159
    %v661 = vunpack.c.l.b16 %v160
    %v662 = vunpack.c.l.b16 %v161
    %v663 = vunpack.c.l.b16 %v162
    %v664 = vunpack.c.l.b16 %v163
    %v665 = vunpack.c.l.b16 %v164
    %v666 = vunpack.c.l.b16 %v165
    %v667 = vunpack.c.l.b16 %v166
    %v668 = vunpack.c.l.b16 %v167
    %v669 = vunpack.c.l.b16 %v168
    %v670 = vunpack.c.l.b16 %v169
    %v671 = vunpack.c.l.b16 %v170
    %v672 = vunpack.c.l.b16 %v171
    %v673 = vunpack.c.l.b16 %v172
    %v674 = vunpack.c.l.b16 %v173
    %v675 = vunpack.c.l.b16 %v174
    %v676 = vunpack.c.l.b16 %v175
    %v677 = vunpack.c.l.b16 %v176
    %v678 = vunpack.c.l.b16 %v177
    %v679 = vunpack.c.l.b16 %v178
    %v680 = vunpack.c.l.b16 %v179
    %v681 = vunpack.c.l.b16 %v180
    %v682 = vunpack.c.l.b16 %v181
    %v683 = vunpack.c.l.b16 %v182
    %v684 = vunpack.c.l.b16 %v183
    %v685 = vunpack.c.l.b16 %v184
    %v686 = vunpack.c.l.b16 %v185
    %v687 = vunpack.c.l.b16 %v186
    %v688 = vunpack.c.l.b16 %v187
    %v689 = vunpack.c.l.b16 %v188
    %v690 = vunpack.c.l.b16 %v189
    %v691 = vunpack.c.l.b16 %v190
    %v692 = vunpack.c.l.b16 %v191
    %v693 = vunpack.c.l.b16 %v192
    %v694 = vunpack.c.l.b16 %v193
    %v695 = vunpack.c.l.b16 %v194
    %v696 = vunpack.c.l.b16 %v195
    %v697 = vunpack.c.l.b16 %v196
    %v698 = vunpack.c.l.b16 %v197
    %v699 = vunpack.c.l.b16 %v198
    %v700 = vunpack.c.l.b16 %v199
    %v701 = vunpack.c.l.b16 %v200
    %v702 = vunpack.c.l.b16 %v201
    %v703 = vunpack.c.l.b16 %v202
    %v704 = vunpack.c.l.b16 %v203
    %v705 = vunpack.c.l.b16 %v204
    %v706 = vunpack.c.l.b16 %v205
    %v707 = vunpack.c.l.b16 %v206
    %v708 = vunpack.c.l.b16 %v207
    %v709 = vunpack.c.l.b16 %v208
    %v710 = vunpack.c.l.b16 %v209
    %v711 = vunpack.c.l.b16 %v210
    %v712 = vunpack.c.l.b16 %v211
    %v713 = vunpack.c.l.b16 %v212
    %v714 = vunpack.c.l.b16 %v213
    %v715 = vunpack.c.l.b16 %v214
    %v716 = vunpack.c.l.b16 %v215
    %v717 = vunpack.c.l.b16 %v216
    %v718 = vunpack.c.l.b16 %v217
    %v719 = vunpack.c.l.b16 %v218
    %v720 = vunpack.c.l.b16 %v219
    %v721 = vpack.c.b16 %v526, %v525
    %v722 = vpack.c.b16 %v528, %v527
    %v723 = vpack.c.b16 %v530, %v529
    %v724 = vpack.c.b16 %v532, %v531
    %v725 = vpack.c.b16 %v534, %v533
    %v726 = vpack.c.b16 %v536, %v535
    %v727 = vpack.c.b16 %v538, %v537
    %v728 = vpack.c.b16 %v540, %v539
    %v729 = vpack.c.b16 %v542, %v541
    %v730 = vpack.c.b16 %v544, %v543
    %v731 = vpack.c.b16 %v546, %v545
    %v732 = vpack.c.b16 %v548, %v547
    %v733 = vpack.c.b16 %v550, %v549
    %v734 = vpack.c.b16 %v552, %v551
    %v735 = vpack.c.b16 %v554, %v553
    %v736 = vpack.c.b16 %v556, %v555
    %v737 = vpack.c.b16 %v558, %v557
    %v738 = vpack.c.b16 %v560, %v559
    %v739 = vpack.c.b16 %v562, %v561
    %v740 = vpack.c.b16 %v564, %v563
    %v741 = vpack.c.b16 %v566, %v565
    %v742 = vpack.c.b16 %v568, %v567
    %v743 = vpack.c.b16 %v570, %v569
    %v744 = vpack.c.b16 %v572, %v571
    %v745 = vpack.c.b16 %v574, %v573
    %v746 = vpack.c.b16 %v576, %v575
    %v747 = vpack.c.b16 %v578, %v577
    %v748 = vpack.c.b16 %v580, %v579
    %v749 = vpack.c.b16 %v582, %v581
    %v750 = vpack.c.b16 %v584, %v583
    %v751 = vpack.c.b16 %v586, %v585
    %v752 = vpack.c.b16 %v588, %v587
    %v753 = vpack.c.b16 %v590, %v589
    %v754 = vpack.c.b16 %v592, %v591
    %v755 = vpack.c.b16 %v594, %v593
    %v756 = vpack.c.b16 %v596, %v595
    %v757 = vpack.c.b16 %v598, %v597
    %v758 = vpack.c.b16 %v600, %v599
    %v759 = vpack.c.b16 %v602, %v601
    %v760 = vpack.c.b16 %v604, %v603
    %v761 = vpack.c.b16 %v606, %v605
    %v762 = vpack.c.b16 %v608, %v607
    %v763 = vpack.c.b16 %v610, %v609
    %v764 = vpack.c.b16 %v612, %v611
    %v765 = vpack.c.b16 %v614, %v613
    %v766 = vpack.c.b16 %v616, %v615
    %v767 = vpack.c.b16 %v618, %v617
    %v768 = vpack.c.b16 %v620, %v619
    %v769 = vpack.c.b16 %v622, %v621
    %v770 = vpack.c.b16 %v624, %v623
    %v771 = vpack.c.b16 %v626, %v625
    %v772 = vpack.c.b16 %v628, %v627
    %v773 = vpack.c.b16 %v630, %v629
    %v774 = vpack.c.b16 %v632, %v631
    %v775 = vpack.c.b16 %v634, %v633
    %v776 = vpack.c.b16 %v636, %v635
    %v777 = vpack.c.b16 %v638, %v637
    %v778 = vpack.c.b16 %v640, %v639
    %v779 = vpack.c.b16 %v642, %v641
    %v780 = vpack.c.b16 %v644, %v643
    %v781 = vpack.c.b16 %v646, %v645
    %v782 = vpack.c.b16 %v648, %v647
    %v783 = vpack.c.b16 %v650, %v649
    %v784 = vpack.c.b16 %v652, %v651
    %v785 = vpack.c.b16 %v654, %v653
    %v786 = vpack.c.b16 %v656, %v655
    %v787 = vpack.c.b16 %v658, %v657
    %v788 = vpack.c.b16 %v660, %v659
    %v789 = vpack.c.b16 %v662, %v661
    %v790 = vpack.c.b16 %v664, %v663
    %v791 = vpack.c.b16 %v666, %v665
    %v792 = vpack.c.b16 %v668, %v667
    %v793 = vpack.c.b16 %v670, %v669
    %v794 = vpack.c.b16 %v672, %v671
    %v795 = vpack.c.b16 %v674, %v673
    %v796 = vpack.c.b16 %v676, %v675
    %v797 = vpack.c.b16 %v678, %v677
    %v798 = vpack.c.b16 %v680, %v679
    %v799 = vpack.c.b16 %v682, %v681
    %v800 = vpack.c.b16 %v684, %v683
    %v801 = vpack.c.b16 %v686, %v685
    %v802 = vpack.c.b16 %v688, %v687
    %v803 = vpack.c.b16 %v690, %v689
    %v804 = vpack.c.b16 %v692, %v691
    %v805 = vpack.c.b16 %v694, %v693
    %v806 = vpack.c.b16 %v696, %v695
    %v807 = vpack.c.b16 %v698, %v697
    %v808 = vpack.c.b16 %v700, %v699
    %v809 = vpack.c.b16 %v702, %v701
    %v810 = vpack.c.b16 %v704, %v703
    %v811 = vpack.c.b16 %v706, %v705
    %v812 = vpack.c.b16 %v708, %v707
    %v813 = vpack.c.b16 %v710, %v709
    %v814 = vpack.c.b16 %v712, %v711
    %v815 = vpack.c.b16 %v714, %v713
    %v816 = vpack.c.b16 %v716, %v715
    %v817 = vpack.c.b16 %v718, %v717
    %v818 = vpack.c.b16 %v720, %v719
    %vm917 = vcmask 261120
    %v919 = vsel %vm917, %v307, 0
    %921 = vmatprep.subr.bf16.mxu0 0
    %922 = vmatpush1.bf16.msra.mxu0 %v721
    %923 = vmatprep.subr.bf16.mxu0 0
    %924 = vmatpush1.bf16.msra.mxu0 %v722
    %925 = vmatprep.subr.bf16.mxu0 0
    %926 = vmatpush1.bf16.msra.mxu0 %v723
    %927 = vmatprep.subr.bf16.mxu0 0
    %928 = vmatpush1.bf16.msra.mxu0 %v724
    %929 = vmatprep.subr.bf16.mxu0 0
    %930 = vmatpush1.bf16.msra.mxu0 %v725
    %931 = vmatprep.subr.bf16.mxu0 0
    %932 = vmatpush1.bf16.msra.mxu0 %v726
    %933 = vmatprep.subr.bf16.mxu0 0
    %934 = vmatpush1.bf16.msra.mxu0 %v727
    %935 = vmatprep.subr.bf16.mxu0 0
    %936 = vmatpush1.bf16.msra.mxu0 %v728
    %937 = vmatprep.subr.bf16.mxu0 0
    %938 = vmatpush1.bf16.msra.mxu0 %v729
    %939 = vmatprep.subr.bf16.mxu0 0
    %940 = vmatpush1.bf16.msra.mxu0 %v730
    %941 = vmatprep.subr.bf16.mxu0 0
    %942 = vmatpush1.bf16.msra.mxu0 %v731
    %943 = vmatprep.subr.bf16.mxu0 0
    %944 = vmatpush1.bf16.msra.mxu0 %v732
    %945 = vmatprep.subr.bf16.mxu0 0
    %946 = vmatpush1.bf16.msra.mxu0 %v733
    %947 = vmatprep.subr.bf16.mxu0 0
    %948 = vmatpush1.bf16.msra.mxu0 %v734
    %949 = vmatprep.subr.bf16.mxu0 0
    %950 = vmatpush1.bf16.msra.mxu0 %v735
    %951 = vmatprep.subr.bf16.mxu0 0
    %952 = vmatpush1.bf16.msra.mxu0 %v736
    %953 = vmatprep.mubr.bf16.mxu0 %v266
    %954 = vmatmul.mubr.bf16.gmra.mrb[0].mxu0 %v252
    %v955 = vpop.f32.mrb[0].mxu0
    %v956 = vadd.f32 %v225, %v955
    %v957 = vpop.f32.mrb[0].mxu0
    %v958 = vpop.f32.mrb[0].mxu0
    %v959 = vpop.f32.mrb[0].mxu0
    %960 = vdwg.mxu0
    %961 = vmatprep.subr.bf16.mxu0 0
    %962 = vmatpush1.bf16.msra.mxu0 %v737
    %963 = vmatprep.subr.bf16.mxu0 0
    %964 = vmatpush1.bf16.msra.mxu0 %v738
    %965 = vmatprep.subr.bf16.mxu0 0
    %966 = vmatpush1.bf16.msra.mxu0 %v739
    %967 = vmatprep.subr.bf16.mxu0 0
    %968 = vmatpush1.bf16.msra.mxu0 %v740
    %969 = vmatprep.subr.bf16.mxu0 0
    %970 = vmatpush1.bf16.msra.mxu0 %v741
    %971 = vmatprep.subr.bf16.mxu0 0
    %972 = vmatpush1.bf16.msra.mxu0 %v742
    %973 = vmatprep.subr.bf16.mxu0 0
    %974 = vmatpush1.bf16.msra.mxu0 %v743
    %975 = vmatprep.subr.bf16.mxu0 0
    %976 = vmatpush1.bf16.msra.mxu0 %v744
    %977 = vmatprep.subr.bf16.mxu0 0
    %978 = vmatpush1.bf16.msra.mxu0 %v745
    %979 = vmatprep.subr.bf16.mxu0 0
    %980 = vmatpush1.bf16.msra.mxu0 %v746
    %981 = vmatprep.subr.bf16.mxu0 0
    %982 = vmatpush1.bf16.msra.mxu0 %v747
    %983 = vmatprep.subr.bf16.mxu0 0
    %984 = vmatpush1.bf16.msra.mxu0 %v748
    %985 = vmatprep.subr.bf16.mxu0 0
    %986 = vmatpush1.bf16.msra.mxu0 %v749
    %987 = vmatprep.subr.bf16.mxu0 0
    %988 = vmatpush1.bf16.msra.mxu0 %v750
    %989 = vmatprep.subr.bf16.mxu0 0
    %990 = vmatpush1.bf16.msra.mxu0 %v751
    %991 = vmatprep.subr.bf16.mxu0 0
    %992 = vmatpush1.bf16.msra.mxu0 %v752
    %993 = vmatprep.mubr.bf16.mxu0 %v276
    %994 = vmatmul.mubr.bf16.gmra.mrb[0].mxu0 %v274
    %v995 = vpop.f32.mrb[0].mxu0
    %v996 = vadd.f32 %v956, %v995
    %v997 = vpop.f32.mrb[0].mxu0
    %v998 = vpop.f32.mrb[0].mxu0
    %v999 = vpop.f32.mrb[0].mxu0
    %1000 = vdwg.mxu0
    %1001 = vmatprep.subr.bf16.mxu0 0
    %1002 = vmatpush1.bf16.msra.mxu0 %v753
    %1003 = vmatprep.subr.bf16.mxu0 0
    %1004 = vmatpush1.bf16.msra.mxu0 %v754
    %1005 = vmatprep.subr.bf16.mxu0 0
    %1006 = vmatpush1.bf16.msra.mxu0 %v755
    %1007 = vmatprep.subr.bf16.mxu0 0
    %1008 = vmatpush1.bf16.msra.mxu0 %v756
    %1009 = vmatprep.subr.bf16.mxu0 0
    %1010 = vmatpush1.bf16.msra.mxu0 %v757
    %1011 = vmatprep.subr.bf16.mxu0 0
    %1012 = vmatpush1.bf16.msra.mxu0 %v758
    %1013 = vmatprep.subr.bf16.mxu0 0
    %1014 = vmatpush1.bf16.msra.mxu0 %v759
    %1015 = vmatprep.subr.bf16.mxu0 0
    %1016 = vmatpush1.bf16.msra.mxu0 %v760
    %1017 = vmatprep.subr.bf16.mxu0 0
    %1018 = vmatpush1.bf16.msra.mxu0 %v761
    %1019 = vmatprep.subr.bf16.mxu0 0
    %1020 = vmatpush1.bf16.msra.mxu0 %v762
    %1021 = vmatprep.subr.bf16.mxu0 0
    %1022 = vmatpush1.bf16.msra.mxu0 %v763
    %1023 = vmatprep.subr.bf16.mxu0 0
    %1024 = vmatpush1.bf16.msra.mxu0 %v764
    %1025 = vmatprep.subr.bf16.mxu0 0
    %1026 = vmatpush1.bf16.msra.mxu0 %v765
    %1027 = vmatprep.subr.bf16.mxu0 0
    %1028 = vmatpush1.bf16.msra.mxu0 %v766
    %1029 = vmatprep.subr.bf16.mxu0 0
    %1030 = vmatpush1.bf16.msra.mxu0 %v767
    %1031 = vmatprep.subr.bf16.mxu0 0
    %1032 = vmatpush1.bf16.msra.mxu0 %v768
    %1033 = vmatprep.mubr.bf16.mxu0 %v273
    %1034 = vmatmul.mubr.bf16.gmra.mrb[0].mxu0 %v259
    %v1035 = vpop.f32.mrb[0].mxu0
    %v1036 = vadd.f32 %v996, %v1035
    %v1037 = vpop.f32.mrb[0].mxu0
    %v1038 = vpop.f32.mrb[0].mxu0
    %v1039 = vpop.f32.mrb[0].mxu0
    %1040 = vdwg.mxu0
    %1041 = vmatprep.subr.bf16.mxu0 0
    %1042 = vmatpush1.bf16.msra.mxu0 %v769
    %1043 = vmatprep.subr.bf16.mxu0 0
    %1044 = vmatpush1.bf16.msra.mxu0 %v770
    %1045 = vmatprep.subr.bf16.mxu0 0
    %1046 = vmatpush1.bf16.msra.mxu0 %v771
    %1047 = vmatprep.subr.bf16.mxu0 0
    %1048 = vmatpush1.bf16.msra.mxu0 %v772
    %1049 = vmatprep.subr.bf16.mxu0 0
    %1050 = vmatpush1.bf16.msra.mxu0 %v773
    %1051 = vmatprep.subr.bf16.mxu0 0
    %1052 = vmatpush1.bf16.msra.mxu0 %v774
    %1053 = vmatprep.subr.bf16.mxu0 0
    %1054 = vmatpush1.bf16.msra.mxu0 %v775
    %1055 = vmatprep.subr.bf16.mxu0 0
    %1056 = vmatpush1.bf16.msra.mxu0 %v776
    %1057 = vmatprep.subr.bf16.mxu0 0
    %1058 = vmatpush1.bf16.msra.mxu0 %v777
    %1059 = vmatprep.subr.bf16.mxu0 0
    %1060 = vmatpush1.bf16.msra.mxu0 %v778
    %1061 = vmatprep.subr.bf16.mxu0 0
    %1062 = vmatpush1.bf16.msra.mxu0 %v779
    %1063 = vmatprep.subr.bf16.mxu0 0
    %1064 = vmatpush1.bf16.msra.mxu0 %v780
    %1065 = vmatprep.subr.bf16.mxu0 0
    %1066 = vmatpush1.bf16.msra.mxu0 %v781
    %1067 = vmatprep.subr.bf16.mxu0 0
    %1068 = vmatpush1.bf16.msra.mxu0 %v782
    %1069 = vmatprep.subr.bf16.mxu0 0
    %1070 = vmatpush1.bf16.msra.mxu0 %v783
    %1071 = vmatprep.subr.bf16.mxu0 0
    %1072 = vmatpush1.bf16.msra.mxu0 %v784
    %1073 = vmatprep.mubr.bf16.mxu0 %v277
    %1074 = vmatmul.mubr.bf16.gmra.mrb[0].mxu0 %v275
    %v1075 = vpop.f32.mrb[0].mxu0
    %v1076 = vadd.f32 %v1036, %v1075
    %v1077 = vpop.f32.mrb[0].mxu0
    %v1078 = vpop.f32.mrb[0].mxu0
    %v1079 = vpop.f32.mrb[0].mxu0
    %1080 = vdwg.mxu0
    %1081 = vmatprep.subr.bf16.mxu0 0
    %1082 = vmatpush1.bf16.msra.mxu0 %v785
    %1083 = vmatprep.subr.bf16.mxu0 0
    %1084 = vmatpush1.bf16.msra.mxu0 %v786
    %1085 = vmatprep.subr.bf16.mxu0 0
    %1086 = vmatpush1.bf16.msra.mxu0 %v787
    %1087 = vmatprep.subr.bf16.mxu0 0
    %1088 = vmatpush1.bf16.msra.mxu0 %v788
    %1089 = vmatprep.subr.bf16.mxu0 0
    %1090 = vmatpush1.bf16.msra.mxu0 %v789
    %1091 = vmatprep.subr.bf16.mxu0 0
    %1092 = vmatpush1.bf16.msra.mxu0 %v790
    %1093 = vmatprep.subr.bf16.mxu0 0
    %1094 = vmatpush1.bf16.msra.mxu0 %v791
    %1095 = vmatprep.subr.bf16.mxu0 0
    %1096 = vmatpush1.bf16.msra.mxu0 %v792
    %1097 = vmatprep.subr.bf16.mxu0 0
    %1098 = vmatpush1.bf16.msra.mxu0 %v793
    %1099 = vmatprep.subr.bf16.mxu0 0
    %1100 = vmatpush1.bf16.msra.mxu0 %v794
    %1101 = vmatprep.subr.bf16.mxu0 0
    %1102 = vmatpush1.bf16.msra.mxu0 %v795
    %1103 = vmatprep.subr.bf16.mxu0 0
    %1104 = vmatpush1.bf16.msra.mxu0 %v796
    %1105 = vmatprep.subr.bf16.mxu0 0
    %1106 = vmatpush1.bf16.msra.mxu0 %v797
    %1107 = vmatprep.subr.bf16.mxu0 0
    %1108 = vmatpush1.bf16.msra.mxu0 %v798
    %1109 = vmatprep.subr.bf16.mxu0 0
    %1110 = vmatpush1.bf16.msra.mxu0 %v799
    %1111 = vmatprep.subr.bf16.mxu0 0
    %1112 = vmatpush1.bf16.msra.mxu0 %v800
    %1113 = vmatprep.mubr.bf16.mxu0 %v314
    %1114 = vmatmul.mubr.bf16.gmra.mrb[0].mxu0 %v300
    %v1115 = vpop.f32.mrb[0].mxu0
    %v1116 = vadd.f32 %v1076, %v1115
    %v1117 = vpop.f32.mrb[0].mxu0
    %v1118 = vpop.f32.mrb[0].mxu0
    %v1119 = vpop.f32.mrb[0].mxu0
    %1120 = vdwg.mxu0
    %1121 = vmatprep.subr.bf16.mxu0 0
    %1122 = vmatpush1.bf16.msra.mxu0 %v801
    %1123 = vmatprep.subr.bf16.mxu0 0
    %1124 = vmatpush1.bf16.msra.mxu0 %v802
    %1125 = vmatprep.subr.bf16.mxu0 0
    %1126 = vmatpush1.bf16.msra.mxu0 %v803
    %1127 = vmatprep.subr.bf16.mxu0 0
    %1128 = vmatpush1.bf16.msra.mxu0 %v804
    %1129 = vmatprep.subr.bf16.mxu0 0
    %1130 = vmatpush1.bf16.msra.mxu0 %v805
    %1131 = vmatprep.subr.bf16.mxu0 0
    %1132 = vmatpush1.bf16.msra.mxu0 %v806
    %1133 = vmatprep.subr.bf16.mxu0 0
    %1134 = vmatpush1.bf16.msra.mxu0 %v807
    %1135 = vmatprep.subr.bf16.mxu0 0
    %1136 = vmatpush1.bf16.msra.mxu0 %v808
    %1137 = vmatprep.subr.bf16.mxu0 0
    %1138 = vmatpush1.bf16.msra.mxu0 %v809
    %1139 = vmatprep.subr.bf16.mxu0 0
    %1140 = vmatpush1.bf16.msra.mxu0 %v810
    %1141 = vmatprep.subr.bf16.mxu0 0
    %1142 = vmatpush1.bf16.msra.mxu0 %v811
    %1143 = vmatprep.subr.bf16.mxu0 0
    %1144 = vmatpush1.bf16.msra.mxu0 %v812
    %1145 = vmatprep.subr.bf16.mxu0 0
    %1146 = vmatpush1.bf16.msra.mxu0 %v813
    %1147 = vmatprep.subr.bf16.mxu0 0
    %1148 = vmatpush1.bf16.msra.mxu0 %v814
    %1149 = vmatprep.subr.bf16.mxu0 0
    %1150 = vmatpush1.bf16.msra.mxu0 %v815
    %1151 = vmatprep.subr.bf16.mxu0 0
    %1152 = vmatpush1.bf16.msra.mxu0 %v816
    %1153 = vmatprep.mubr.bf16.mxu0 %v316
    %1154 = vmatmul.mubr.bf16.gmra.mrb[0].mxu0 %v315
    %v1155 = vpop.f32.mrb[0].mxu0
    %v1156 = vadd.f32 %v1116, %v1155
    %v1157 = vpop.f32.mrb[0].mxu0
    %v1158 = vpop.f32.mrb[0].mxu0
    %v1159 = vpop.f32.mrb[0].mxu0
    %1160 = vdwg.mxu0
    %1161 = vmatprep.subr.bf16.mxu0 0
    %1162 = vmatpush1.bf16.msra.mxu0 %v817
    %1163 = vmatprep.subr.bf16.mxu0 0
    %1164 = vmatpush1.bf16.msra.mxu0 %v818
    %1165 = vmatprep.subr.bf16.mxu0 0
    %1166 = vmatpush1.bf16.msra.mxu0 0
    %1167 = vmatprep.subr.bf16.mxu0 0
    %1168 = vmatpush1.bf16.msra.mxu0 0
    %1169 = vmatprep.subr.bf16.mxu0 0
    %1170 = vmatpush1.bf16.msra.mxu0 0
    %1171 = vmatprep.subr.bf16.mxu0 0
    %1172 = vmatpush1.bf16.msra.mxu0 0
    %1173 = vmatprep.subr.bf16.mxu0 0
    %1174 = vmatpush1.bf16.msra.mxu0 0
    %1175 = vmatprep.subr.bf16.mxu0 0
    %1176 = vmatpush1.bf16.msra.mxu0 0
    %1177 = vmatprep.subr.bf16.mxu0 0
    %1178 = vmatpush1.bf16.msra.mxu0 0
    %1179 = vmatprep.subr.bf16.mxu0 0
    %1180 = vmatpush1.bf16.msra.mxu0 0
    %1181 = vmatprep.subr.bf16.mxu0 0
    %1182 = vmatpush1.bf16.msra.mxu0 0
    %1183 = vmatprep.subr.bf16.mxu0 0
    %1184 = vmatpush1.bf16.msra.mxu0 0
    %1185 = vmatprep.subr.bf16.mxu0 0
    %1186 = vmatpush1.bf16.msra.mxu0 0
    %1187 = vmatprep.subr.bf16.mxu0 0
    %1188 = vmatpush1.bf16.msra.mxu0 0
    %1189 = vmatprep.subr.bf16.mxu0 0
    %1190 = vmatpush1.bf16.msra.mxu0 0
    %1191 = vmatprep.subr.bf16.mxu0 0
    %1192 = vmatpush1.bf16.msra.mxu0 0
    %1193 = vmatprep.mubr.bf16.mxu0 0
    %1194 = vmatmul.mubr.bf16.gmra.mrb[0].mxu0 %v919
    %v1195 = vpop.f32.mrb[0].mxu0
    %v1196 = vadd.f32 %v1156, %v1195
    %v1197 = vpop.f32.mrb[0].mxu0
    %v1198 = vpop.f32.mrb[0].mxu0
    %v1199 = vpop.f32.mrb[0].mxu0
    %1200 = vdwg.mxu0
    %v1201 = vpack.c.bf16 %v1196, %v1196
    %v1202 = vld [vmem:[%s3] sm:$0xf]
    %v1203 = vld [vmem:[%s3 + $0x4] sm:$0xf]
    %v1204 = vld [vmem:[%s3 + $0x8] sm:$0xf]
    %v1205 = vld [vmem:[%s3 + $0xc] sm:$0xf]
    %v1206 = vld [vmem:[%s3 + $0x10] sm:$0xf]
    %v1207 = vld [vmem:[%s3 + $0x14] sm:$0xf]
    %v1208 = vld [vmem:[%s3 + $0x18] sm:$0xf]
    %v1209 = vld [vmem:[%s3 + $0x1c] sm:$0xf]
    %v1210 = vld [vmem:[%s3 + $0x20] sm:$0xf]
    %v1211 = vld [vmem:[%s3 + $0x24] sm:$0xf]
    %v1212 = vld [vmem:[%s3 + $0x28] sm:$0xf]
    %v1213 = vld [vmem:[%s3 + $0x2c] sm:$0xf]
    %v1214 = vld [vmem:[%s3 + $0x30] sm:$0xf]
    %v1215 = vld [vmem:[%s3 + $0x34] sm:$0xf]
    %v1216 = vld [vmem:[%s3 + $0x38] sm:$0xf]
    %v1217 = vld [vmem:[%s3 + $0x3c] sm:$0xf]
    %v1218 = vld [vmem:[%s4] sm:$0x1]
    %v1220 = vlaneseq
    %v1221 = vshrl.u32 %v1220, 7
    %v1222 = vsub.s32 0, %v1221
    %v1223 = vrot.slane %v1218, %v1222
    %v1241 = vunpack.c.l.b16 %v1202
    %v1242 = vunpack.c.l.b16 %v1203
    %v1243 = vunpack.c.l.b16 %v1204
    %v1244 = vunpack.c.l.b16 %v1205
    %v1245 = vunpack.c.l.b16 %v1206
    %v1246 = vunpack.c.l.b16 %v1207
    %v1247 = vunpack.c.l.b16 %v1208
    %v1248 = vunpack.c.l.b16 %v1209
    %v1249 = vunpack.c.l.b16 %v1210
    %v1250 = vunpack.c.l.b16 %v1211
    %v1251 = vunpack.c.l.b16 %v1212
    %v1252 = vunpack.c.l.b16 %v1213
    %v1253 = vunpack.c.l.b16 %v1214
    %v1254 = vunpack.c.l.b16 %v1215
    %v1255 = vunpack.c.l.b16 %v1216
    %v1256 = vunpack.c.l.b16 %v1217
    %v1257 = vpack.c.b16 %v1242, %v1241
    %v1258 = vpack.c.b16 %v1244, %v1243
    %v1259 = vpack.c.b16 %v1246, %v1245
    %v1260 = vpack.c.b16 %v1248, %v1247
    %v1261 = vpack.c.b16 %v1250, %v1249
    %v1262 = vpack.c.b16 %v1252, %v1251
    %v1263 = vpack.c.b16 %v1254, %v1253
    %v1264 = vpack.c.b16 %v1256, %v1255
    %1273 = vmatprep.subr.bf16.mxu0 0
    %1274 = vmatpush1.bf16.msra.mxu0 %v1257
    %1275 = vmatprep.subr.bf16.mxu0 0
    %1276 = vmatpush1.bf16.msra.mxu0 %v1258
    %1277 = vmatprep.subr.bf16.mxu0 0
    %1278 = vmatpush1.bf16.msra.mxu0 %v1259
    %1279 = vmatprep.subr.bf16.mxu0 0
    %1280 = vmatpush1.bf16.msra.mxu0 %v1260
    %1281 = vmatprep.subr.bf16.mxu0 0
    %1282 = vmatpush1.bf16.msra.mxu0 %v1261
    %1283 = vmatprep.subr.bf16.mxu0 0
    %1284 = vmatpush1.bf16.msra.mxu0 %v1262
    %1285 = vmatprep.subr.bf16.mxu0 0
    %1286 = vmatpush1.bf16.msra.mxu0 %v1263
    %1287 = vmatprep.subr.bf16.mxu0 0
    %1288 = vmatpush1.bf16.msra.mxu0 %v1264
    %1289 = vmatprep.subr.bf16.mxu0 0
    %1290 = vmatpush1.bf16.msra.mxu0 0
    %1291 = vmatprep.subr.bf16.mxu0 0
    %1292 = vmatpush1.bf16.msra.mxu0 0
    %1293 = vmatprep.subr.bf16.mxu0 0
    %1294 = vmatpush1.bf16.msra.mxu0 0
    %1295 = vmatprep.subr.bf16.mxu0 0
    %1296 = vmatpush1.bf16.msra.mxu0 0
    %1297 = vmatprep.subr.bf16.mxu0 0
    %1298 = vmatpush1.bf16.msra.mxu0 0
    %1299 = vmatprep.subr.bf16.mxu0 0
    %1300 = vmatpush1.bf16.msra.mxu0 0
    %1301 = vmatprep.subr.bf16.mxu0 0
    %1302 = vmatpush1.bf16.msra.mxu0 0
    %1303 = vmatprep.subr.bf16.mxu0 0
    %1304 = vmatpush1.bf16.msra.mxu0 0
    %1305 = vmatprep.mubr.bf16.mxu0 0
    %1306 = vmatmul.mubr.bf16.gmra.mrb[0].mxu0 %v1201
    %v1307 = vpop.f32.mrb[0].mxu0
    %v1308 = vadd.f32 %v1223, %v1307
    %v1309 = vpop.f32.mrb[0].mxu0
    %v1310 = vpop.f32.mrb[0].mxu0
    %v1311 = vpop.f32.mrb[0].mxu0
    %1312 = vdwg.mxu0
    %vm1313 = vcmask 74752
    %1314 = vst.msk [vmem:[#allocation2] sm:$0x3] %vm1313, %v1308
    // Predicated region
    $region22: #{_lambda_.5} parent=1 // pred_check
      _
    $region23: #{_lambda_.5} parent=1 // pred_check_branch
      %1316 = sbr.rel (0) target = $region25
    $region24: #{_lambda_.5} parent=1 // pred_region
      %s1318 = ssub.s32 32, 32
      %1319 = vsyncadd [#allocation3], %s1318
      %s1321 = sshll.u32 [#allocation2], 4
      %s1322 = int_to_ptr.vmem [resolvable:$true] %s1321
      %1324 = dma.vmem_to_hbm [thread:$0]  %s1322, 32, %s5, [#allocation3]
    $region25: #{_lambda_.5} parent=1 // pred_fallthru
      _
    // Predicated region
    $region26: #{_lambda_.5} parent=1 // pred_check
      _
    $region27: #{_lambda_.5} parent=1 // pred_check_branch
      %1326 = sbr.rel (0) target = $region29
    $region28: #{_lambda_.5} parent=1 // pred_region
      %1327 = dma.done [#allocation3], 32
    $region29: #{_lambda_.5} parent=1 // pred_fallthru
      _
    %1328 = vsyncpa [#allocation3], 1

</llo_original>
